<compile_context>
chip_gen: v7x
topology: tpu7x:2x2x1
jax: 0.10.0
libtpu: 0.0.40
codegen_flags: <defaults>
</compile_context>

<pallas_src>
import jax
import jax.numpy as jnp
from jax.experimental import pallas as pl
from jax.experimental.pallas import tpu as pltpu


_TM_CAP = 1024        # row-tile cap: conv2 block @1024 rows ~8.5 MiB double-buffered
_MIN_ROW_TILES = 4    # aim for >=4 row tiles so v7x's 2 TensorCores both get work


# ---------------------------------------------------------------------------
# Pallas kernels
# ---------------------------------------------------------------------------
def _conv_pool_kernel(t_ref, w_ref, b_ref, o_ref):
    """Fused conv(as matmul) + bias + relu + 2x2 max-pool.

    t_ref is a (4, TM, K) block: the im2col patch rows of the 4 conv outputs
    inside each 2x2 pool window.  relu(max_i(y_i) + b) == max_i relu(y_i + b)
    because the bias is shared and relu is monotone, so the pool happens on
    the f32 accumulators in-registers and only the pooled tile is stored.
    """
    w = w_ref[...]
    y0 = jnp.dot(t_ref[0], w, preferred_element_type=jnp.float32)
    y1 = jnp.dot(t_ref[1], w, preferred_element_type=jnp.float32)
    y2 = jnp.dot(t_ref[2], w, preferred_element_type=jnp.float32)
    y3 = jnp.dot(t_ref[3], w, preferred_element_type=jnp.float32)
    y = jnp.maximum(jnp.maximum(y0, y1), jnp.maximum(y2, y3))
    o_ref[...] = jnp.maximum(y + b_ref[...], 0.0).astype(o_ref.dtype)


def _fc_head_kernel(x_ref, w1_ref, b1_ref, w2_ref, b2_ref, o_ref):
    """Fused fc1+relu -> fc2+bias -> log_softmax.

    The (TM, 500) hidden activation lives only in registers/VMEM.  The full
    class dim (10) is resident in the block, so the row-wise reductions of
    log_softmax are exact.  Never tile the class axis.
    """
    h = jnp.dot(x_ref[...], w1_ref[...], preferred_element_type=jnp.float32)
    h = jnp.maximum(h + b1_ref[...], 0.0)
    y = jnp.dot(h.astype(jnp.bfloat16), w2_ref[...],
                preferred_element_type=jnp.float32) + b2_ref[...]
    m = jnp.max(y, axis=1, keepdims=True)
    s = y - m
    lse = jnp.log(jnp.sum(jnp.exp(s), axis=1, keepdims=True))
    o_ref[...] = (s - lse).astype(o_ref.dtype)


# ---------------------------------------------------------------------------
# Tiling helpers
# ---------------------------------------------------------------------------
def _cdiv(a, b):
    return -(-a // b)


def _round_up(x, m):
    return _cdiv(x, m) * m


def _row_tiling(m, cap=_TM_CAP, min_tiles=_MIN_ROW_TILES):
    """Pick (TM, Mp) such that:
      * TM is a multiple of 8 and <= cap,
      * there are >= min_tiles grid steps whenever m is big enough for each
        tile to hold >= 8 rows (feeds both v7x cores; neutral on v5e/v6e),
      * padding Mp - m is always < one tile (no ragged 2x blow-up).
    """
    n = max(_cdiv(m, cap), min(min_tiles, _cdiv(m, 8)), 1)
    tm = _round_up(_cdiv(m, n), 8)
    return tm, _round_up(m, tm)


def _pad_axis(x, size, axis):
    if x.shape[axis] == size:
        return x
    pads = [(0, 0)] * x.ndim
    pads[axis] = (0, size - x.shape[axis])
    return jnp.pad(x, pads)


# ---------------------------------------------------------------------------
# Wrappers around pallas_call
# ---------------------------------------------------------------------------
def conv_relu_pool(x_nhwc, w_flat, b, out_dtype=jnp.bfloat16):
    """5x5 valid conv (as im2col matmul) + bias + relu + 2x2 max-pool, fused."""
    N, H, W, Cin = x_nhwc.shape
    kh = kw = 5
    Ho, Wo = H - kh + 1, W - kw + 1
    Po, Qo = Ho // 2, Wo // 2
    Cout = w_flat.shape[1]
    K = kh * kw * Cin
    M = N * Po * Qo

    xb = x_nhwc.astype(jnp.bfloat16)
    # Tap-major im2col built directly with strided slices (single fused gather;
    # no (N,Ho,Wo,K) intermediate, no per-tap pad).  Tap t = 2*pi+pj holds the
    # patch rows of the conv outputs at pool-window offset (pi, pj); the K
    # columns are ordered (dy, dx, cin) to match w_flat's rows.
    taps = []
    for pi in (0, 1):
        for pj in (0, 1):
            cols = [xb[:, pi + dy: pi + dy + 2 * Po: 2,
                        pj + dx: pj + dx + 2 * Qo: 2, :]
                    for dy in range(kh) for dx in range(kw)]
            taps.append(jnp.concatenate(cols, axis=-1).reshape(M, K))
    taps = jnp.stack(taps, axis=0)                         # (4, M, K)

    TM, Mp = _row_tiling(M)
    taps = _pad_axis(taps, Mp, axis=1)

    out = pl.pallas_call(
        _conv_pool_kernel,
        out_shape=jax.ShapeDtypeStruct((Mp, Cout), out_dtype),
        grid=(Mp // TM,),
        in_specs=[
            pl.BlockSpec((4, TM, K), lambda i: (0, i, 0)),   # streamed tap rows
            pl.BlockSpec((K, Cout), lambda i: (0, 0)),       # weights resident
            pl.BlockSpec((1, Cout), lambda i: (0, 0)),       # bias resident
        ],
        out_specs=pl.BlockSpec((TM, Cout), lambda i: (i, 0)),
        compiler_params=pltpu.CompilerParams(dimension_semantics=("parallel",)),
    )(taps, w_flat.astype(jnp.bfloat16), b.reshape(1, Cout).astype(jnp.float32))
    return out[:M].reshape(N, Po, Qo, Cout)


def fc_head(x, w1, b1, w2, b2):
    """Fused fc1(relu) + fc2 + log_softmax in one pallas_call."""
    M, K1 = x.shape
    N1 = w1.shape[1]
    N2 = w2.shape[1]
    TM, Mp = _row_tiling(M)
    xp = _pad_axis(x.astype(jnp.bfloat16), Mp, axis=0)
    out = pl.pallas_call(
        _fc_head_kernel,
        out_shape=jax.ShapeDtypeStruct((Mp, N2), jnp.float32),
        grid=(Mp // TM,),
        in_specs=[
            pl.BlockSpec((TM, K1), lambda i: (i, 0)),   # streamed activations
            pl.BlockSpec((K1, N1), lambda i: (0, 0)),   # fc1 weight resident
            pl.BlockSpec((1, N1), lambda i: (0, 0)),    # fc1 bias resident
            pl.BlockSpec((N1, N2), lambda i: (0, 0)),   # fc2 weight resident
            pl.BlockSpec((1, N2), lambda i: (0, 0)),    # fc2 bias resident
        ],
        out_specs=pl.BlockSpec((TM, N2), lambda i: (i, 0)),
        compiler_params=pltpu.CompilerParams(dimension_semantics=("parallel",)),
    )(xp,
      w1.astype(jnp.bfloat16), b1.reshape(1, N1).astype(jnp.float32),
      w2.astype(jnp.bfloat16), b2.reshape(1, N2).astype(jnp.float32))
    return out[:M]


# ---------------------------------------------------------------------------
# Deterministic parameter init (shapes from WarmNet.__init__ / warm.up)
# ---------------------------------------------------------------------------
def init_params(key):
    ks = jax.random.split(key, 8)

    def u(k, shape, fan_in):
        bound = 1.0 / jnp.sqrt(float(fan_in))
        return jax.random.uniform(k, shape, jnp.float32, -bound, bound)

    # fc1 weight corresponds to PyTorch's x.view(-1, 800) row order, i.e. a
    # flatten of (C=50, H=4, W=4).  Permute its rows ONCE to (H, W, C) flatten
    # order so the NHWC-flattened activation needs no runtime transpose.
    fc1_w_chw = u(ks[4], (800, 500), 800)
    fc1_w_hwc = fc1_w_chw.reshape(50, 4, 4, 500).transpose(1, 2, 0, 3).reshape(800, 500)

    # NOTE: conv weights are generated directly with rows in (dy, dx, cin)
    # order, matching the in-kernel im2col.  If a real PyTorch checkpoint were
    # loaded, its (Cout, Cin, kh, kw) weights would need the analogous row
    # permutation (cin, dy, dx) -> (dy, dx, cin).
    return {
        "conv1_w": u(ks[0], (5 * 5 * 1, 20), 5 * 5 * 1).astype(jnp.bfloat16),
        "conv1_b": u(ks[1], (20,), 5 * 5 * 1),
        "conv2_w": u(ks[2], (5 * 5 * 20, 50), 5 * 5 * 20).astype(jnp.bfloat16),
        "conv2_b": u(ks[3], (50,), 5 * 5 * 20),
        "fc1_w": fc1_w_hwc.astype(jnp.bfloat16),
        "fc1_b": u(ks[5], (500,), 800),
        "fc2_w": u(ks[6], (500, 10), 500).astype(jnp.bfloat16),
        "fc2_b": u(ks[7], (10,), 500),
    }


# ---------------------------------------------------------------------------
# Forward pass (mirrors WarmNet.forward)
# ---------------------------------------------------------------------------
@jax.jit
def warmnet_forward(x_nchw, params):
    N, C, H, W = x_nchw.shape
    # C == 1 makes NCHW -> NHWC a pure reshape (no transpose copy emitted).
    x = (x_nchw.reshape(N, H, W, C) if C == 1
         else jnp.transpose(x_nchw, (0, 2, 3, 1))).astype(jnp.bfloat16)
    x = conv_relu_pool(x, params["conv1_w"], params["conv1_b"])    # (N,12,12,20)
    x = conv_relu_pool(x, params["conv2_w"], params["conv2_b"])    # (N, 4, 4,50)
    # NHWC flatten; fc1_w rows were pre-permuted, so no transpose is needed.
    x = x.reshape(N, 800)
    return fc_head(x, params["fc1_w"], params["fc1_b"],
                   params["fc2_w"], params["fc2_b"])               # (N, 10) f32


if __name__ == "__main__":
    key = jax.random.PRNGKey(0)
    pkey, xkey = jax.random.split(key)
    params = init_params(pkey)
    x = jax.random.normal(xkey, (2, 1, 28, 28), jnp.float32)

    out = jax.block_until_ready(warmnet_forward(x, params))

    assert out.shape == (2, 10), out.shape
    # log_softmax rows must exponentiate to a probability distribution.
    # (bf16 matmul operands => ~1e-2 relative deviation vs an f32 torch ref,
    # but the f32 log_softmax itself is exact to ~1e-6.)
    assert bool(jnp.allclose(jnp.sum(jnp.exp(out), axis=1), 1.0, atol=1e-4))
    print("KERNEL_OK")
</pallas_src>

<mosaic_0001>
module attributes {stable_mosaic.version = 11 : i64} {
  func.func @_conv_pool_kernel(%arg0: i32, %arg1: memref<4x72x25xbf16, #tpu.memory_space<vmem>>, %arg2: memref<25x20xbf16, #tpu.memory_space<vmem>>, %arg3: memref<1x20xf32, #tpu.memory_space<vmem>>, %arg4: memref<72x20xbf16, #tpu.memory_space<vmem>>) attributes {dimension_semantics = [#tpu.dimension_semantics<parallel>], iteration_bounds = array<i64: 4>, scalar_prefetch = 0 : i64, scratch_operands = 0 : i64, tpu.core_type = #tpu.core_type<tc>, window_params = [{transform_indices = @transform_0, window_bounds = array<i64: 4, 72, 25>}, {pipeline_mode = #tpu.pipeline_mode<synchronous>, transform_indices = @transform_1, window_bounds = array<i64: 25, 20>}, {pipeline_mode = #tpu.pipeline_mode<synchronous>, transform_indices = @transform_2, window_bounds = array<i64: 1, 20>}, {transform_indices = @transform_3, window_bounds = array<i64: 72, 20>}]} {
    %c0 = arith.constant 0 : index
    %c0_0 = arith.constant 0 : index
    %0 = vector.load %arg2[%c0, %c0_0] : memref<25x20xbf16, #tpu.memory_space<vmem>>, vector<25x20xbf16>
    %c0_1 = arith.constant 0 : index
    %c0_2 = arith.constant 0 : index
    %c0_3 = arith.constant 0 : index
    %1 = vector.load %arg1[%c0_1, %c0_2, %c0_3] : memref<4x72x25xbf16, #tpu.memory_space<vmem>>, vector<1x72x25xbf16>
    %2 = vector.shape_cast %1 : vector<1x72x25xbf16> to vector<72x25xbf16>
    %cst = arith.constant dense<0.000000e+00> : vector<72x20xf32>
    %3 = tpu.matmul %2, %0, %cst {dimension_numbers = #tpu.dot_dimension_numbers<[1], [0], [0], [1], [0, 0, 1, 1], [], []>} : vector<72x25xbf16>, vector<25x20xbf16>, vector<72x20xf32> -> vector<72x20xf32>
    %c1 = arith.constant 1 : index
    %c0_4 = arith.constant 0 : index
    %c0_5 = arith.constant 0 : index
    %4 = vector.load %arg1[%c1, %c0_4, %c0_5] : memref<4x72x25xbf16, #tpu.memory_space<vmem>>, vector<1x72x25xbf16>
    %5 = vector.shape_cast %4 : vector<1x72x25xbf16> to vector<72x25xbf16>
    %cst_6 = arith.constant dense<0.000000e+00> : vector<72x20xf32>
    %6 = tpu.matmul %5, %0, %cst_6 {dimension_numbers = #tpu.dot_dimension_numbers<[1], [0], [0], [1], [0, 0, 1, 1], [], []>} : vector<72x25xbf16>, vector<25x20xbf16>, vector<72x20xf32> -> vector<72x20xf32>
    %c2 = arith.constant 2 : index
    %c0_7 = arith.constant 0 : index
    %c0_8 = arith.constant 0 : index
    %7 = vector.load %arg1[%c2, %c0_7, %c0_8] : memref<4x72x25xbf16, #tpu.memory_space<vmem>>, vector<1x72x25xbf16>
    %8 = vector.shape_cast %7 : vector<1x72x25xbf16> to vector<72x25xbf16>
    %cst_9 = arith.constant dense<0.000000e+00> : vector<72x20xf32>
    %9 = tpu.matmul %8, %0, %cst_9 {dimension_numbers = #tpu.dot_dimension_numbers<[1], [0], [0], [1], [0, 0, 1, 1], [], []>} : vector<72x25xbf16>, vector<25x20xbf16>, vector<72x20xf32> -> vector<72x20xf32>
    %c3 = arith.constant 3 : index
    %c0_10 = arith.constant 0 : index
    %c0_11 = arith.constant 0 : index
    %10 = vector.load %arg1[%c3, %c0_10, %c0_11] : memref<4x72x25xbf16, #tpu.memory_space<vmem>>, vector<1x72x25xbf16>
    %11 = vector.shape_cast %10 : vector<1x72x25xbf16> to vector<72x25xbf16>
    %cst_12 = arith.constant dense<0.000000e+00> : vector<72x20xf32>
    %12 = tpu.matmul %11, %0, %cst_12 {dimension_numbers = #tpu.dot_dimension_numbers<[1], [0], [0], [1], [0, 0, 1, 1], [], []>} : vector<72x25xbf16>, vector<25x20xbf16>, vector<72x20xf32> -> vector<72x20xf32>
    %13 = arith.maximumf %3, %6 : vector<72x20xf32>
    %14 = arith.maximumf %9, %12 : vector<72x20xf32>
    %15 = arith.maximumf %13, %14 : vector<72x20xf32>
    %c0_13 = arith.constant 0 : index
    %c0_14 = arith.constant 0 : index
    %16 = vector.load %arg3[%c0_13, %c0_14] : memref<1x20xf32, #tpu.memory_space<vmem>>, vector<1x20xf32>
    %17 = vector.broadcast %16 : vector<1x20xf32> to vector<72x20xf32>
    %18 = arith.addf %15, %17 : vector<72x20xf32>
    %cst_15 = arith.constant 0.000000e+00 : f32
    %19 = vector.broadcast %cst_15 : f32 to vector<72x20xf32>
    %20 = arith.maximumf %18, %19 : vector<72x20xf32>
    %21 = arith.truncf %20 : vector<72x20xf32> to vector<72x20xbf16>
    %c0_16 = arith.constant 0 : index
    %c0_17 = arith.constant 0 : index
    %22 = vector.load %arg4[%c0_16, %c0_17] : memref<72x20xbf16, #tpu.memory_space<vmem>>, vector<72x20xbf16>
    tpu.vector_store %arg4[%c0_16, %c0_17], %21 {strides = array<i32>} : memref<72x20xbf16, #tpu.memory_space<vmem>>, vector<72x20xbf16>,
    return
  }
  func.func @transform_0(%arg0: i32) -> (i32, i32, i32) {
    %c0_i32 = arith.constant 0 : i32
    %c0_i32_0 = arith.constant 0 : i32
    %c0_i32_1 = arith.constant 0 : i32
    return %c0_i32, %arg0, %c0_i32_0 : i32, i32, i32
  }
  func.func @transform_1(%arg0: i32) -> (i32, i32) {
    %c0_i32 = arith.constant 0 : i32
    %c0_i32_0 = arith.constant 0 : i32
    %c0_i32_1 = arith.constant 0 : i32
    return %c0_i32, %c0_i32_0 : i32, i32
  }
  func.func @transform_2(%arg0: i32) -> (i32, i32) {
    %c0_i32 = arith.constant 0 : i32
    %c0_i32_0 = arith.constant 0 : i32
    %c0_i32_1 = arith.constant 0 : i32
    return %c0_i32, %c0_i32_0 : i32, i32
  }
  func.func @transform_3(%arg0: i32) -> (i32, i32) {
    %c0_i32 = arith.constant 0 : i32
    %c0_i32_0 = arith.constant 0 : i32
    return %arg0, %c0_i32 : i32, i32
  }
}

module attributes {stable_mosaic.version = 11 : i64} {
  func.func @_conv_pool_kernel(%arg0: i32, %arg1: memref<4x8x500xbf16, #tpu.memory_space<vmem>>, %arg2: memref<500x50xbf16, #tpu.memory_space<vmem>>, %arg3: memref<1x50xf32, #tpu.memory_space<vmem>>, %arg4: memref<8x50xbf16, #tpu.memory_space<vmem>>) attributes {dimension_semantics = [#tpu.dimension_semantics<parallel>], iteration_bounds = array<i64: 4>, scalar_prefetch = 0 : i64, scratch_operands = 0 : i64, tpu.core_type = #tpu.core_type<tc>, window_params = [{transform_indices = @transform_0, window_bounds = array<i64: 4, 8, 500>}, {pipeline_mode = #tpu.pipeline_mode<synchronous>, transform_indices = @transform_1, window_bounds = array<i64: 500, 50>}, {pipeline_mode = #tpu.pipeline_mode<synchronous>, transform_indices = @transform_2, window_bounds = array<i64: 1, 50>}, {transform_indices = @transform_3, window_bounds = array<i64: 8, 50>}]} {
    %c0 = arith.constant 0 : index
    %c0_0 = arith.constant 0 : index
    %0 = vector.load %arg2[%c0, %c0_0] : memref<500x50xbf16, #tpu.memory_space<vmem>>, vector<500x50xbf16>
    %c0_1 = arith.constant 0 : index
    %c0_2 = arith.constant 0 : index
    %c0_3 = arith.constant 0 : index
    %1 = vector.load %arg1[%c0_1, %c0_2, %c0_3] : memref<4x8x500xbf16, #tpu.memory_space<vmem>>, vector<1x8x500xbf16>
    %2 = vector.shape_cast %1 : vector<1x8x500xbf16> to vector<8x500xbf16>
    %cst = arith.constant dense<0.000000e+00> : vector<8x50xf32>
    %3 = tpu.matmul %2, %0, %cst {dimension_numbers = #tpu.dot_dimension_numbers<[1], [0], [0], [1], [0, 0, 1, 1], [], []>} : vector<8x500xbf16>, vector<500x50xbf16>, vector<8x50xf32> -> vector<8x50xf32>
    %c1 = arith.constant 1 : index
    %c0_4 = arith.constant 0 : index
    %c0_5 = arith.constant 0 : index
    %4 = vector.load %arg1[%c1, %c0_4, %c0_5] : memref<4x8x500xbf16, #tpu.memory_space<vmem>>, vector<1x8x500xbf16>
    %5 = vector.shape_cast %4 : vector<1x8x500xbf16> to vector<8x500xbf16>
    %cst_6 = arith.constant dense<0.000000e+00> : vector<8x50xf32>
    %6 = tpu.matmul %5, %0, %cst_6 {dimension_numbers = #tpu.dot_dimension_numbers<[1], [0], [0], [1], [0, 0, 1, 1], [], []>} : vector<8x500xbf16>, vector<500x50xbf16>, vector<8x50xf32> -> vector<8x50xf32>
    %c2 = arith.constant 2 : index
    %c0_7 = arith.constant 0 : index
    %c0_8 = arith.constant 0 : index
    %7 = vector.load %arg1[%c2, %c0_7, %c0_8] : memref<4x8x500xbf16, #tpu.memory_space<vmem>>, vector<1x8x500xbf16>
    %8 = vector.shape_cast %7 : vector<1x8x500xbf16> to vector<8x500xbf16>
    %cst_9 = arith.constant dense<0.000000e+00> : vector<8x50xf32>
    %9 = tpu.matmul %8, %0, %cst_9 {dimension_numbers = #tpu.dot_dimension_numbers<[1], [0], [0], [1], [0, 0, 1, 1], [], []>} : vector<8x500xbf16>, vector<500x50xbf16>, vector<8x50xf32> -> vector<8x50xf32>
    %c3 = arith.constant 3 : index
    %c0_10 = arith.constant 0 : index
    %c0_11 = arith.constant 0 : index
    %10 = vector.load %arg1[%c3, %c0_10, %c0_11] : memref<4x8x500xbf16, #tpu.memory_space<vmem>>, vector<1x8x500xbf16>
    %11 = vector.shape_cast %10 : vector<1x8x500xbf16> to vector<8x500xbf16>
    %cst_12 = arith.constant dense<0.000000e+00> : vector<8x50xf32>
    %12 = tpu.matmul %11, %0, %cst_12 {dimension_numbers = #tpu.dot_dimension_numbers<[1], [0], [0], [1], [0, 0, 1, 1], [], []>} : vector<8x500xbf16>, vector<500x50xbf16>, vector<8x50xf32> -> vector<8x50xf32>
    %13 = arith.maximumf %3, %6 : vector<8x50xf32>
    %14 = arith.maximumf %9, %12 : vector<8x50xf32>
    %15 = arith.maximumf %13, %14 : vector<8x50xf32>
    %c0_13 = arith.constant 0 : index
    %c0_14 = arith.constant 0 : index
    %16 = vector.load %arg3[%c0_13, %c0_14] : memref<1x50xf32, #tpu.memory_space<vmem>>, vector<1x50xf32>
    %17 = vector.broadcast %16 : vector<1x50xf32> to vector<8x50xf32>
    %18 = arith.addf %15, %17 : vector<8x50xf32>
    %cst_15 = arith.constant 0.000000e+00 : f32
    %19 = vector.broadcast %cst_15 : f32 to vector<8x50xf32>
    %20 = arith.maximumf %18, %19 : vector<8x50xf32>
    %21 = arith.truncf %20 : vector<8x50xf32> to vector<8x50xbf16>
    %c0_16 = arith.constant 0 : index
    %c0_17 = arith.constant 0 : index
    %22 = vector.load %arg4[%c0_16, %c0_17] : memref<8x50xbf16, #tpu.memory_space<vmem>>, vector<8x50xbf16>
    tpu.vector_store %arg4[%c0_16, %c0_17], %21 {strides = array<i32>} : memref<8x50xbf16, #tpu.memory_space<vmem>>, vector<8x50xbf16>,
    return
  }
  func.func @transform_0(%arg0: i32) -> (i32, i32, i32) {
    %c0_i32 = arith.constant 0 : i32
    %c0_i32_0 = arith.constant 0 : i32
    %c0_i32_1 = arith.constant 0 : i32
    return %c0_i32, %arg0, %c0_i32_0 : i32, i32, i32
  }
  func.func @transform_1(%arg0: i32) -> (i32, i32) {
    %c0_i32 = arith.constant 0 : i32
    %c0_i32_0 = arith.constant 0 : i32
    %c0_i32_1 = arith.constant 0 : i32
    return %c0_i32, %c0_i32_0 : i32, i32
  }
  func.func @transform_2(%arg0: i32) -> (i32, i32) {
    %c0_i32 = arith.constant 0 : i32
    %c0_i32_0 = arith.constant 0 : i32
    %c0_i32_1 = arith.constant 0 : i32
    return %c0_i32, %c0_i32_0 : i32, i32
  }
  func.func @transform_3(%arg0: i32) -> (i32, i32) {
    %c0_i32 = arith.constant 0 : i32
    %c0_i32_0 = arith.constant 0 : i32
    return %arg0, %c0_i32 : i32, i32
  }
}

module attributes {stable_mosaic.version = 11 : i64} {
  func.func @_fc_head_kernel(%arg0: i32, %arg1: memref<8x800xbf16, #tpu.memory_space<vmem>>, %arg2: memref<800x500xbf16, #tpu.memory_space<vmem>>, %arg3: memref<1x500xf32, #tpu.memory_space<vmem>>, %arg4: memref<500x10xbf16, #tpu.memory_space<vmem>>, %arg5: memref<1x10xf32, #tpu.memory_space<vmem>>, %arg6: memref<8x10xf32, #tpu.memory_space<vmem>>) attributes {dimension_semantics = [#tpu.dimension_semantics<parallel>], iteration_bounds = array<i64: 1>, scalar_prefetch = 0 : i64, scratch_operands = 0 : i64, tpu.core_type = #tpu.core_type<tc>, window_params = [{transform_indices = @transform_0, window_bounds = array<i64: 8, 800>}, {pipeline_mode = #tpu.pipeline_mode<synchronous>, transform_indices = @transform_1, window_bounds = array<i64: 800, 500>}, {pipeline_mode = #tpu.pipeline_mode<synchronous>, transform_indices = @transform_2, window_bounds = array<i64: 1, 500>}, {pipeline_mode = #tpu.pipeline_mode<synchronous>, transform_indices = @transform_3, window_bounds = array<i64: 500, 10>}, {pipeline_mode = #tpu.pipeline_mode<synchronous>, transform_indices = @transform_4, window_bounds = array<i64: 1, 10>}, {transform_indices = @transform_5, window_bounds = array<i64: 8, 10>}]} {
    %c0 = arith.constant 0 : index
    %c0_0 = arith.constant 0 : index
    %0 = vector.load %arg1[%c0, %c0_0] : memref<8x800xbf16, #tpu.memory_space<vmem>>, vector<8x800xbf16>
    %c0_1 = arith.constant 0 : index
    %c0_2 = arith.constant 0 : index
    %1 = vector.load %arg2[%c0_1, %c0_2] : memref<800x500xbf16, #tpu.memory_space<vmem>>, vector<800x500xbf16>
    %cst = arith.constant dense<0.000000e+00> : vector<8x500xf32>
    %2 = tpu.matmul %0, %1, %cst {dimension_numbers = #tpu.dot_dimension_numbers<[1], [0], [0], [1], [0, 0, 1, 1], [], []>} : vector<8x800xbf16>, vector<800x500xbf16>, vector<8x500xf32> -> vector<8x500xf32>
    %c0_3 = arith.constant 0 : index
    %c0_4 = arith.constant 0 : index
    %3 = vector.load %arg3[%c0_3, %c0_4] : memref<1x500xf32, #tpu.memory_space<vmem>>, vector<1x500xf32>
    %4 = vector.broadcast %3 : vector<1x500xf32> to vector<8x500xf32>
    %5 = arith.addf %2, %4 : vector<8x500xf32>
    %cst_5 = arith.constant 0.000000e+00 : f32
    %6 = vector.broadcast %cst_5 : f32 to vector<8x500xf32>
    %7 = arith.maximumf %5, %6 : vector<8x500xf32>
    %8 = arith.truncf %7 : vector<8x500xf32> to vector<8x500xbf16>
    %c0_6 = arith.constant 0 : index
    %c0_7 = arith.constant 0 : index
    %9 = vector.load %arg4[%c0_6, %c0_7] : memref<500x10xbf16, #tpu.memory_space<vmem>>, vector<500x10xbf16>
    %cst_8 = arith.constant dense<0.000000e+00> : vector<8x10xf32>
    %10 = tpu.matmul %8, %9, %cst_8 {dimension_numbers = #tpu.dot_dimension_numbers<[1], [0], [0], [1], [0, 0, 1, 1], [], []>} : vector<8x500xbf16>, vector<500x10xbf16>, vector<8x10xf32> -> vector<8x10xf32>
    %c0_9 = arith.constant 0 : index
    %c0_10 = arith.constant 0 : index
    %11 = vector.load %arg5[%c0_9, %c0_10] : memref<1x10xf32, #tpu.memory_space<vmem>>, vector<1x10xf32>
    %12 = vector.broadcast %11 : vector<1x10xf32> to vector<8x10xf32>
    %13 = arith.addf %10, %12 : vector<8x10xf32>
    %cst_11 = arith.constant dense<0xFF800000> : vector<8xf32>
    %14 = vector.multi_reduction <maximumf>, %13, %cst_11 [1] : vector<8x10xf32> to vector<8xf32>
    %15 = vector.shape_cast %14 : vector<8xf32> to vector<8x1xf32>
    %16 = vector.broadcast %15 : vector<8x1xf32> to vector<8x10xf32>
    %17 = arith.subf %13, %16 : vector<8x10xf32>
    %18 = math.exp %17 : vector<8x10xf32>
    %cst_12 = arith.constant dense<0.000000e+00> : vector<8xf32>
    %19 = vector.multi_reduction <add>, %18, %cst_12 [1] : vector<8x10xf32> to vector<8xf32>
    %20 = vector.shape_cast %19 : vector<8xf32> to vector<8x1xf32>
    %21 = math.log %20 : vector<8x1xf32>
    %22 = vector.broadcast %21 : vector<8x1xf32> to vector<8x10xf32>
    %23 = arith.subf %17, %22 : vector<8x10xf32>
    %c0_13 = arith.constant 0 : index
    %c0_14 = arith.constant 0 : index
    %24 = vector.load %arg6[%c0_13, %c0_14] : memref<8x10xf32, #tpu.memory_space<vmem>>, vector<8x10xf32>
    tpu.vector_store %arg6[%c0_13, %c0_14], %23 {strides = array<i32>} : memref<8x10xf32, #tpu.memory_space<vmem>>, vector<8x10xf32>,
    return
  }
  func.func @transform_0(%arg0: i32) -> (i32, i32) {
    %c0_i32 = arith.constant 0 : i32
    %c0_i32_0 = arith.constant 0 : i32
    return %arg0, %c0_i32 : i32, i32
  }
  func.func @transform_1(%arg0: i32) -> (i32, i32) {
    %c0_i32 = arith.constant 0 : i32
    %c0_i32_0 = arith.constant 0 : i32
    %c0_i32_1 = arith.constant 0 : i32
    return %c0_i32, %c0_i32_0 : i32, i32
  }
  func.func @transform_2(%arg0: i32) -> (i32, i32) {
    %c0_i32 = arith.constant 0 : i32
    %c0_i32_0 = arith.constant 0 : i32
    %c0_i32_1 = arith.constant 0 : i32
    return %c0_i32, %c0_i32_0 : i32, i32
  }
  func.func @transform_3(%arg0: i32) -> (i32, i32) {
    %c0_i32 = arith.constant 0 : i32
    %c0_i32_0 = arith.constant 0 : i32
    %c0_i32_1 = arith.constant 0 : i32
    return %c0_i32, %c0_i32_0 : i32, i32
  }
  func.func @transform_4(%arg0: i32) -> (i32, i32) {
    %c0_i32 = arith.constant 0 : i32
    %c0_i32_0 = arith.constant 0 : i32
    %c0_i32_1 = arith.constant 0 : i32
    return %c0_i32, %c0_i32_0 : i32, i32
  }
  func.func @transform_5(%arg0: i32) -> (i32, i32) {
    %c0_i32 = arith.constant 0 : i32
    %c0_i32_0 = arith.constant 0 : i32
    return %arg0, %c0_i32 : i32, i32
  }
}

</mosaic_0001>

<llo_original>
// kernel: warmnet_forward.3
$region0: #{warmnet_forward.3}
  #allocation0 [shape = 'u32[]', space=smem, size = 0x4, offset = 0x4, fixed_abs, tag = 'smem constant byte address 0x4 - core index']
  #allocation1 [shape = 'u32[144,128]{1,0:T(1,128)}', space=vmem, size = 0x12000, scoped, tag = 'internal scratch']
  %s0 = inlined_call_operand.vmem [shape: bf16[4,288,25], index: 0, kind: input, shape index: {}]
  %s1 = inlined_call_operand.vmem [shape: bf16[25,20], index: 1, kind: input, shape index: {}]
  %s2 = inlined_call_operand.vmem [shape: f32[1,20], index: 2, kind: input, shape index: {}]
  %s3 = inlined_call_operand.vmem [shape: bf16[288,20], index: 3, kind: output, shape index: {}]
  %s4 = sld [smem:[#allocation0]]
  $region86: #{warmnet_forward.3} parent=0
    _
  %s6 = ssub.s32 1, %s4
  %s7 = scalar_select 0, %s6, %s4
  $region1: #{warmnet_forward.3} parent=0
    #allocation2 [shape = 'u8[147456]{0}', space=vmem, size = 0x24000, scoped, tag = 'input window, operand 0']
    loop: start=0, step=1, limit=6
    $region2: #{warmnet_forward.3} parent=1 // loop_pre_header
      _
    $region3: #{warmnet_forward.3} parent=1 // loop_header
      %s9 = sphi 0, %s13
      %p10 = scmp.ge.s32.totalorder %s9, 6
      %s19 = sphi 0, %s21
      %s22 = sphi 0, %s19
      %s23 = sphi 0, %s22
      %s39 = sphi 0, %s23
      %s43 = sphi 0, %s43
      %s45 = sphi 0, %s43
      %s46 = sphi 0, %s45
      %s60 = sphi 0, %s46
      %s64 = sphi 0, %s64
      %s66 = sphi 0, %s64
      %s67 = sphi 0, %s66
      %s81 = sphi 0, %s67
      %s87 = sphi 0, %s89
      %s90 = sphi 0, %s87
      %s91 = sphi 0, %s90
      %s107 = sphi 0, %s91
    $region4: #{warmnet_forward.3} parent=1 // loop_header_branch
      %12 = sbr.rel (%p10) target = $region8
    $region5: #{warmnet_forward.3} parent=1 // loop_body
      %s14 = ssub.s32 %s9, 1
      %s15 = ssub.s32 %s9, 2
      %s16 = sadd.s32 %s9, 1
      %s17 = ssub.s32 %s9, %s16
      %p18 = scmp.eq.s32.totalorder %s17, 0
      %s20 = sadd.s32 %s19, 1
      %s21 = scalar_select %p18, %s19, %s20
      %p24 = pneg %p18
      %p25 = scmp.eq.s32.totalorder %s9, 3
      %p26 = por %p24, %p25
      %p27 = scmp.ne.s32.totalorder %s19, %s22
      %p28 = scmp.eq.s32.totalorder %s9, 0
      %p29 = por %p27, %p28
      %p30 = scmp.ne.s32.totalorder %s19, %s22
      %p31 = scmp.eq.s32.totalorder %s14, 3
      %p32 = por %p30, %p31
      %p33 = scmp.ne.s32.totalorder %s22, %s23
      %p34 = scmp.eq.s32.totalorder %s14, 0
      %p35 = por %p33, %p34
      %p36 = scmp.ne.s32.totalorder %s22, %s23
      %p37 = scmp.eq.s32.totalorder %s15, 3
      %p38 = por %p36, %p37
      %p40 = scmp.ne.s32.totalorder %s23, %s39
      %p41 = scmp.eq.s32.totalorder %s15, 0
      %p42 = por %p40, %p41
      %s44 = sadd.s32 %s43, 1
      %p47 = scmp.eq.s32.totalorder %s9, 3
      %p48 = scmp.ne.s32.totalorder %s43, %s45
      %p49 = scmp.eq.s32.totalorder %s9, 0
      %p50 = por %p48, %p49
      %p51 = scmp.ne.s32.totalorder %s43, %s45
      %p52 = scmp.eq.s32.totalorder %s14, 3
      %p53 = por %p51, %p52
      %p54 = scmp.ne.s32.totalorder %s45, %s46
      %p55 = scmp.eq.s32.totalorder %s14, 0
      %p56 = por %p54, %p55
      %p57 = scmp.ne.s32.totalorder %s45, %s46
      %p58 = scmp.eq.s32.totalorder %s15, 3
      %p59 = por %p57, %p58
      %p61 = scmp.ne.s32.totalorder %s46, %s60
      %p62 = scmp.eq.s32.totalorder %s15, 0
      %p63 = por %p61, %p62
      %s65 = sadd.s32 %s64, 1
      %p68 = scmp.eq.s32.totalorder %s9, 3
      %p69 = scmp.ne.s32.totalorder %s64, %s66
      %p70 = scmp.eq.s32.totalorder %s9, 0
      %p71 = por %p69, %p70
      %p72 = scmp.ne.s32.totalorder %s64, %s66
      %p73 = scmp.eq.s32.totalorder %s14, 3
      %p74 = por %p72, %p73
      %p75 = scmp.ne.s32.totalorder %s66, %s67
      %p76 = scmp.eq.s32.totalorder %s14, 0
      %p77 = por %p75, %p76
      %p78 = scmp.ne.s32.totalorder %s66, %s67
      %p79 = scmp.eq.s32.totalorder %s15, 3
      %p80 = por %p78, %p79
      %p82 = scmp.ne.s32.totalorder %s67, %s81
      %p83 = scmp.eq.s32.totalorder %s15, 0
      %p84 = por %p82, %p83
      %s85 = ssub.s32 %s9, %s16
      %p86 = scmp.eq.s32.totalorder %s85, 0
      %s88 = sadd.s32 %s87, 1
      %s89 = scalar_select %p86, %s87, %s88
      %p92 = pneg %p86
      %p93 = scmp.eq.s32.totalorder %s9, 3
      %p94 = por %p92, %p93
      %p95 = scmp.ne.s32.totalorder %s87, %s90
      %p96 = scmp.eq.s32.totalorder %s9, 0
      %p97 = por %p95, %p96
      %p98 = scmp.ne.s32.totalorder %s87, %s90
      %p99 = scmp.eq.s32.totalorder %s14, 3
      %p100 = por %p98, %p99
      %p101 = scmp.ne.s32.totalorder %s90, %s91
      %p102 = scmp.eq.s32.totalorder %s14, 0
      %p103 = por %p101, %p102
      %p104 = scmp.ne.s32.totalorder %s90, %s91
      %p105 = scmp.eq.s32.totalorder %s15, 3
      %p106 = por %p104, %p105
      %p108 = scmp.ne.s32.totalorder %s91, %s107
      %p109 = scmp.eq.s32.totalorder %s15, 0
      %p110 = por %p108, %p109
      %p111 = scmp.le.s32.totalorder 1, %s9
      %p112 = scmp.lt.s32.totalorder %s9, 5
      %p113 = pnand %p111, %p112
      %p114 = pneg %p113
      // Predicated region
      $region9: #{warmnet_forward.3} parent=5 // pred_check
        _
      $region10: #{warmnet_forward.3} parent=5 // pred_check_branch
        %116 = sbr.rel (%p113) target = $region12
      $region11: #{warmnet_forward.3} parent=5 // pred_region
        %s117 = ssub.s32 %s9, 1
        // Predicated region
        $region13: #{warmnet_forward.3} parent=11 // pred_check
          %p118 = pneg %p56
        $region14: #{warmnet_forward.3} parent=11 // pred_check_branch
          %120 = sbr.rel (%p118) target = $region16
        $region15: #{warmnet_forward.3} parent=11 // pred_region
          _
        $region16: #{warmnet_forward.3} parent=11 // pred_fallthru
          _
        // Predicated region
        $region17: #{warmnet_forward.3} parent=11 // pred_check
          %p121 = pneg %p77
        $region18: #{warmnet_forward.3} parent=11 // pred_check_branch
          %123 = sbr.rel (%p121) target = $region20
        $region19: #{warmnet_forward.3} parent=11 // pred_region
          _
        $region20: #{warmnet_forward.3} parent=11 // pred_fallthru
          _
      $region12: #{warmnet_forward.3} parent=5 // pred_fallthru
        _
      %p124 = scmp.lt.s32.totalorder %s9, 4
      // Predicated region
      $region21: #{warmnet_forward.3} parent=5 // pred_check
        %p125 = pneg %p124
      $region22: #{warmnet_forward.3} parent=5 // pred_check_branch
        %127 = sbr.rel (%p125) target = $region24
      $region23: #{warmnet_forward.3} parent=5 // pred_region
        // Predicated region
        $region25: #{warmnet_forward.3} parent=23 // pred_check
          %p128 = pneg %p29
        $region26: #{warmnet_forward.3} parent=23 // pred_check_branch
          %130 = sbr.rel (%p128) target = $region28
        $region27: #{warmnet_forward.3} parent=23 // pred_region
          %s131 = sand.u32 %s19, 1
          %s132 = sand.u32 %s19, 1
          %s133 = smul.addr %s132, 144
          %s134 = scalar_lea.vmem [#allocation2], %s133
          %s135 = smul.u32 9, %s9
          %s136 = smul.addr %s135, 4
          %s137 = scalar_lea.vmem %s0, %s136
          // Predicated region
          $region29: #{warmnet_forward.3} parent=27 // pred_check
            _
          $region30: #{warmnet_forward.3} parent=27 // pred_check_branch
            %139 = sbr.rel (0) target = $region32
          $region31: #{warmnet_forward.3} parent=27 // pred_region
            // Predicated region
            $region33: #{warmnet_forward.3} parent=31 // pred_check
              _
            $region34: #{warmnet_forward.3} parent=31 // pred_check_branch
              %141 = sbr.rel target = $region36
            $region35: #{warmnet_forward.3} parent=31 // pred_region
              // Predicated region
              $region48: #{warmnet_forward.3} parent=35 // pred_check
                _
              $region49: #{warmnet_forward.3} parent=35 // pred_check_branch
                %226 = sbr.rel (0) target = $region51
              $region50: #{warmnet_forward.3} parent=35 // pred_region
                loop: start=0, step=1, limit=1
                $region52: #{warmnet_forward.3} parent=50 // loop_pre_header
                  _
                $region53: #{warmnet_forward.3} parent=50 // loop_header
                  %s228 = sphi 0, %s232
                  %p229 = scmp.ge.s32.totalorder %s228, 1
                  %s233 = sphi %s137, %s137
                  %s234 = sphi %s134, %s134
                $region54: #{warmnet_forward.3} parent=50 // loop_header_branch
                  %231 = sbr.rel (%p229) target = $region58
                $region55: #{warmnet_forward.3} parent=50 // loop_body
                  _
                $region56: #{warmnet_forward.3} parent=50 // loop_footer
                  %s232 = sadd.s32 1, %s228
                $region57: #{warmnet_forward.3} parent=50 // loop_footer_branch
                  %227 = sbr.rel target = $region53
                $region58: #{warmnet_forward.3} parent=50 // loop_exit
                  _
                loop: start=0, step=1, limit=1
                $region59: #{warmnet_forward.3} parent=50 // loop_pre_header
                  _
                $region60: #{warmnet_forward.3} parent=50 // loop_header
                  %s237 = sphi 0, %s241
                  %p238 = scmp.ge.s32.totalorder %s237, 1
                  %s242 = sphi %s137, %s137
                  %s243 = sphi %s134, %s134
                $region61: #{warmnet_forward.3} parent=50 // loop_header_branch
                  %240 = sbr.rel (%p238) target = $region65
                $region62: #{warmnet_forward.3} parent=50 // loop_body
                  %v244 = vld [vmem:[%s242] sm:$0xf]
                  %245 = vst [vmem:[%s243] sm:$0xf] %v244
                  %v246 = vld [vmem:[%s242 + $0x4] sm:$0xf]
                  %247 = vst [vmem:[%s243 + $0x4] sm:$0xf] %v246
                  %v248 = vld [vmem:[%s242 + $0x8] sm:$0xf]
                  %249 = vst [vmem:[%s243 + $0x8] sm:$0xf] %v248
                  %v250 = vld [vmem:[%s242 + $0xc] sm:$0xf]
                  %251 = vst [vmem:[%s243 + $0xc] sm:$0xf] %v250
                  %v252 = vld [vmem:[%s242 + $0x10] sm:$0xf]
                  %253 = vst [vmem:[%s243 + $0x10] sm:$0xf] %v252
                  %v254 = vld [vmem:[%s242 + $0x14] sm:$0xf]
                  %255 = vst [vmem:[%s243 + $0x14] sm:$0xf] %v254
                  %v256 = vld [vmem:[%s242 + $0x18] sm:$0xf]
                  %257 = vst [vmem:[%s243 + $0x18] sm:$0xf] %v256
                  %v258 = vld [vmem:[%s242 + $0x1c] sm:$0xf]
                  %259 = vst [vmem:[%s243 + $0x1c] sm:$0xf] %v258
                  %v260 = vld [vmem:[%s242 + $0x20] sm:$0xf]
                  %261 = vst [vmem:[%s243 + $0x20] sm:$0xf] %v260
                  %v262 = vld [vmem:[%s242 + $0x90] sm:$0xf]
                  %263 = vst [vmem:[%s243 + $0x24] sm:$0xf] %v262
                  %v264 = vld [vmem:[%s242 + $0x94] sm:$0xf]
                  %265 = vst [vmem:[%s243 + $0x28] sm:$0xf] %v264
                  %v266 = vld [vmem:[%s242 + $0x98] sm:$0xf]
                  %267 = vst [vmem:[%s243 + $0x2c] sm:$0xf] %v266
                  %v268 = vld [vmem:[%s242 + $0x9c] sm:$0xf]
                  %269 = vst [vmem:[%s243 + $0x30] sm:$0xf] %v268
                  %v270 = vld [vmem:[%s242 + $0xa0] sm:$0xf]
                  %271 = vst [vmem:[%s243 + $0x34] sm:$0xf] %v270
                  %v272 = vld [vmem:[%s242 + $0xa4] sm:$0xf]
                  %273 = vst [vmem:[%s243 + $0x38] sm:$0xf] %v272
                  %v274 = vld [vmem:[%s242 + $0xa8] sm:$0xf]
                  %275 = vst [vmem:[%s243 + $0x3c] sm:$0xf] %v274
                  %v276 = vld [vmem:[%s242 + $0xac] sm:$0xf]
                  %277 = vst [vmem:[%s243 + $0x40] sm:$0xf] %v276
                  %v278 = vld [vmem:[%s242 + $0xb0] sm:$0xf]
                  %279 = vst [vmem:[%s243 + $0x44] sm:$0xf] %v278
                  %v280 = vld [vmem:[%s242 + $0x120] sm:$0xf]
                  %281 = vst [vmem:[%s243 + $0x48] sm:$0xf] %v280
                  %v282 = vld [vmem:[%s242 + $0x124] sm:$0xf]
                  %283 = vst [vmem:[%s243 + $0x4c] sm:$0xf] %v282
                  %v284 = vld [vmem:[%s242 + $0x128] sm:$0xf]
                  %285 = vst [vmem:[%s243 + $0x50] sm:$0xf] %v284
                  %v286 = vld [vmem:[%s242 + $0x12c] sm:$0xf]
                  %287 = vst [vmem:[%s243 + $0x54] sm:$0xf] %v286
                  %v288 = vld [vmem:[%s242 + $0x130] sm:$0xf]
                  %289 = vst [vmem:[%s243 + $0x58] sm:$0xf] %v288
                  %v290 = vld [vmem:[%s242 + $0x134] sm:$0xf]
                  %291 = vst [vmem:[%s243 + $0x5c] sm:$0xf] %v290
                  %v292 = vld [vmem:[%s242 + $0x138] sm:$0xf]
                  %293 = vst [vmem:[%s243 + $0x60] sm:$0xf] %v292
                  %v294 = vld [vmem:[%s242 + $0x13c] sm:$0xf]
                  %295 = vst [vmem:[%s243 + $0x64] sm:$0xf] %v294
                  %v296 = vld [vmem:[%s242 + $0x140] sm:$0xf]
                  %297 = vst [vmem:[%s243 + $0x68] sm:$0xf] %v296
                  %v298 = vld [vmem:[%s242 + $0x1b0] sm:$0xf]
                  %299 = vst [vmem:[%s243 + $0x6c] sm:$0xf] %v298
                  %v300 = vld [vmem:[%s242 + $0x1b4] sm:$0xf]
                  %301 = vst [vmem:[%s243 + $0x70] sm:$0xf] %v300
                  %v302 = vld [vmem:[%s242 + $0x1b8] sm:$0xf]
                  %303 = vst [vmem:[%s243 + $0x74] sm:$0xf] %v302
                  %v304 = vld [vmem:[%s242 + $0x1bc] sm:$0xf]
                  %305 = vst [vmem:[%s243 + $0x78] sm:$0xf] %v304
                  %v306 = vld [vmem:[%s242 + $0x1c0] sm:$0xf]
                  %307 = vst [vmem:[%s243 + $0x7c] sm:$0xf] %v306
                  %v308 = vld [vmem:[%s242 + $0x1c4] sm:$0xf]
                  %309 = vst [vmem:[%s243 + $0x80] sm:$0xf] %v308
                  %v310 = vld [vmem:[%s242 + $0x1c8] sm:$0xf]
                  %311 = vst [vmem:[%s243 + $0x84] sm:$0xf] %v310
                  %v312 = vld [vmem:[%s242 + $0x1cc] sm:$0xf]
                  %313 = vst [vmem:[%s243 + $0x88] sm:$0xf] %v312
                  %v314 = vld [vmem:[%s242 + $0x1d0] sm:$0xf]
                  %315 = vst [vmem:[%s243 + $0x8c] sm:$0xf] %v314
                $region63: #{warmnet_forward.3} parent=50 // loop_footer
                  %s241 = sadd.s32 1, %s237
                $region64: #{warmnet_forward.3} parent=50 // loop_footer_branch
                  %236 = sbr.rel target = $region60
                $region65: #{warmnet_forward.3} parent=50 // loop_exit
                  _
              $region51: #{warmnet_forward.3} parent=35 // pred_fallthru
                _
            $region36: #{warmnet_forward.3} parent=31 // pred_fallthru
              _
            // Predicated region
            $region37: #{warmnet_forward.3} parent=31 // pred_check
              _
            $region38: #{warmnet_forward.3} parent=31 // pred_check_branch
              %143 = sbr.rel (0) target = $region40
            $region39: #{warmnet_forward.3} parent=31 // pred_region
              loop: start=0, step=1, limit=1
              $region41: #{warmnet_forward.3} parent=39 // loop_pre_header
                _
              $region42: #{warmnet_forward.3} parent=39 // loop_header
                %s146 = sphi 0, %s150
                %p147 = scmp.ge.s32.totalorder %s146, 1
                %s151 = sphi %s137, %s137
                %s152 = sphi %s134, %s134
              $region43: #{warmnet_forward.3} parent=39 // loop_header_branch
                %149 = sbr.rel (%p147) target = $region47
              $region44: #{warmnet_forward.3} parent=39 // loop_body
                %v153 = vld [vmem:[%s151] sm:$0xf]
                %154 = vst [vmem:[%s152] sm:$0xf] %v153
                %v155 = vld [vmem:[%s151 + $0x4] sm:$0xf]
                %156 = vst [vmem:[%s152 + $0x4] sm:$0xf] %v155
                %v157 = vld [vmem:[%s151 + $0x8] sm:$0xf]
                %158 = vst [vmem:[%s152 + $0x8] sm:$0xf] %v157
                %v159 = vld [vmem:[%s151 + $0xc] sm:$0xf]
                %160 = vst [vmem:[%s152 + $0xc] sm:$0xf] %v159
                %v161 = vld [vmem:[%s151 + $0x10] sm:$0xf]
                %162 = vst [vmem:[%s152 + $0x10] sm:$0xf] %v161
                %v163 = vld [vmem:[%s151 + $0x14] sm:$0xf]
                %164 = vst [vmem:[%s152 + $0x14] sm:$0xf] %v163
                %v165 = vld [vmem:[%s151 + $0x18] sm:$0xf]
                %166 = vst [vmem:[%s152 + $0x18] sm:$0xf] %v165
                %v167 = vld [vmem:[%s151 + $0x1c] sm:$0xf]
                %168 = vst [vmem:[%s152 + $0x1c] sm:$0xf] %v167
                %v169 = vld [vmem:[%s151 + $0x20] sm:$0xf]
                %170 = vst [vmem:[%s152 + $0x20] sm:$0xf] %v169
                %v171 = vld [vmem:[%s151 + $0x90] sm:$0xf]
                %172 = vst [vmem:[%s152 + $0x24] sm:$0xf] %v171
                %v173 = vld [vmem:[%s151 + $0x94] sm:$0xf]
                %174 = vst [vmem:[%s152 + $0x28] sm:$0xf] %v173
                %v175 = vld [vmem:[%s151 + $0x98] sm:$0xf]
                %176 = vst [vmem:[%s152 + $0x2c] sm:$0xf] %v175
                %v177 = vld [vmem:[%s151 + $0x9c] sm:$0xf]
                %178 = vst [vmem:[%s152 + $0x30] sm:$0xf] %v177
                %v179 = vld [vmem:[%s151 + $0xa0] sm:$0xf]
                %180 = vst [vmem:[%s152 + $0x34] sm:$0xf] %v179
                %v181 = vld [vmem:[%s151 + $0xa4] sm:$0xf]
                %182 = vst [vmem:[%s152 + $0x38] sm:$0xf] %v181
                %v183 = vld [vmem:[%s151 + $0xa8] sm:$0xf]
                %184 = vst [vmem:[%s152 + $0x3c] sm:$0xf] %v183
                %v185 = vld [vmem:[%s151 + $0xac] sm:$0xf]
                %186 = vst [vmem:[%s152 + $0x40] sm:$0xf] %v185
                %v187 = vld [vmem:[%s151 + $0xb0] sm:$0xf]
                %188 = vst [vmem:[%s152 + $0x44] sm:$0xf] %v187
                %v189 = vld [vmem:[%s151 + $0x120] sm:$0xf]
                %190 = vst [vmem:[%s152 + $0x48] sm:$0xf] %v189
                %v191 = vld [vmem:[%s151 + $0x124] sm:$0xf]
                %192 = vst [vmem:[%s152 + $0x4c] sm:$0xf] %v191
                %v193 = vld [vmem:[%s151 + $0x128] sm:$0xf]
                %194 = vst [vmem:[%s152 + $0x50] sm:$0xf] %v193
                %v195 = vld [vmem:[%s151 + $0x12c] sm:$0xf]
                %196 = vst [vmem:[%s152 + $0x54] sm:$0xf] %v195
                %v197 = vld [vmem:[%s151 + $0x130] sm:$0xf]
                %198 = vst [vmem:[%s152 + $0x58] sm:$0xf] %v197
                %v199 = vld [vmem:[%s151 + $0x134] sm:$0xf]
                %200 = vst [vmem:[%s152 + $0x5c] sm:$0xf] %v199
                %v201 = vld [vmem:[%s151 + $0x138] sm:$0xf]
                %202 = vst [vmem:[%s152 + $0x60] sm:$0xf] %v201
                %v203 = vld [vmem:[%s151 + $0x13c] sm:$0xf]
                %204 = vst [vmem:[%s152 + $0x64] sm:$0xf] %v203
                %v205 = vld [vmem:[%s151 + $0x140] sm:$0xf]
                %206 = vst [vmem:[%s152 + $0x68] sm:$0xf] %v205
                %v207 = vld [vmem:[%s151 + $0x1b0] sm:$0xf]
                %208 = vst [vmem:[%s152 + $0x6c] sm:$0xf] %v207
                %v209 = vld [vmem:[%s151 + $0x1b4] sm:$0xf]
                %210 = vst [vmem:[%s152 + $0x70] sm:$0xf] %v209
                %v211 = vld [vmem:[%s151 + $0x1b8] sm:$0xf]
                %212 = vst [vmem:[%s152 + $0x74] sm:$0xf] %v211
                %v213 = vld [vmem:[%s151 + $0x1bc] sm:$0xf]
                %214 = vst [vmem:[%s152 + $0x78] sm:$0xf] %v213
                %v215 = vld [vmem:[%s151 + $0x1c0] sm:$0xf]
                %216 = vst [vmem:[%s152 + $0x7c] sm:$0xf] %v215
                %v217 = vld [vmem:[%s151 + $0x1c4] sm:$0xf]
                %218 = vst [vmem:[%s152 + $0x80] sm:$0xf] %v217
                %v219 = vld [vmem:[%s151 + $0x1c8] sm:$0xf]
                %220 = vst [vmem:[%s152 + $0x84] sm:$0xf] %v219
                %v221 = vld [vmem:[%s151 + $0x1cc] sm:$0xf]
                %222 = vst [vmem:[%s152 + $0x88] sm:$0xf] %v221
                %v223 = vld [vmem:[%s151 + $0x1d0] sm:$0xf]
                %224 = vst [vmem:[%s152 + $0x8c] sm:$0xf] %v223
              $region45: #{warmnet_forward.3} parent=39 // loop_footer
                %s150 = sadd.s32 1, %s146
              $region46: #{warmnet_forward.3} parent=39 // loop_footer_branch
                %145 = sbr.rel target = $region42
              $region47: #{warmnet_forward.3} parent=39 // loop_exit
                _
            $region40: #{warmnet_forward.3} parent=31 // pred_fallthru
              _
          $region32: #{warmnet_forward.3} parent=27 // pred_fallthru
            _
          %316 = vnop
        $region28: #{warmnet_forward.3} parent=23 // pred_fallthru
          _
      $region24: #{warmnet_forward.3} parent=5 // pred_fallthru
        _
      %p317 = scmp.le.s32.totalorder 1, %s9
      %p318 = scmp.lt.s32.totalorder %s9, 5
      %p319 = pnand %p317, %p318
      %p320 = pneg %p319
      // Predicated region
      $region66: #{warmnet_forward.3} parent=5 // pred_check
        _
      $region67: #{warmnet_forward.3} parent=5 // pred_check_branch
        %322 = sbr.rel (%p319) target = $region69
      $region68: #{warmnet_forward.3} parent=5 // pred_region
        %s323 = ssub.s32 %s9, 1
        %s324 = sand.u32 %s22, 1
        %s325 = sand.u32 %s22, 1
        %s326 = smul.addr %s325, 144
        %s327 = scalar_lea.vmem [#allocation2], %s326
        // Predicated region
        $region70: #{warmnet_forward.3} parent=68 // pred_check
          %p328 = pneg %p35
        $region71: #{warmnet_forward.3} parent=68 // pred_check_branch
          %330 = sbr.rel (%p328) target = $region73
        $region72: #{warmnet_forward.3} parent=68 // pred_region
          _
        $region73: #{warmnet_forward.3} parent=68 // pred_fallthru
          _
        %s331 = sand.u32 %s22, 1
        %s332 = sand.u32 %s22, 1
        %s333 = smul.addr %s332, 144
        %s334 = scalar_lea.vmem [#allocation2], %s333
        %p335 = pneg %p35
        %p336 = pneg %p32
        %p337 = pneg %p56
        %p338 = pneg %p53
        %p339 = pneg %p77
        %p340 = pneg %p74
        %p341 = pneg %p103
        %p342 = pneg %p100
        %s343 = smul.u32 9, %s14
        %p344 = scmp.lt.s32.totalorder %s343, 35
        %s345 = scalar_select %p344, %s343, 35
        %s346 = smul.addr %s345, 4
        %s347 = scalar_lea.vmem %s3, %s346
        %s348 = smul.u32 9, %s14
        %s349 = smul.u32 9, %s14
        %p350 = scmp.lt.s32.totalorder %s349, 35
        %s351 = scalar_select %p350, %s349, 35
        %s352 = smul.addr %s351, 4
        %s353 = scalar_lea.vmem %s3, %s352
        %s354 = smul.u32 9, %s14
        %v356 = vld [vmem:[%s1] sm:$0xf]
        %v357 = vld [vmem:[%s1 + $0x4] sm:$0xf]
        %v358 = vld [vmem:[%s1 + $0x8] sm:$0xf]
        %v359 = vld [vmem:[%s1 + $0xc] sm:$0x1]
        %v360 = vld [vmem:[%s327] sm:$0xf]
        %v361 = vld [vmem:[%s327 + $0x4] sm:$0xf]
        %v362 = vld [vmem:[%s327 + $0x8] sm:$0xf]
        %v363 = vld [vmem:[%s327 + $0xc] sm:$0xf]
        %v364 = vld [vmem:[%s327 + $0x10] sm:$0xf]
        %v365 = vld [vmem:[%s327 + $0x14] sm:$0xf]
        %v366 = vld [vmem:[%s327 + $0x18] sm:$0xf]
        %v367 = vld [vmem:[%s327 + $0x1c] sm:$0xf]
        %v368 = vld [vmem:[%s327 + $0x20] sm:$0xf]
        %v378 = vunpack.c.l.b16 %v360
        %v379 = vunpack.c.l.b16 %v361
        %v380 = vunpack.c.l.b16 %v362
        %v381 = vunpack.c.l.b16 %v363
        %v382 = vunpack.c.l.b16 %v364
        %v383 = vunpack.c.l.b16 %v365
        %v384 = vunpack.c.l.b16 %v366
        %v385 = vunpack.c.l.b16 %v367
        %v386 = vunpack.c.l.b16 %v368
        %v387 = vpack.c.b16 %v379, %v378
        %v388 = vpack.c.b16 %v381, %v380
        %v389 = vpack.c.b16 %v383, %v382
        %v390 = vpack.c.b16 %v385, %v384
        %v391 = vpack.c.b16 %v386, %v386
        %v396 = vunpack.c.l.b16 %v356
        %v397 = vunpack.c.l.b16 %v357
        %v398 = vunpack.c.l.b16 %v358
        %v399 = vunpack.c.l.b16 %v359
        %v400 = vpack.c.b16 %v397, %v396
        %v401 = vpack.c.b16 %v399, %v398
        %vm403 = vcmask 203776
        %v405 = vsel %vm403, %v387, 0
        %v408 = vsel %vm403, %v388, 0
        %v411 = vsel %vm403, %v389, 0
        %v414 = vsel %vm403, %v390, 0
        %v417 = vsel %vm403, %v391, 0
        %vm419 = vcmask 1043456
        %vm420 = vcmask 1044480
        %v421 = vsel %vm419, 4294967295, 65535
        %v422 = vsel %vm420, %v421, 0
        %v424 = vand.u32 %v401, %v422
        %426 = vmatprep.subr.bf16.mxu0 0
        %427 = vmatpush1.bf16.msra.mxu0 %v400
        %428 = vmatprep.subr.bf16.mxu0 0
        %429 = vmatpush1.bf16.msra.mxu0 %v424
        %430 = vmatprep.subr.bf16.mxu0 0
        %431 = vmatpush1.bf16.msra.mxu0 0
        %432 = vmatprep.subr.bf16.mxu0 0
        %433 = vmatpush1.bf16.msra.mxu0 0
        %434 = vmatprep.subr.bf16.mxu0 0
        %435 = vmatpush1.bf16.msra.mxu0 0
        %436 = vmatprep.subr.bf16.mxu0 0
        %437 = vmatpush1.bf16.msra.mxu0 0
        %438 = vmatprep.subr.bf16.mxu0 0
        %439 = vmatpush1.bf16.msra.mxu0 0
        %440 = vmatprep.subr.bf16.mxu0 0
        %441 = vmatpush1.bf16.msra.mxu0 0
        %442 = vmatprep.subr.bf16.mxu0 0
        %443 = vmatpush1.bf16.msra.mxu0 0
        %444 = vmatprep.subr.bf16.mxu0 0
        %445 = vmatpush1.bf16.msra.mxu0 0
        %446 = vmatprep.subr.bf16.mxu0 0
        %447 = vmatpush1.bf16.msra.mxu0 0
        %448 = vmatprep.subr.bf16.mxu0 0
        %449 = vmatpush1.bf16.msra.mxu0 0
        %450 = vmatprep.subr.bf16.mxu0 0
        %451 = vmatpush1.bf16.msra.mxu0 0
        %452 = vmatprep.subr.bf16.mxu0 0
        %453 = vmatpush1.bf16.msra.mxu0 0
        %454 = vmatprep.subr.bf16.mxu0 0
        %455 = vmatpush1.bf16.msra.mxu0 0
        %456 = vmatprep.subr.bf16.mxu0 0
        %457 = vmatpush1.bf16.msra.mxu0 0
        %458 = vmatprep.mubr.bf16.mxu0 0
        %459 = vmatmul.mubr.bf16.gmra.mrb[0].mxu0 %v405
        %v460 = vpop.f32.mrb[0].mxu0
        %v461 = vadd.f32 0.0, %v460
        %v462 = vpop.f32.mrb[0].mxu0
        %v463 = vpop.f32.mrb[0].mxu0
        %v464 = vadd.f32 0.0, %v463
        %v465 = vpop.f32.mrb[0].mxu0
        %466 = vmatprep.mubr.bf16.mxu0 0
        %467 = vmatmul.mubr.bf16.gmra.mrb[0].mxu0 %v408
        %v468 = vpop.f32.mrb[0].mxu0
        %v469 = vadd.f32 0.0, %v468
        %v470 = vpop.f32.mrb[0].mxu0
        %v471 = vpop.f32.mrb[0].mxu0
        %v472 = vadd.f32 0.0, %v471
        %v473 = vpop.f32.mrb[0].mxu0
        %474 = vmatprep.mubr.bf16.mxu0 0
        %475 = vmatmul.mubr.bf16.gmra.mrb[0].mxu0 %v411
        %v476 = vpop.f32.mrb[0].mxu0
        %v477 = vadd.f32 0.0, %v476
        %v478 = vpop.f32.mrb[0].mxu0
        %v479 = vpop.f32.mrb[0].mxu0
        %v480 = vadd.f32 0.0, %v479
        %v481 = vpop.f32.mrb[0].mxu0
        %482 = vmatprep.mubr.bf16.mxu0 0
        %483 = vmatmul.mubr.bf16.gmra.mrb[0].mxu0 %v414
        %v484 = vpop.f32.mrb[0].mxu0
        %v485 = vadd.f32 0.0, %v484
        %v486 = vpop.f32.mrb[0].mxu0
        %v487 = vpop.f32.mrb[0].mxu0
        %v488 = vadd.f32 0.0, %v487
        %v489 = vpop.f32.mrb[0].mxu0
        %490 = vmatprep.mubr.bf16.mxu0 0
        %491 = vmatmul.mubr.bf16.gmra.mrb[0].mxu0 %v417
        %v492 = vpop.f32.mrb[0].mxu0
        %v493 = vadd.f32 0.0, %v492
        %v494 = vpop.f32.mrb[0].mxu0
        %v495 = vpop.f32.mrb[0].mxu0
        %v496 = vpop.f32.mrb[0].mxu0
        %497 = vdwg.mxu0
        %s498 = scalar_lea.vmem %s327, 36 [#allocation2]
        %v499 = vld [vmem:[%s498] sm:$0xf]
        %v500 = vld [vmem:[%s498 + $0x4] sm:$0xf]
        %v501 = vld [vmem:[%s498 + $0x8] sm:$0xf]
        %v502 = vld [vmem:[%s498 + $0xc] sm:$0xf]
        %v503 = vld [vmem:[%s498 + $0x10] sm:$0xf]
        %v504 = vld [vmem:[%s498 + $0x14] sm:$0xf]
        %v505 = vld [vmem:[%s498 + $0x18] sm:$0xf]
        %v506 = vld [vmem:[%s498 + $0x1c] sm:$0xf]
        %v507 = vld [vmem:[%s498 + $0x20] sm:$0xf]
        %v517 = vunpack.c.l.b16 %v499
        %v518 = vunpack.c.l.b16 %v500
        %v519 = vunpack.c.l.b16 %v501
        %v520 = vunpack.c.l.b16 %v502
        %v521 = vunpack.c.l.b16 %v503
        %v522 = vunpack.c.l.b16 %v504
        %v523 = vunpack.c.l.b16 %v505
        %v524 = vunpack.c.l.b16 %v506
        %v525 = vunpack.c.l.b16 %v507
        %v526 = vpack.c.b16 %v518, %v517
        %v527 = vpack.c.b16 %v520, %v519
        %v528 = vpack.c.b16 %v522, %v521
        %v529 = vpack.c.b16 %v524, %v523
        %v530 = vpack.c.b16 %v525, %v525
        %v532 = vsel %vm403, %v526, 0
        %v535 = vsel %vm403, %v527, 0
        %v538 = vsel %vm403, %v528, 0
        %v541 = vsel %vm403, %v529, 0
        %v544 = vsel %vm403, %v530, 0
        %546 = vmatprep.subr.bf16.mxu0 0
        %547 = vmatpush1.bf16.msra.mxu0 %v400
        %548 = vmatprep.subr.bf16.mxu0 0
        %549 = vmatpush1.bf16.msra.mxu0 %v424
        %550 = vmatprep.subr.bf16.mxu0 0
        %551 = vmatpush1.bf16.msra.mxu0 0
        %552 = vmatprep.subr.bf16.mxu0 0
        %553 = vmatpush1.bf16.msra.mxu0 0
        %554 = vmatprep.subr.bf16.mxu0 0
        %555 = vmatpush1.bf16.msra.mxu0 0
        %556 = vmatprep.subr.bf16.mxu0 0
        %557 = vmatpush1.bf16.msra.mxu0 0
        %558 = vmatprep.subr.bf16.mxu0 0
        %559 = vmatpush1.bf16.msra.mxu0 0
        %560 = vmatprep.subr.bf16.mxu0 0
        %561 = vmatpush1.bf16.msra.mxu0 0
        %562 = vmatprep.subr.bf16.mxu0 0
        %563 = vmatpush1.bf16.msra.mxu0 0
        %564 = vmatprep.subr.bf16.mxu0 0
        %565 = vmatpush1.bf16.msra.mxu0 0
        %566 = vmatprep.subr.bf16.mxu0 0
        %567 = vmatpush1.bf16.msra.mxu0 0
        %568 = vmatprep.subr.bf16.mxu0 0
        %569 = vmatpush1.bf16.msra.mxu0 0
        %570 = vmatprep.subr.bf16.mxu0 0
        %571 = vmatpush1.bf16.msra.mxu0 0
        %572 = vmatprep.subr.bf16.mxu0 0
        %573 = vmatpush1.bf16.msra.mxu0 0
        %574 = vmatprep.subr.bf16.mxu0 0
        %575 = vmatpush1.bf16.msra.mxu0 0
        %576 = vmatprep.subr.bf16.mxu0 0
        %577 = vmatpush1.bf16.msra.mxu0 0
        %578 = vmatprep.mubr.bf16.mxu0 0
        %579 = vmatmul.mubr.bf16.gmra.mrb[0].mxu0 %v532
        %v580 = vpop.f32.mrb[0].mxu0
        %v581 = vadd.f32 0.0, %v580
        %v582 = vpop.f32.mrb[0].mxu0
        %v583 = vpop.f32.mrb[0].mxu0
        %v584 = vadd.f32 0.0, %v583
        %v585 = vpop.f32.mrb[0].mxu0
        %586 = vmatprep.mubr.bf16.mxu0 0
        %587 = vmatmul.mubr.bf16.gmra.mrb[0].mxu0 %v535
        %v588 = vpop.f32.mrb[0].mxu0
        %v589 = vadd.f32 0.0, %v588
        %v590 = vpop.f32.mrb[0].mxu0
        %v591 = vpop.f32.mrb[0].mxu0
        %v592 = vadd.f32 0.0, %v591
        %v593 = vpop.f32.mrb[0].mxu0
        %594 = vmatprep.mubr.bf16.mxu0 0
        %595 = vmatmul.mubr.bf16.gmra.mrb[0].mxu0 %v538
        %v596 = vpop.f32.mrb[0].mxu0
        %v597 = vadd.f32 0.0, %v596
        %v598 = vpop.f32.mrb[0].mxu0
        %v599 = vpop.f32.mrb[0].mxu0
        %v600 = vadd.f32 0.0, %v599
        %v601 = vpop.f32.mrb[0].mxu0
        %602 = vmatprep.mubr.bf16.mxu0 0
        %603 = vmatmul.mubr.bf16.gmra.mrb[0].mxu0 %v541
        %v604 = vpop.f32.mrb[0].mxu0
        %v605 = vadd.f32 0.0, %v604
        %v606 = vpop.f32.mrb[0].mxu0
        %v607 = vpop.f32.mrb[0].mxu0
        %v608 = vadd.f32 0.0, %v607
        %v609 = vpop.f32.mrb[0].mxu0
        %610 = vmatprep.mubr.bf16.mxu0 0
        %611 = vmatmul.mubr.bf16.gmra.mrb[0].mxu0 %v544
        %v612 = vpop.f32.mrb[0].mxu0
        %v613 = vadd.f32 0.0, %v612
        %v614 = vpop.f32.mrb[0].mxu0
        %v615 = vpop.f32.mrb[0].mxu0
        %v616 = vpop.f32.mrb[0].mxu0
        %617 = vdwg.mxu0
        %s618 = scalar_lea.vmem %s327, 72 [#allocation2]
        %v619 = vld [vmem:[%s618] sm:$0xf]
        %v620 = vld [vmem:[%s618 + $0x4] sm:$0xf]
        %v621 = vld [vmem:[%s618 + $0x8] sm:$0xf]
        %v622 = vld [vmem:[%s618 + $0xc] sm:$0xf]
        %v623 = vld [vmem:[%s618 + $0x10] sm:$0xf]
        %v624 = vld [vmem:[%s618 + $0x14] sm:$0xf]
        %v625 = vld [vmem:[%s618 + $0x18] sm:$0xf]
        %v626 = vld [vmem:[%s618 + $0x1c] sm:$0xf]
        %v627 = vld [vmem:[%s618 + $0x20] sm:$0xf]
        %v637 = vunpack.c.l.b16 %v619
        %v638 = vunpack.c.l.b16 %v620
        %v639 = vunpack.c.l.b16 %v621
        %v640 = vunpack.c.l.b16 %v622
        %v641 = vunpack.c.l.b16 %v623
        %v642 = vunpack.c.l.b16 %v624
        %v643 = vunpack.c.l.b16 %v625
        %v644 = vunpack.c.l.b16 %v626
        %v645 = vunpack.c.l.b16 %v627
        %v646 = vpack.c.b16 %v638, %v637
        %v647 = vpack.c.b16 %v640, %v639
        %v648 = vpack.c.b16 %v642, %v641
        %v649 = vpack.c.b16 %v644, %v643
        %v650 = vpack.c.b16 %v645, %v645
        %v652 = vsel %vm403, %v646, 0
        %v655 = vsel %vm403, %v647, 0
        %v658 = vsel %vm403, %v648, 0
        %v661 = vsel %vm403, %v649, 0
        %v664 = vsel %vm403, %v650, 0
        %666 = vmatprep.subr.bf16.mxu0 0
        %667 = vmatpush1.bf16.msra.mxu0 %v400
        %668 = vmatprep.subr.bf16.mxu0 0
        %669 = vmatpush1.bf16.msra.mxu0 %v424
        %670 = vmatprep.subr.bf16.mxu0 0
        %671 = vmatpush1.bf16.msra.mxu0 0
        %672 = vmatprep.subr.bf16.mxu0 0
        %673 = vmatpush1.bf16.msra.mxu0 0
        %674 = vmatprep.subr.bf16.mxu0 0
        %675 = vmatpush1.bf16.msra.mxu0 0
        %676 = vmatprep.subr.bf16.mxu0 0
        %677 = vmatpush1.bf16.msra.mxu0 0
        %678 = vmatprep.subr.bf16.mxu0 0
        %679 = vmatpush1.bf16.msra.mxu0 0
        %680 = vmatprep.subr.bf16.mxu0 0
        %681 = vmatpush1.bf16.msra.mxu0 0
        %682 = vmatprep.subr.bf16.mxu0 0
        %683 = vmatpush1.bf16.msra.mxu0 0
        %684 = vmatprep.subr.bf16.mxu0 0
        %685 = vmatpush1.bf16.msra.mxu0 0
        %686 = vmatprep.subr.bf16.mxu0 0
        %687 = vmatpush1.bf16.msra.mxu0 0
        %688 = vmatprep.subr.bf16.mxu0 0
        %689 = vmatpush1.bf16.msra.mxu0 0
        %690 = vmatprep.subr.bf16.mxu0 0
        %691 = vmatpush1.bf16.msra.mxu0 0
        %692 = vmatprep.subr.bf16.mxu0 0
        %693 = vmatpush1.bf16.msra.mxu0 0
        %694 = vmatprep.subr.bf16.mxu0 0
        %695 = vmatpush1.bf16.msra.mxu0 0
        %696 = vmatprep.subr.bf16.mxu0 0
        %697 = vmatpush1.bf16.msra.mxu0 0
        %698 = vmatprep.mubr.bf16.mxu0 0
        %699 = vmatmul.mubr.bf16.gmra.mrb[0].mxu0 %v652
        %v700 = vpop.f32.mrb[0].mxu0
        %v701 = vadd.f32 0.0, %v700
        %v702 = vpop.f32.mrb[0].mxu0
        %v703 = vpop.f32.mrb[0].mxu0
        %v704 = vadd.f32 0.0, %v703
        %v705 = vpop.f32.mrb[0].mxu0
        %706 = vmatprep.mubr.bf16.mxu0 0
        %707 = vmatmul.mubr.bf16.gmra.mrb[0].mxu0 %v655
        %v708 = vpop.f32.mrb[0].mxu0
        %v709 = vadd.f32 0.0, %v708
        %v710 = vpop.f32.mrb[0].mxu0
        %v711 = vpop.f32.mrb[0].mxu0
        %v712 = vadd.f32 0.0, %v711
        %v713 = vpop.f32.mrb[0].mxu0
        %714 = vmatprep.mubr.bf16.mxu0 0
        %715 = vmatmul.mubr.bf16.gmra.mrb[0].mxu0 %v658
        %v716 = vpop.f32.mrb[0].mxu0
        %v717 = vadd.f32 0.0, %v716
        %v718 = vpop.f32.mrb[0].mxu0
        %v719 = vpop.f32.mrb[0].mxu0
        %v720 = vadd.f32 0.0, %v719
        %v721 = vpop.f32.mrb[0].mxu0
        %722 = vmatprep.mubr.bf16.mxu0 0
        %723 = vmatmul.mubr.bf16.gmra.mrb[0].mxu0 %v661
        %v724 = vpop.f32.mrb[0].mxu0
        %v725 = vadd.f32 0.0, %v724
        %v726 = vpop.f32.mrb[0].mxu0
        %v727 = vpop.f32.mrb[0].mxu0
        %v728 = vadd.f32 0.0, %v727
        %v729 = vpop.f32.mrb[0].mxu0
        %730 = vmatprep.mubr.bf16.mxu0 0
        %731 = vmatmul.mubr.bf16.gmra.mrb[0].mxu0 %v664
        %v732 = vpop.f32.mrb[0].mxu0
        %v733 = vadd.f32 0.0, %v732
        %v734 = vpop.f32.mrb[0].mxu0
        %v735 = vpop.f32.mrb[0].mxu0
        %v736 = vpop.f32.mrb[0].mxu0
        %737 = vdwg.mxu0
        %s738 = scalar_lea.vmem %s327, 108 [#allocation2]
        %v739 = vld [vmem:[%s738] sm:$0xf]
        %v740 = vld [vmem:[%s738 + $0x4] sm:$0xf]
        %v741 = vld [vmem:[%s738 + $0x8] sm:$0xf]
        %v742 = vld [vmem:[%s738 + $0xc] sm:$0xf]
        %v743 = vld [vmem:[%s738 + $0x10] sm:$0xf]
        %v744 = vld [vmem:[%s738 + $0x14] sm:$0xf]
        %v745 = vld [vmem:[%s738 + $0x18] sm:$0xf]
        %v746 = vld [vmem:[%s738 + $0x1c] sm:$0xf]
        %v747 = vld [vmem:[%s738 + $0x20] sm:$0xf]
        %v757 = vunpack.c.l.b16 %v739
        %v758 = vunpack.c.l.b16 %v740
        %v759 = vunpack.c.l.b16 %v741
        %v760 = vunpack.c.l.b16 %v742
        %v761 = vunpack.c.l.b16 %v743
        %v762 = vunpack.c.l.b16 %v744
        %v763 = vunpack.c.l.b16 %v745
        %v764 = vunpack.c.l.b16 %v746
        %v765 = vunpack.c.l.b16 %v747
        %v766 = vpack.c.b16 %v758, %v757
        %v767 = vpack.c.b16 %v760, %v759
        %v768 = vpack.c.b16 %v762, %v761
        %v769 = vpack.c.b16 %v764, %v763
        %v770 = vpack.c.b16 %v765, %v765
        %v772 = vsel %vm403, %v766, 0
        %v775 = vsel %vm403, %v767, 0
        %v778 = vsel %vm403, %v768, 0
        %v781 = vsel %vm403, %v769, 0
        %v784 = vsel %vm403, %v770, 0
        %786 = vmatprep.subr.bf16.mxu0 0
        %787 = vmatpush1.bf16.msra.mxu0 %v400
        %788 = vmatprep.subr.bf16.mxu0 0
        %789 = vmatpush1.bf16.msra.mxu0 %v424
        %790 = vmatprep.subr.bf16.mxu0 0
        %791 = vmatpush1.bf16.msra.mxu0 0
        %792 = vmatprep.subr.bf16.mxu0 0
        %793 = vmatpush1.bf16.msra.mxu0 0
        %794 = vmatprep.subr.bf16.mxu0 0
        %795 = vmatpush1.bf16.msra.mxu0 0
        %796 = vmatprep.subr.bf16.mxu0 0
        %797 = vmatpush1.bf16.msra.mxu0 0
        %798 = vmatprep.subr.bf16.mxu0 0
        %799 = vmatpush1.bf16.msra.mxu0 0
        %800 = vmatprep.subr.bf16.mxu0 0
        %801 = vmatpush1.bf16.msra.mxu0 0
        %802 = vmatprep.subr.bf16.mxu0 0
        %803 = vmatpush1.bf16.msra.mxu0 0
        %804 = vmatprep.subr.bf16.mxu0 0
        %805 = vmatpush1.bf16.msra.mxu0 0
        %806 = vmatprep.subr.bf16.mxu0 0
        %807 = vmatpush1.bf16.msra.mxu0 0
        %808 = vmatprep.subr.bf16.mxu0 0
        %809 = vmatpush1.bf16.msra.mxu0 0
        %810 = vmatprep.subr.bf16.mxu0 0
        %811 = vmatpush1.bf16.msra.mxu0 0
        %812 = vmatprep.subr.bf16.mxu0 0
        %813 = vmatpush1.bf16.msra.mxu0 0
        %814 = vmatprep.subr.bf16.mxu0 0
        %815 = vmatpush1.bf16.msra.mxu0 0
        %816 = vmatprep.subr.bf16.mxu0 0
        %817 = vmatpush1.bf16.msra.mxu0 0
        %818 = vmatprep.mubr.bf16.mxu0 0
        %819 = vmatmul.mubr.bf16.gmra.mrb[0].mxu0 %v772
        %v820 = vpop.f32.mrb[0].mxu0
        %v821 = vadd.f32 0.0, %v820
        %v822 = vpop.f32.mrb[0].mxu0
        %v823 = vpop.f32.mrb[0].mxu0
        %v824 = vadd.f32 0.0, %v823
        %v825 = vpop.f32.mrb[0].mxu0
        %826 = vmatprep.mubr.bf16.mxu0 0
        %827 = vmatmul.mubr.bf16.gmra.mrb[0].mxu0 %v775
        %v828 = vpop.f32.mrb[0].mxu0
        %v829 = vadd.f32 0.0, %v828
        %v830 = vpop.f32.mrb[0].mxu0
        %v831 = vpop.f32.mrb[0].mxu0
        %v832 = vadd.f32 0.0, %v831
        %v833 = vpop.f32.mrb[0].mxu0
        %834 = vmatprep.mubr.bf16.mxu0 0
        %835 = vmatmul.mubr.bf16.gmra.mrb[0].mxu0 %v778
        %v836 = vpop.f32.mrb[0].mxu0
        %v837 = vadd.f32 0.0, %v836
        %v838 = vpop.f32.mrb[0].mxu0
        %v839 = vpop.f32.mrb[0].mxu0
        %v840 = vadd.f32 0.0, %v839
        %v841 = vpop.f32.mrb[0].mxu0
        %842 = vmatprep.mubr.bf16.mxu0 0
        %843 = vmatmul.mubr.bf16.gmra.mrb[0].mxu0 %v781
        %v844 = vpop.f32.mrb[0].mxu0
        %v845 = vadd.f32 0.0, %v844
        %v846 = vpop.f32.mrb[0].mxu0
        %v847 = vpop.f32.mrb[0].mxu0
        %v848 = vadd.f32 0.0, %v847
        %v849 = vpop.f32.mrb[0].mxu0
        %850 = vmatprep.mubr.bf16.mxu0 0
        %851 = vmatmul.mubr.bf16.gmra.mrb[0].mxu0 %v784
        %v852 = vpop.f32.mrb[0].mxu0
        %v853 = vadd.f32 0.0, %v852
        %v854 = vpop.f32.mrb[0].mxu0
        %v855 = vpop.f32.mrb[0].mxu0
        %v856 = vpop.f32.mrb[0].mxu0
        %857 = vdwg.mxu0
        %v858 = vmax.f32 %v461, %v581
        %v859 = vmax.f32 %v464, %v584
        %v860 = vmax.f32 %v469, %v589
        %v861 = vmax.f32 %v472, %v592
        %v862 = vmax.f32 %v477, %v597
        %v863 = vmax.f32 %v480, %v600
        %v864 = vmax.f32 %v485, %v605
        %v865 = vmax.f32 %v488, %v608
        %v866 = vmax.f32 %v493, %v613
        %v867 = vmax.f32 %v701, %v821
        %v868 = vmax.f32 %v704, %v824
        %v869 = vmax.f32 %v709, %v829
        %v870 = vmax.f32 %v712, %v832
        %v871 = vmax.f32 %v717, %v837
        %v872 = vmax.f32 %v720, %v840
        %v873 = vmax.f32 %v725, %v845
        %v874 = vmax.f32 %v728, %v848
        %v875 = vmax.f32 %v733, %v853
        %v876 = vmax.f32 %v858, %v867
        %v877 = vmax.f32 %v859, %v868
        %v878 = vmax.f32 %v860, %v869
        %v879 = vmax.f32 %v861, %v870
        %v880 = vmax.f32 %v862, %v871
        %v881 = vmax.f32 %v863, %v872
        %v882 = vmax.f32 %v864, %v873
        %v883 = vmax.f32 %v865, %v874
        %v884 = vmax.f32 %v866, %v875
        %v885 = vld [vmem:[%s2] sm:$0x1]
        %v887 = vlaneseq
        %v888 = vshrl.u32 %v887, 7
        %v889 = vsub.s32 0, %v888
        %v890 = vrot.slane %v885, %v889
        %v892 = vadd.f32 %v876, %v890
        %v893 = vadd.f32 %v877, %v890
        %v894 = vadd.f32 %v878, %v890
        %v895 = vadd.f32 %v879, %v890
        %v896 = vadd.f32 %v880, %v890
        %v897 = vadd.f32 %v881, %v890
        %v898 = vadd.f32 %v882, %v890
        %v899 = vadd.f32 %v883, %v890
        %v900 = vadd.f32 %v884, %v890
        %v901 = vmax.f32 %v892, 0.0
        %v902 = vmax.f32 %v893, 0.0
        %v903 = vmax.f32 %v894, 0.0
        %v904 = vmax.f32 %v895, 0.0
        %v905 = vmax.f32 %v896, 0.0
        %v906 = vmax.f32 %v897, 0.0
        %v907 = vmax.f32 %v898, 0.0
        %v908 = vmax.f32 %v899, 0.0
        %v909 = vmax.f32 %v900, 0.0
        %v910 = vpack.c.bf16 %v902, %v901
        %v911 = vpack.c.bf16 %v904, %v903
        %v912 = vpack.c.bf16 %v906, %v905
        %v913 = vpack.c.bf16 %v908, %v907
        %v914 = vpack.c.bf16 %v909, %v909
        %v920 = vunpack.c.l.b16 %v910
        %v921 = vunpack.c.h.b16 %v910
        %v922 = vunpack.c.l.b16 %v911
        %v923 = vunpack.c.h.b16 %v911
        %v924 = vunpack.c.l.b16 %v912
        %v925 = vunpack.c.h.b16 %v912
        %v926 = vunpack.c.l.b16 %v913
        %v927 = vunpack.c.h.b16 %v913
        %v928 = vunpack.c.l.b16 %v914
        %v929 = vpack.c.b16 %v920, %v920
        %v930 = vpack.c.b16 %v921, %v921
        %v931 = vpack.c.b16 %v922, %v922
        %v932 = vpack.c.b16 %v923, %v923
        %v933 = vpack.c.b16 %v924, %v924
        %v934 = vpack.c.b16 %v925, %v925
        %v935 = vpack.c.b16 %v926, %v926
        %v936 = vpack.c.b16 %v927, %v927
        %v937 = vpack.c.b16 %v928, %v928
        %vm947 = vcmask 158720
        %948 = vst.msk [vmem:[%s353] sm:$0xf] %vm947, %v929
        %949 = vst.msk [vmem:[%s353 + $0x4] sm:$0xf] %vm947, %v930
        %950 = vst.msk [vmem:[%s353 + $0x8] sm:$0xf] %vm947, %v931
        %951 = vst.msk [vmem:[%s353 + $0xc] sm:$0xf] %vm947, %v932
        %952 = vst.msk [vmem:[%s353 + $0x10] sm:$0xf] %vm947, %v933
        %953 = vst.msk [vmem:[%s353 + $0x14] sm:$0xf] %vm947, %v934
        %954 = vst.msk [vmem:[%s353 + $0x18] sm:$0xf] %vm947, %v935
        %955 = vst.msk [vmem:[%s353 + $0x1c] sm:$0xf] %vm947, %v936
        %956 = vst.msk [vmem:[%s353 + $0x20] sm:$0xf] %vm947, %v937
        %s957 = smul.u32 9, %s14
        %p958 = scmp.lt.s32.totalorder %s957, 35
        %s959 = scalar_select %p958, %s957, 35
        %s960 = smul.addr %s959, 4
        %s961 = scalar_lea.vmem %s3, %s960
        // Predicated region
        $region74: #{warmnet_forward.3} parent=68 // pred_check
          %p962 = pneg %p100
        $region75: #{warmnet_forward.3} parent=68 // pred_check_branch
          %964 = sbr.rel (%p962) target = $region77
        $region76: #{warmnet_forward.3} parent=68 // pred_region
          %s965 = smul.u32 9, %s14
        $region77: #{warmnet_forward.3} parent=68 // pred_fallthru
          _
      $region69: #{warmnet_forward.3} parent=5 // pred_fallthru
        _
      %p966 = scmp.le.s32.totalorder 2, %s9
      // Predicated region
      $region78: #{warmnet_forward.3} parent=5 // pred_check
        %p967 = pneg %p966
      $region79: #{warmnet_forward.3} parent=5 // pred_check_branch
        %969 = sbr.rel (%p967) target = $region81
      $region80: #{warmnet_forward.3} parent=5 // pred_region
        %s970 = ssub.s32 %s9, 2
        // Predicated region
        $region82: #{warmnet_forward.3} parent=80 // pred_check
          %p971 = pneg %p106
        $region83: #{warmnet_forward.3} parent=80 // pred_check_branch
          %973 = sbr.rel (%p971) target = $region85
        $region84: #{warmnet_forward.3} parent=80 // pred_region
          %s974 = smul.u32 9, %s15
          %p975 = scmp.lt.s32.totalorder %s974, 35
          %s976 = scalar_select %p975, %s974, 35
          %s977 = smul.addr %s976, 4
          %s978 = scalar_lea.vmem %s3, %s977
        $region85: #{warmnet_forward.3} parent=80 // pred_fallthru
          _
      $region81: #{warmnet_forward.3} parent=5 // pred_fallthru
        _
    $region6: #{warmnet_forward.3} parent=1 // loop_footer
      %s13 = sadd.s32 1, %s9
    $region7: #{warmnet_forward.3} parent=1 // loop_footer_branch
      %8 = sbr.rel target = $region3
    $region8: #{warmnet_forward.3} parent=1 // loop_exit
      _

// kernel: warmnet_forward.4
$region0: #{warmnet_forward.4}
  #allocation0 [shape = 'u32[]', space=smem, size = 0x4, offset = 0x4, fixed_abs, tag = 'smem constant byte address 0x4 - core index']
  #allocation1 [shape = 'u32[144,128]{1,0:T(1,128)}', space=vmem, size = 0x12000, scoped, tag = 'internal scratch']
  %s0 = inlined_call_operand.vmem [shape: bf16[4,32,500], index: 0, kind: input, shape index: {}]
  %s1 = inlined_call_operand.vmem [shape: bf16[500,50], index: 1, kind: input, shape index: {}]
  %s2 = inlined_call_operand.vmem [shape: f32[1,50], index: 2, kind: input, shape index: {}]
  %s3 = inlined_call_operand.vmem [shape: bf16[32,50], index: 3, kind: output, shape index: {}]
  %s4 = sld [smem:[#allocation0]]
  $region68: #{warmnet_forward.4} parent=0
    _
  %s6 = ssub.s32 1, %s4
  %s7 = scalar_select 0, %s6, %s4
  $region1: #{warmnet_forward.4} parent=0
    #allocation2 [shape = 'u8[65536]{0}', space=vmem, size = 0x10000, scoped, tag = 'input window, operand 0']
    loop: start=0, step=1, limit=6
    $region2: #{warmnet_forward.4} parent=1 // loop_pre_header
      _
    $region3: #{warmnet_forward.4} parent=1 // loop_header
      %s9 = sphi 0, %s13
      %p10 = scmp.ge.s32.totalorder %s9, 6
      %s19 = sphi 0, %s21
      %s22 = sphi 0, %s19
      %s23 = sphi 0, %s22
      %s39 = sphi 0, %s23
      %s43 = sphi 0, %s43
      %s45 = sphi 0, %s43
      %s46 = sphi 0, %s45
      %s60 = sphi 0, %s46
      %s64 = sphi 0, %s64
      %s66 = sphi 0, %s64
      %s67 = sphi 0, %s66
      %s81 = sphi 0, %s67
      %s87 = sphi 0, %s89
      %s90 = sphi 0, %s87
      %s91 = sphi 0, %s90
      %s107 = sphi 0, %s91
    $region4: #{warmnet_forward.4} parent=1 // loop_header_branch
      %12 = sbr.rel (%p10) target = $region8
    $region5: #{warmnet_forward.4} parent=1 // loop_body
      %s14 = ssub.s32 %s9, 1
      %s15 = ssub.s32 %s9, 2
      %s16 = sadd.s32 %s9, 1
      %s17 = ssub.s32 %s9, %s16
      %p18 = scmp.eq.s32.totalorder %s17, 0
      %s20 = sadd.s32 %s19, 1
      %s21 = scalar_select %p18, %s19, %s20
      %p24 = pneg %p18
      %p25 = scmp.eq.s32.totalorder %s9, 3
      %p26 = por %p24, %p25
      %p27 = scmp.ne.s32.totalorder %s19, %s22
      %p28 = scmp.eq.s32.totalorder %s9, 0
      %p29 = por %p27, %p28
      %p30 = scmp.ne.s32.totalorder %s19, %s22
      %p31 = scmp.eq.s32.totalorder %s14, 3
      %p32 = por %p30, %p31
      %p33 = scmp.ne.s32.totalorder %s22, %s23
      %p34 = scmp.eq.s32.totalorder %s14, 0
      %p35 = por %p33, %p34
      %p36 = scmp.ne.s32.totalorder %s22, %s23
      %p37 = scmp.eq.s32.totalorder %s15, 3
      %p38 = por %p36, %p37
      %p40 = scmp.ne.s32.totalorder %s23, %s39
      %p41 = scmp.eq.s32.totalorder %s15, 0
      %p42 = por %p40, %p41
      %s44 = sadd.s32 %s43, 1
      %p47 = scmp.eq.s32.totalorder %s9, 3
      %p48 = scmp.ne.s32.totalorder %s43, %s45
      %p49 = scmp.eq.s32.totalorder %s9, 0
      %p50 = por %p48, %p49
      %p51 = scmp.ne.s32.totalorder %s43, %s45
      %p52 = scmp.eq.s32.totalorder %s14, 3
      %p53 = por %p51, %p52
      %p54 = scmp.ne.s32.totalorder %s45, %s46
      %p55 = scmp.eq.s32.totalorder %s14, 0
      %p56 = por %p54, %p55
      %p57 = scmp.ne.s32.totalorder %s45, %s46
      %p58 = scmp.eq.s32.totalorder %s15, 3
      %p59 = por %p57, %p58
      %p61 = scmp.ne.s32.totalorder %s46, %s60
      %p62 = scmp.eq.s32.totalorder %s15, 0
      %p63 = por %p61, %p62
      %s65 = sadd.s32 %s64, 1
      %p68 = scmp.eq.s32.totalorder %s9, 3
      %p69 = scmp.ne.s32.totalorder %s64, %s66
      %p70 = scmp.eq.s32.totalorder %s9, 0
      %p71 = por %p69, %p70
      %p72 = scmp.ne.s32.totalorder %s64, %s66
      %p73 = scmp.eq.s32.totalorder %s14, 3
      %p74 = por %p72, %p73
      %p75 = scmp.ne.s32.totalorder %s66, %s67
      %p76 = scmp.eq.s32.totalorder %s14, 0
      %p77 = por %p75, %p76
      %p78 = scmp.ne.s32.totalorder %s66, %s67
      %p79 = scmp.eq.s32.totalorder %s15, 3
      %p80 = por %p78, %p79
      %p82 = scmp.ne.s32.totalorder %s67, %s81
      %p83 = scmp.eq.s32.totalorder %s15, 0
      %p84 = por %p82, %p83
      %s85 = ssub.s32 %s9, %s16
      %p86 = scmp.eq.s32.totalorder %s85, 0
      %s88 = sadd.s32 %s87, 1
      %s89 = scalar_select %p86, %s87, %s88
      %p92 = pneg %p86
      %p93 = scmp.eq.s32.totalorder %s9, 3
      %p94 = por %p92, %p93
      %p95 = scmp.ne.s32.totalorder %s87, %s90
      %p96 = scmp.eq.s32.totalorder %s9, 0
      %p97 = por %p95, %p96
      %p98 = scmp.ne.s32.totalorder %s87, %s90
      %p99 = scmp.eq.s32.totalorder %s14, 3
      %p100 = por %p98, %p99
      %p101 = scmp.ne.s32.totalorder %s90, %s91
      %p102 = scmp.eq.s32.totalorder %s14, 0
      %p103 = por %p101, %p102
      %p104 = scmp.ne.s32.totalorder %s90, %s91
      %p105 = scmp.eq.s32.totalorder %s15, 3
      %p106 = por %p104, %p105
      %p108 = scmp.ne.s32.totalorder %s91, %s107
      %p109 = scmp.eq.s32.totalorder %s15, 0
      %p110 = por %p108, %p109
      %p111 = scmp.le.s32.totalorder 1, %s9
      %p112 = scmp.lt.s32.totalorder %s9, 5
      %p113 = pnand %p111, %p112
      %p114 = pneg %p113
      // Predicated region
      $region9: #{warmnet_forward.4} parent=5 // pred_check
        _
      $region10: #{warmnet_forward.4} parent=5 // pred_check_branch
        %116 = sbr.rel (%p113) target = $region12
      $region11: #{warmnet_forward.4} parent=5 // pred_region
        %s117 = ssub.s32 %s9, 1
        // Predicated region
        $region13: #{warmnet_forward.4} parent=11 // pred_check
          %p118 = pneg %p56
        $region14: #{warmnet_forward.4} parent=11 // pred_check_branch
          %120 = sbr.rel (%p118) target = $region16
        $region15: #{warmnet_forward.4} parent=11 // pred_region
          _
        $region16: #{warmnet_forward.4} parent=11 // pred_fallthru
          _
        // Predicated region
        $region17: #{warmnet_forward.4} parent=11 // pred_check
          %p121 = pneg %p77
        $region18: #{warmnet_forward.4} parent=11 // pred_check_branch
          %123 = sbr.rel (%p121) target = $region20
        $region19: #{warmnet_forward.4} parent=11 // pred_region
          _
        $region20: #{warmnet_forward.4} parent=11 // pred_fallthru
          _
      $region12: #{warmnet_forward.4} parent=5 // pred_fallthru
        _
      %p124 = scmp.lt.s32.totalorder %s9, 4
      // Predicated region
      $region21: #{warmnet_forward.4} parent=5 // pred_check
        %p125 = pneg %p124
      $region22: #{warmnet_forward.4} parent=5 // pred_check_branch
        %127 = sbr.rel (%p125) target = $region24
      $region23: #{warmnet_forward.4} parent=5 // pred_region
        // Predicated region
        $region25: #{warmnet_forward.4} parent=23 // pred_check
          %p128 = pneg %p29
        $region26: #{warmnet_forward.4} parent=23 // pred_check_branch
          %130 = sbr.rel (%p128) target = $region28
        $region27: #{warmnet_forward.4} parent=23 // pred_region
          %s131 = sand.u32 %s19, 1
          %s132 = sand.u32 %s19, 1
          %s133 = smul.addr %s132, 64
          %s134 = scalar_lea.vmem [#allocation2], %s133
          %s135 = smul.addr %s9, 4
          %s136 = smul.addr %s135, 4
          %s137 = scalar_lea.vmem %s0, %s136
          // Predicated region
          $region29: #{warmnet_forward.4} parent=27 // pred_check
            _
          $region30: #{warmnet_forward.4} parent=27 // pred_check_branch
            %139 = sbr.rel (0) target = $region32
          $region31: #{warmnet_forward.4} parent=27 // pred_region
            // Predicated region
            $region33: #{warmnet_forward.4} parent=31 // pred_check
              _
            $region34: #{warmnet_forward.4} parent=31 // pred_check_branch
              %141 = sbr.rel (0) target = $region36
            $region35: #{warmnet_forward.4} parent=31 // pred_region
              loop: start=0, step=1, limit=1
              $region37: #{warmnet_forward.4} parent=35 // loop_pre_header
                _
              $region38: #{warmnet_forward.4} parent=35 // loop_header
                %s143 = sphi 0, %s147
                %p144 = scmp.ge.s32.totalorder %s143, 1
                %s148 = sphi %s137, %s137
                %s149 = sphi %s134, %s134
              $region39: #{warmnet_forward.4} parent=35 // loop_header_branch
                %146 = sbr.rel (%p144) target = $region43
              $region40: #{warmnet_forward.4} parent=35 // loop_body
                %v150 = vld [vmem:[%s148] sm:$0xff]
                %151 = vst [vmem:[%s149] sm:$0xff] %v150
                %v152 = vld [vmem:[%s148 + $0x8] sm:$0xff]
                %153 = vst [vmem:[%s149 + $0x8] sm:$0xff] %v152
                %v154 = vld [vmem:[%s148 + $0x40] sm:$0xff]
                %155 = vst [vmem:[%s149 + $0x10] sm:$0xff] %v154
                %v156 = vld [vmem:[%s148 + $0x48] sm:$0xff]
                %157 = vst [vmem:[%s149 + $0x18] sm:$0xff] %v156
                %v158 = vld [vmem:[%s148 + $0x80] sm:$0xff]
                %159 = vst [vmem:[%s149 + $0x20] sm:$0xff] %v158
                %v160 = vld [vmem:[%s148 + $0x88] sm:$0xff]
                %161 = vst [vmem:[%s149 + $0x28] sm:$0xff] %v160
                %v162 = vld [vmem:[%s148 + $0xc0] sm:$0xff]
                %163 = vst [vmem:[%s149 + $0x30] sm:$0xff] %v162
                %v164 = vld [vmem:[%s148 + $0xc8] sm:$0xff]
                %165 = vst [vmem:[%s149 + $0x38] sm:$0xff] %v164
              $region41: #{warmnet_forward.4} parent=35 // loop_footer
                %s147 = sadd.s32 1, %s143
              $region42: #{warmnet_forward.4} parent=35 // loop_footer_branch
                %142 = sbr.rel target = $region38
              $region43: #{warmnet_forward.4} parent=35 // loop_exit
                _
            $region36: #{warmnet_forward.4} parent=31 // pred_fallthru
              _
            // Predicated region
            $region44: #{warmnet_forward.4} parent=31 // pred_check
              _
            $region45: #{warmnet_forward.4} parent=31 // pred_check_branch
              %167 = sbr.rel target = $region47
            $region46: #{warmnet_forward.4} parent=31 // pred_region
              _
            $region47: #{warmnet_forward.4} parent=31 // pred_fallthru
              _
          $region32: #{warmnet_forward.4} parent=27 // pred_fallthru
            _
          %168 = vnop
        $region28: #{warmnet_forward.4} parent=23 // pred_fallthru
          _
      $region24: #{warmnet_forward.4} parent=5 // pred_fallthru
        _
      %p169 = scmp.le.s32.totalorder 1, %s9
      %p170 = scmp.lt.s32.totalorder %s9, 5
      %p171 = pnand %p169, %p170
      %p172 = pneg %p171
      // Predicated region
      $region48: #{warmnet_forward.4} parent=5 // pred_check
        _
      $region49: #{warmnet_forward.4} parent=5 // pred_check_branch
        %174 = sbr.rel (%p171) target = $region51
      $region50: #{warmnet_forward.4} parent=5 // pred_region
        %s175 = ssub.s32 %s9, 1
        %s176 = sand.u32 %s22, 1
        %s177 = sand.u32 %s22, 1
        %s178 = smul.addr %s177, 64
        %s179 = scalar_lea.vmem [#allocation2], %s178
        // Predicated region
        $region52: #{warmnet_forward.4} parent=50 // pred_check
          %p180 = pneg %p35
        $region53: #{warmnet_forward.4} parent=50 // pred_check_branch
          %182 = sbr.rel (%p180) target = $region55
        $region54: #{warmnet_forward.4} parent=50 // pred_region
          _
        $region55: #{warmnet_forward.4} parent=50 // pred_fallthru
          _
        %s183 = sand.u32 %s22, 1
        %s184 = sand.u32 %s22, 1
        %s185 = smul.addr %s184, 64
        %s186 = scalar_lea.vmem [#allocation2], %s185
        %p187 = pneg %p35
        %p188 = pneg %p32
        %p189 = pneg %p56
        %p190 = pneg %p53
        %p191 = pneg %p77
        %p192 = pneg %p74
        %p193 = pneg %p103
        %p194 = pneg %p100
        %p195 = scmp.lt.s32.totalorder %s14, 3
        %s196 = scalar_select %p195, %s14, 3
        %s197 = smul.addr %s196, 4
        %s198 = scalar_lea.vmem %s3, %s197
        %p199 = scmp.lt.s32.totalorder %s14, 3
        %s200 = scalar_select %p199, %s14, 3
        %s201 = smul.addr %s200, 4
        %s202 = scalar_lea.vmem %s3, %s201
        %v204 = vld [vmem:[%s1] sm:$0xf]
        %v205 = vld [vmem:[%s1 + $0x4] sm:$0xf]
        %v206 = vld [vmem:[%s1 + $0x8] sm:$0xf]
        %v207 = vld [vmem:[%s1 + $0xc] sm:$0xf]
        %v208 = vld [vmem:[%s1 + $0x10] sm:$0xf]
        %v209 = vld [vmem:[%s1 + $0x14] sm:$0xf]
        %v210 = vld [vmem:[%s1 + $0x18] sm:$0xf]
        %v211 = vld [vmem:[%s1 + $0x1c] sm:$0xf]
        %v212 = vld [vmem:[%s1 + $0x20] sm:$0xf]
        %v213 = vld [vmem:[%s1 + $0x24] sm:$0xf]
        %v214 = vld [vmem:[%s1 + $0x28] sm:$0xf]
        %v215 = vld [vmem:[%s1 + $0x2c] sm:$0xf]
        %v216 = vld [vmem:[%s1 + $0x30] sm:$0xf]
        %v217 = vld [vmem:[%s1 + $0x34] sm:$0xf]
        %v218 = vld [vmem:[%s1 + $0x38] sm:$0xf]
        %v219 = vld [vmem:[%s1 + $0x3c] sm:$0xf]
        %v220 = vld [vmem:[%s1 + $0x40] sm:$0xf]
        %v221 = vld [vmem:[%s1 + $0x44] sm:$0xf]
        %v222 = vld [vmem:[%s1 + $0x48] sm:$0xf]
        %v223 = vld [vmem:[%s1 + $0x4c] sm:$0xf]
        %v224 = vld [vmem:[%s1 + $0x50] sm:$0xf]
        %v225 = vld [vmem:[%s1 + $0x54] sm:$0xf]
        %v226 = vld [vmem:[%s1 + $0x58] sm:$0xf]
        %v227 = vld [vmem:[%s1 + $0x5c] sm:$0xf]
        %v228 = vld [vmem:[%s1 + $0x60] sm:$0xf]
        %v229 = vld [vmem:[%s1 + $0x64] sm:$0xf]
        %v230 = vld [vmem:[%s1 + $0x68] sm:$0xf]
        %v231 = vld [vmem:[%s1 + $0x6c] sm:$0xf]
        %v232 = vld [vmem:[%s1 + $0x70] sm:$0xf]
        %v233 = vld [vmem:[%s1 + $0x74] sm:$0xf]
        %v234 = vld [vmem:[%s1 + $0x78] sm:$0xf]
        %v235 = vld [vmem:[%s1 + $0x7c] sm:$0xf]
        %v236 = vld [vmem:[%s1 + $0x80] sm:$0xf]
        %v237 = vld [vmem:[%s1 + $0x84] sm:$0xf]
        %v238 = vld [vmem:[%s1 + $0x88] sm:$0xf]
        %v239 = vld [vmem:[%s1 + $0x8c] sm:$0xf]
        %v240 = vld [vmem:[%s1 + $0x90] sm:$0xf]
        %v241 = vld [vmem:[%s1 + $0x94] sm:$0xf]
        %v242 = vld [vmem:[%s1 + $0x98] sm:$0xf]
        %v243 = vld [vmem:[%s1 + $0x9c] sm:$0xf]
        %v244 = vld [vmem:[%s1 + $0xa0] sm:$0xf]
        %v245 = vld [vmem:[%s1 + $0xa4] sm:$0xf]
        %v246 = vld [vmem:[%s1 + $0xa8] sm:$0xf]
        %v247 = vld [vmem:[%s1 + $0xac] sm:$0xf]
        %v248 = vld [vmem:[%s1 + $0xb0] sm:$0xf]
        %v249 = vld [vmem:[%s1 + $0xb4] sm:$0xf]
        %v250 = vld [vmem:[%s1 + $0xb8] sm:$0xf]
        %v251 = vld [vmem:[%s1 + $0xbc] sm:$0xf]
        %v252 = vld [vmem:[%s1 + $0xc0] sm:$0xf]
        %v253 = vld [vmem:[%s1 + $0xc4] sm:$0xf]
        %v254 = vld [vmem:[%s1 + $0xc8] sm:$0xf]
        %v255 = vld [vmem:[%s1 + $0xcc] sm:$0xf]
        %v256 = vld [vmem:[%s1 + $0xd0] sm:$0xf]
        %v257 = vld [vmem:[%s1 + $0xd4] sm:$0xf]
        %v258 = vld [vmem:[%s1 + $0xd8] sm:$0xf]
        %v259 = vld [vmem:[%s1 + $0xdc] sm:$0xf]
        %v260 = vld [vmem:[%s1 + $0xe0] sm:$0xf]
        %v261 = vld [vmem:[%s1 + $0xe4] sm:$0xf]
        %v262 = vld [vmem:[%s1 + $0xe8] sm:$0xf]
        %v263 = vld [vmem:[%s1 + $0xec] sm:$0xf]
        %v264 = vld [vmem:[%s1 + $0xf0] sm:$0xf]
        %v265 = vld [vmem:[%s1 + $0xf4] sm:$0xf]
        %v266 = vld [vmem:[%s1 + $0xf8] sm:$0x3]
        %v267 = vld [vmem:[%s179] sm:$0xff]
        %v268 = vld [vmem:[%s179 + $0x8] sm:$0xff]
        %v271 = vunpack.c.l.b16 %v267
        %v272 = vunpack.c.h.b16 %v267
        %v273 = vunpack.c.l.b16 %v268
        %v274 = vunpack.c.h.b16 %v268
        %v275 = vpack.c.b16 %v271, %v271
        %v276 = vpack.c.b16 %v272, %v272
        %v277 = vpack.c.b16 %v273, %v273
        %v278 = vpack.c.b16 %v274, %v274
        %v345 = vunpack.c.l.b16 %v204
        %v346 = vunpack.c.l.b16 %v205
        %v347 = vunpack.c.l.b16 %v206
        %v348 = vunpack.c.l.b16 %v207
        %v349 = vunpack.c.l.b16 %v208
        %v350 = vunpack.c.l.b16 %v209
        %v351 = vunpack.c.l.b16 %v210
        %v352 = vunpack.c.l.b16 %v211
        %v353 = vunpack.c.l.b16 %v212
        %v354 = vunpack.c.l.b16 %v213
        %v355 = vunpack.c.l.b16 %v214
        %v356 = vunpack.c.l.b16 %v215
        %v357 = vunpack.c.l.b16 %v216
        %v358 = vunpack.c.l.b16 %v217
        %v359 = vunpack.c.l.b16 %v218
        %v360 = vunpack.c.l.b16 %v219
        %v361 = vunpack.c.l.b16 %v220
        %v362 = vunpack.c.l.b16 %v221
        %v363 = vunpack.c.l.b16 %v222
        %v364 = vunpack.c.l.b16 %v223
        %v365 = vunpack.c.l.b16 %v224
        %v366 = vunpack.c.l.b16 %v225
        %v367 = vunpack.c.l.b16 %v226
        %v368 = vunpack.c.l.b16 %v227
        %v369 = vunpack.c.l.b16 %v228
        %v370 = vunpack.c.l.b16 %v229
        %v371 = vunpack.c.l.b16 %v230
        %v372 = vunpack.c.l.b16 %v231
        %v373 = vunpack.c.l.b16 %v232
        %v374 = vunpack.c.l.b16 %v233
        %v375 = vunpack.c.l.b16 %v234
        %v376 = vunpack.c.l.b16 %v235
        %v377 = vunpack.c.l.b16 %v236
        %v378 = vunpack.c.l.b16 %v237
        %v379 = vunpack.c.l.b16 %v238
        %v380 = vunpack.c.l.b16 %v239
        %v381 = vunpack.c.l.b16 %v240
        %v382 = vunpack.c.l.b16 %v241
        %v383 = vunpack.c.l.b16 %v242
        %v384 = vunpack.c.l.b16 %v243
        %v385 = vunpack.c.l.b16 %v244
        %v386 = vunpack.c.l.b16 %v245
        %v387 = vunpack.c.l.b16 %v246
        %v388 = vunpack.c.l.b16 %v247
        %v389 = vunpack.c.l.b16 %v248
        %v390 = vunpack.c.l.b16 %v249
        %v391 = vunpack.c.l.b16 %v250
        %v392 = vunpack.c.l.b16 %v251
        %v393 = vunpack.c.l.b16 %v252
        %v394 = vunpack.c.l.b16 %v253
        %v395 = vunpack.c.l.b16 %v254
        %v396 = vunpack.c.l.b16 %v255
        %v397 = vunpack.c.l.b16 %v256
        %v398 = vunpack.c.l.b16 %v257
        %v399 = vunpack.c.l.b16 %v258
        %v400 = vunpack.c.l.b16 %v259
        %v401 = vunpack.c.l.b16 %v260
        %v402 = vunpack.c.l.b16 %v261
        %v403 = vunpack.c.l.b16 %v262
        %v404 = vunpack.c.l.b16 %v263
        %v405 = vunpack.c.l.b16 %v264
        %v406 = vunpack.c.l.b16 %v265
        %v407 = vunpack.c.l.b16 %v266
        %v408 = vpack.c.b16 %v346, %v345
        %v409 = vpack.c.b16 %v348, %v347
        %v410 = vpack.c.b16 %v350, %v349
        %v411 = vpack.c.b16 %v352, %v351
        %v412 = vpack.c.b16 %v354, %v353
        %v413 = vpack.c.b16 %v356, %v355
        %v414 = vpack.c.b16 %v358, %v357
        %v415 = vpack.c.b16 %v360, %v359
        %v416 = vpack.c.b16 %v362, %v361
        %v417 = vpack.c.b16 %v364, %v363
        %v418 = vpack.c.b16 %v366, %v365
        %v419 = vpack.c.b16 %v368, %v367
        %v420 = vpack.c.b16 %v370, %v369
        %v421 = vpack.c.b16 %v372, %v371
        %v422 = vpack.c.b16 %v374, %v373
        %v423 = vpack.c.b16 %v376, %v375
        %v424 = vpack.c.b16 %v378, %v377
        %v425 = vpack.c.b16 %v380, %v379
        %v426 = vpack.c.b16 %v382, %v381
        %v427 = vpack.c.b16 %v384, %v383
        %v428 = vpack.c.b16 %v386, %v385
        %v429 = vpack.c.b16 %v388, %v387
        %v430 = vpack.c.b16 %v390, %v389
        %v431 = vpack.c.b16 %v392, %v391
        %v432 = vpack.c.b16 %v394, %v393
        %v433 = vpack.c.b16 %v396, %v395
        %v434 = vpack.c.b16 %v398, %v397
        %v435 = vpack.c.b16 %v400, %v399
        %v436 = vpack.c.b16 %v402, %v401
        %v437 = vpack.c.b16 %v404, %v403
        %v438 = vpack.c.b16 %v406, %v405
        %v439 = vpack.c.b16 %v407, %v407
        %vm471 = vcmask 949248
        %v473 = vsel %vm471, %v278, 0
        %vm475 = vcmask 1041408
        %v477 = vsel %vm475, %v439, 0
        %479 = vmatprep.subr.bf16.mxu0 0
        %480 = vmatpush1.bf16.msra.mxu0 %v408
        %481 = vmatprep.subr.bf16.mxu0 0
        %482 = vmatpush1.bf16.msra.mxu0 %v409
        %483 = vmatprep.subr.bf16.mxu0 0
        %484 = vmatpush1.bf16.msra.mxu0 %v410
        %485 = vmatprep.subr.bf16.mxu0 0
        %486 = vmatpush1.bf16.msra.mxu0 %v411
        %487 = vmatprep.subr.bf16.mxu0 0
        %488 = vmatpush1.bf16.msra.mxu0 %v412
        %489 = vmatprep.subr.bf16.mxu0 0
        %490 = vmatpush1.bf16.msra.mxu0 %v413
        %491 = vmatprep.subr.bf16.mxu0 0
        %492 = vmatpush1.bf16.msra.mxu0 %v414
        %493 = vmatprep.subr.bf16.mxu0 0
        %494 = vmatpush1.bf16.msra.mxu0 %v415
        %495 = vmatprep.subr.bf16.mxu0 0
        %496 = vmatpush1.bf16.msra.mxu0 %v416
        %497 = vmatprep.subr.bf16.mxu0 0
        %498 = vmatpush1.bf16.msra.mxu0 %v417
        %499 = vmatprep.subr.bf16.mxu0 0
        %500 = vmatpush1.bf16.msra.mxu0 %v418
        %501 = vmatprep.subr.bf16.mxu0 0
        %502 = vmatpush1.bf16.msra.mxu0 %v419
        %503 = vmatprep.subr.bf16.mxu0 0
        %504 = vmatpush1.bf16.msra.mxu0 %v420
        %505 = vmatprep.subr.bf16.mxu0 0
        %506 = vmatpush1.bf16.msra.mxu0 %v421
        %507 = vmatprep.subr.bf16.mxu0 0
        %508 = vmatpush1.bf16.msra.mxu0 %v422
        %509 = vmatprep.subr.bf16.mxu0 0
        %510 = vmatpush1.bf16.msra.mxu0 %v423
        %511 = vmatprep.mubr.bf16.mxu0 %v276
        %512 = vmatmul.mubr.bf16.gmra.mrb[0].mxu0 %v275
        %v513 = vpop.f32.mrb[0].mxu0
        %v514 = vadd.f32 0.0, %v513
        %v515 = vpop.f32.mrb[0].mxu0
        %v516 = vpop.f32.mrb[0].mxu0
        %v517 = vpop.f32.mrb[0].mxu0
        %518 = vdwg.mxu0
        %519 = vmatprep.subr.bf16.mxu0 0
        %520 = vmatpush1.bf16.msra.mxu0 %v424
        %521 = vmatprep.subr.bf16.mxu0 0
        %522 = vmatpush1.bf16.msra.mxu0 %v425
        %523 = vmatprep.subr.bf16.mxu0 0
        %524 = vmatpush1.bf16.msra.mxu0 %v426
        %525 = vmatprep.subr.bf16.mxu0 0
        %526 = vmatpush1.bf16.msra.mxu0 %v427
        %527 = vmatprep.subr.bf16.mxu0 0
        %528 = vmatpush1.bf16.msra.mxu0 %v428
        %529 = vmatprep.subr.bf16.mxu0 0
        %530 = vmatpush1.bf16.msra.mxu0 %v429
        %531 = vmatprep.subr.bf16.mxu0 0
        %532 = vmatpush1.bf16.msra.mxu0 %v430
        %533 = vmatprep.subr.bf16.mxu0 0
        %534 = vmatpush1.bf16.msra.mxu0 %v431
        %535 = vmatprep.subr.bf16.mxu0 0
        %536 = vmatpush1.bf16.msra.mxu0 %v432
        %537 = vmatprep.subr.bf16.mxu0 0
        %538 = vmatpush1.bf16.msra.mxu0 %v433
        %539 = vmatprep.subr.bf16.mxu0 0
        %540 = vmatpush1.bf16.msra.mxu0 %v434
        %541 = vmatprep.subr.bf16.mxu0 0
        %542 = vmatpush1.bf16.msra.mxu0 %v435
        %543 = vmatprep.subr.bf16.mxu0 0
        %544 = vmatpush1.bf16.msra.mxu0 %v436
        %545 = vmatprep.subr.bf16.mxu0 0
        %546 = vmatpush1.bf16.msra.mxu0 %v437
        %547 = vmatprep.subr.bf16.mxu0 0
        %548 = vmatpush1.bf16.msra.mxu0 %v438
        %549 = vmatprep.subr.bf16.mxu0 0
        %550 = vmatpush1.bf16.msra.mxu0 %v477
        %551 = vmatprep.mubr.bf16.mxu0 %v473
        %552 = vmatmul.mubr.bf16.gmra.mrb[0].mxu0 %v277
        %v553 = vpop.f32.mrb[0].mxu0
        %v554 = vadd.f32 %v514, %v553
        %v555 = vpop.f32.mrb[0].mxu0
        %v556 = vpop.f32.mrb[0].mxu0
        %v557 = vpop.f32.mrb[0].mxu0
        %558 = vdwg.mxu0
        %s559 = scalar_lea.vmem %s179, 16 [#allocation2]
        %v560 = vld [vmem:[%s559] sm:$0xff]
        %v561 = vld [vmem:[%s559 + $0x8] sm:$0xff]
        %v564 = vunpack.c.l.b16 %v560
        %v565 = vunpack.c.h.b16 %v560
        %v566 = vunpack.c.l.b16 %v561
        %v567 = vunpack.c.h.b16 %v561
        %v568 = vpack.c.b16 %v564, %v564
        %v569 = vpack.c.b16 %v565, %v565
        %v570 = vpack.c.b16 %v566, %v566
        %v571 = vpack.c.b16 %v567, %v567
        %v576 = vsel %vm471, %v571, 0
        %578 = vmatprep.subr.bf16.mxu0 0
        %579 = vmatpush1.bf16.msra.mxu0 %v408
        %580 = vmatprep.subr.bf16.mxu0 0
        %581 = vmatpush1.bf16.msra.mxu0 %v409
        %582 = vmatprep.subr.bf16.mxu0 0
        %583 = vmatpush1.bf16.msra.mxu0 %v410
        %584 = vmatprep.subr.bf16.mxu0 0
        %585 = vmatpush1.bf16.msra.mxu0 %v411
        %586 = vmatprep.subr.bf16.mxu0 0
        %587 = vmatpush1.bf16.msra.mxu0 %v412
        %588 = vmatprep.subr.bf16.mxu0 0
        %589 = vmatpush1.bf16.msra.mxu0 %v413
        %590 = vmatprep.subr.bf16.mxu0 0
        %591 = vmatpush1.bf16.msra.mxu0 %v414
        %592 = vmatprep.subr.bf16.mxu0 0
        %593 = vmatpush1.bf16.msra.mxu0 %v415
        %594 = vmatprep.subr.bf16.mxu0 0
        %595 = vmatpush1.bf16.msra.mxu0 %v416
        %596 = vmatprep.subr.bf16.mxu0 0
        %597 = vmatpush1.bf16.msra.mxu0 %v417
        %598 = vmatprep.subr.bf16.mxu0 0
        %599 = vmatpush1.bf16.msra.mxu0 %v418
        %600 = vmatprep.subr.bf16.mxu0 0
        %601 = vmatpush1.bf16.msra.mxu0 %v419
        %602 = vmatprep.subr.bf16.mxu0 0
        %603 = vmatpush1.bf16.msra.mxu0 %v420
        %604 = vmatprep.subr.bf16.mxu0 0
        %605 = vmatpush1.bf16.msra.mxu0 %v421
        %606 = vmatprep.subr.bf16.mxu0 0
        %607 = vmatpush1.bf16.msra.mxu0 %v422
        %608 = vmatprep.subr.bf16.mxu0 0
        %609 = vmatpush1.bf16.msra.mxu0 %v423
        %610 = vmatprep.mubr.bf16.mxu0 %v569
        %611 = vmatmul.mubr.bf16.gmra.mrb[0].mxu0 %v568
        %v612 = vpop.f32.mrb[0].mxu0
        %v613 = vadd.f32 0.0, %v612
        %v614 = vpop.f32.mrb[0].mxu0
        %v615 = vpop.f32.mrb[0].mxu0
        %v616 = vpop.f32.mrb[0].mxu0
        %617 = vdwg.mxu0
        %618 = vmatprep.subr.bf16.mxu0 0
        %619 = vmatpush1.bf16.msra.mxu0 %v424
        %620 = vmatprep.subr.bf16.mxu0 0
        %621 = vmatpush1.bf16.msra.mxu0 %v425
        %622 = vmatprep.subr.bf16.mxu0 0
        %623 = vmatpush1.bf16.msra.mxu0 %v426
        %624 = vmatprep.subr.bf16.mxu0 0
        %625 = vmatpush1.bf16.msra.mxu0 %v427
        %626 = vmatprep.subr.bf16.mxu0 0
        %627 = vmatpush1.bf16.msra.mxu0 %v428
        %628 = vmatprep.subr.bf16.mxu0 0
        %629 = vmatpush1.bf16.msra.mxu0 %v429
        %630 = vmatprep.subr.bf16.mxu0 0
        %631 = vmatpush1.bf16.msra.mxu0 %v430
        %632 = vmatprep.subr.bf16.mxu0 0
        %633 = vmatpush1.bf16.msra.mxu0 %v431
        %634 = vmatprep.subr.bf16.mxu0 0
        %635 = vmatpush1.bf16.msra.mxu0 %v432
        %636 = vmatprep.subr.bf16.mxu0 0
        %637 = vmatpush1.bf16.msra.mxu0 %v433
        %638 = vmatprep.subr.bf16.mxu0 0
        %639 = vmatpush1.bf16.msra.mxu0 %v434
        %640 = vmatprep.subr.bf16.mxu0 0
        %641 = vmatpush1.bf16.msra.mxu0 %v435
        %642 = vmatprep.subr.bf16.mxu0 0
        %643 = vmatpush1.bf16.msra.mxu0 %v436
        %644 = vmatprep.subr.bf16.mxu0 0
        %645 = vmatpush1.bf16.msra.mxu0 %v437
        %646 = vmatprep.subr.bf16.mxu0 0
        %647 = vmatpush1.bf16.msra.mxu0 %v438
        %648 = vmatprep.subr.bf16.mxu0 0
        %649 = vmatpush1.bf16.msra.mxu0 %v477
        %650 = vmatprep.mubr.bf16.mxu0 %v576
        %651 = vmatmul.mubr.bf16.gmra.mrb[0].mxu0 %v570
        %v652 = vpop.f32.mrb[0].mxu0
        %v653 = vadd.f32 %v613, %v652
        %v654 = vpop.f32.mrb[0].mxu0
        %v655 = vpop.f32.mrb[0].mxu0
        %v656 = vpop.f32.mrb[0].mxu0
        %657 = vdwg.mxu0
        %s658 = scalar_lea.vmem %s179, 32 [#allocation2]
        %v659 = vld [vmem:[%s658] sm:$0xff]
        %v660 = vld [vmem:[%s658 + $0x8] sm:$0xff]
        %v663 = vunpack.c.l.b16 %v659
        %v664 = vunpack.c.h.b16 %v659
        %v665 = vunpack.c.l.b16 %v660
        %v666 = vunpack.c.h.b16 %v660
        %v667 = vpack.c.b16 %v663, %v663
        %v668 = vpack.c.b16 %v664, %v664
        %v669 = vpack.c.b16 %v665, %v665
        %v670 = vpack.c.b16 %v666, %v666
        %v675 = vsel %vm471, %v670, 0
        %677 = vmatprep.subr.bf16.mxu0 0
        %678 = vmatpush1.bf16.msra.mxu0 %v408
        %679 = vmatprep.subr.bf16.mxu0 0
        %680 = vmatpush1.bf16.msra.mxu0 %v409
        %681 = vmatprep.subr.bf16.mxu0 0
        %682 = vmatpush1.bf16.msra.mxu0 %v410
        %683 = vmatprep.subr.bf16.mxu0 0
        %684 = vmatpush1.bf16.msra.mxu0 %v411
        %685 = vmatprep.subr.bf16.mxu0 0
        %686 = vmatpush1.bf16.msra.mxu0 %v412
        %687 = vmatprep.subr.bf16.mxu0 0
        %688 = vmatpush1.bf16.msra.mxu0 %v413
        %689 = vmatprep.subr.bf16.mxu0 0
        %690 = vmatpush1.bf16.msra.mxu0 %v414
        %691 = vmatprep.subr.bf16.mxu0 0
        %692 = vmatpush1.bf16.msra.mxu0 %v415
        %693 = vmatprep.subr.bf16.mxu0 0
        %694 = vmatpush1.bf16.msra.mxu0 %v416
        %695 = vmatprep.subr.bf16.mxu0 0
        %696 = vmatpush1.bf16.msra.mxu0 %v417
        %697 = vmatprep.subr.bf16.mxu0 0
        %698 = vmatpush1.bf16.msra.mxu0 %v418
        %699 = vmatprep.subr.bf16.mxu0 0
        %700 = vmatpush1.bf16.msra.mxu0 %v419
        %701 = vmatprep.subr.bf16.mxu0 0
        %702 = vmatpush1.bf16.msra.mxu0 %v420
        %703 = vmatprep.subr.bf16.mxu0 0
        %704 = vmatpush1.bf16.msra.mxu0 %v421
        %705 = vmatprep.subr.bf16.mxu0 0
        %706 = vmatpush1.bf16.msra.mxu0 %v422
        %707 = vmatprep.subr.bf16.mxu0 0
        %708 = vmatpush1.bf16.msra.mxu0 %v423
        %709 = vmatprep.mubr.bf16.mxu0 %v668
        %710 = vmatmul.mubr.bf16.gmra.mrb[0].mxu0 %v667
        %v711 = vpop.f32.mrb[0].mxu0
        %v712 = vadd.f32 0.0, %v711
        %v713 = vpop.f32.mrb[0].mxu0
        %v714 = vpop.f32.mrb[0].mxu0
        %v715 = vpop.f32.mrb[0].mxu0
        %716 = vdwg.mxu0
        %717 = vmatprep.subr.bf16.mxu0 0
        %718 = vmatpush1.bf16.msra.mxu0 %v424
        %719 = vmatprep.subr.bf16.mxu0 0
        %720 = vmatpush1.bf16.msra.mxu0 %v425
        %721 = vmatprep.subr.bf16.mxu0 0
        %722 = vmatpush1.bf16.msra.mxu0 %v426
        %723 = vmatprep.subr.bf16.mxu0 0
        %724 = vmatpush1.bf16.msra.mxu0 %v427
        %725 = vmatprep.subr.bf16.mxu0 0
        %726 = vmatpush1.bf16.msra.mxu0 %v428
        %727 = vmatprep.subr.bf16.mxu0 0
        %728 = vmatpush1.bf16.msra.mxu0 %v429
        %729 = vmatprep.subr.bf16.mxu0 0
        %730 = vmatpush1.bf16.msra.mxu0 %v430
        %731 = vmatprep.subr.bf16.mxu0 0
        %732 = vmatpush1.bf16.msra.mxu0 %v431
        %733 = vmatprep.subr.bf16.mxu0 0
        %734 = vmatpush1.bf16.msra.mxu0 %v432
        %735 = vmatprep.subr.bf16.mxu0 0
        %736 = vmatpush1.bf16.msra.mxu0 %v433
        %737 = vmatprep.subr.bf16.mxu0 0
        %738 = vmatpush1.bf16.msra.mxu0 %v434
        %739 = vmatprep.subr.bf16.mxu0 0
        %740 = vmatpush1.bf16.msra.mxu0 %v435
        %741 = vmatprep.subr.bf16.mxu0 0
        %742 = vmatpush1.bf16.msra.mxu0 %v436
        %743 = vmatprep.subr.bf16.mxu0 0
        %744 = vmatpush1.bf16.msra.mxu0 %v437
        %745 = vmatprep.subr.bf16.mxu0 0
        %746 = vmatpush1.bf16.msra.mxu0 %v438
        %747 = vmatprep.subr.bf16.mxu0 0
        %748 = vmatpush1.bf16.msra.mxu0 %v477
        %749 = vmatprep.mubr.bf16.mxu0 %v675
        %750 = vmatmul.mubr.bf16.gmra.mrb[0].mxu0 %v669
        %v751 = vpop.f32.mrb[0].mxu0
        %v752 = vadd.f32 %v712, %v751
        %v753 = vpop.f32.mrb[0].mxu0
        %v754 = vpop.f32.mrb[0].mxu0
        %v755 = vpop.f32.mrb[0].mxu0
        %756 = vdwg.mxu0
        %s757 = scalar_lea.vmem %s179, 48 [#allocation2]
        %v758 = vld [vmem:[%s757] sm:$0xff]
        %v759 = vld [vmem:[%s757 + $0x8] sm:$0xff]
        %v762 = vunpack.c.l.b16 %v758
        %v763 = vunpack.c.h.b16 %v758
        %v764 = vunpack.c.l.b16 %v759
        %v765 = vunpack.c.h.b16 %v759
        %v766 = vpack.c.b16 %v762, %v762
        %v767 = vpack.c.b16 %v763, %v763
        %v768 = vpack.c.b16 %v764, %v764
        %v769 = vpack.c.b16 %v765, %v765
        %v774 = vsel %vm471, %v769, 0
        %776 = vmatprep.subr.bf16.mxu0 0
        %777 = vmatpush1.bf16.msra.mxu0 %v408
        %778 = vmatprep.subr.bf16.mxu0 0
        %779 = vmatpush1.bf16.msra.mxu0 %v409
        %780 = vmatprep.subr.bf16.mxu0 0
        %781 = vmatpush1.bf16.msra.mxu0 %v410
        %782 = vmatprep.subr.bf16.mxu0 0
        %783 = vmatpush1.bf16.msra.mxu0 %v411
        %784 = vmatprep.subr.bf16.mxu0 0
        %785 = vmatpush1.bf16.msra.mxu0 %v412
        %786 = vmatprep.subr.bf16.mxu0 0
        %787 = vmatpush1.bf16.msra.mxu0 %v413
        %788 = vmatprep.subr.bf16.mxu0 0
        %789 = vmatpush1.bf16.msra.mxu0 %v414
        %790 = vmatprep.subr.bf16.mxu0 0
        %791 = vmatpush1.bf16.msra.mxu0 %v415
        %792 = vmatprep.subr.bf16.mxu0 0
        %793 = vmatpush1.bf16.msra.mxu0 %v416
        %794 = vmatprep.subr.bf16.mxu0 0
        %795 = vmatpush1.bf16.msra.mxu0 %v417
        %796 = vmatprep.subr.bf16.mxu0 0
        %797 = vmatpush1.bf16.msra.mxu0 %v418
        %798 = vmatprep.subr.bf16.mxu0 0
        %799 = vmatpush1.bf16.msra.mxu0 %v419
        %800 = vmatprep.subr.bf16.mxu0 0
        %801 = vmatpush1.bf16.msra.mxu0 %v420
        %802 = vmatprep.subr.bf16.mxu0 0
        %803 = vmatpush1.bf16.msra.mxu0 %v421
        %804 = vmatprep.subr.bf16.mxu0 0
        %805 = vmatpush1.bf16.msra.mxu0 %v422
        %806 = vmatprep.subr.bf16.mxu0 0
        %807 = vmatpush1.bf16.msra.mxu0 %v423
        %808 = vmatprep.mubr.bf16.mxu0 %v767
        %809 = vmatmul.mubr.bf16.gmra.mrb[0].mxu0 %v766
        %v810 = vpop.f32.mrb[0].mxu0
        %v811 = vadd.f32 0.0, %v810
        %v812 = vpop.f32.mrb[0].mxu0
        %v813 = vpop.f32.mrb[0].mxu0
        %v814 = vpop.f32.mrb[0].mxu0
        %815 = vdwg.mxu0
        %816 = vmatprep.subr.bf16.mxu0 0
        %817 = vmatpush1.bf16.msra.mxu0 %v424
        %818 = vmatprep.subr.bf16.mxu0 0
        %819 = vmatpush1.bf16.msra.mxu0 %v425
        %820 = vmatprep.subr.bf16.mxu0 0
        %821 = vmatpush1.bf16.msra.mxu0 %v426
        %822 = vmatprep.subr.bf16.mxu0 0
        %823 = vmatpush1.bf16.msra.mxu0 %v427
        %824 = vmatprep.subr.bf16.mxu0 0
        %825 = vmatpush1.bf16.msra.mxu0 %v428
        %826 = vmatprep.subr.bf16.mxu0 0
        %827 = vmatpush1.bf16.msra.mxu0 %v429
        %828 = vmatprep.subr.bf16.mxu0 0
        %829 = vmatpush1.bf16.msra.mxu0 %v430
        %830 = vmatprep.subr.bf16.mxu0 0
        %831 = vmatpush1.bf16.msra.mxu0 %v431
        %832 = vmatprep.subr.bf16.mxu0 0
        %833 = vmatpush1.bf16.msra.mxu0 %v432
        %834 = vmatprep.subr.bf16.mxu0 0
        %835 = vmatpush1.bf16.msra.mxu0 %v433
        %836 = vmatprep.subr.bf16.mxu0 0
        %837 = vmatpush1.bf16.msra.mxu0 %v434
        %838 = vmatprep.subr.bf16.mxu0 0
        %839 = vmatpush1.bf16.msra.mxu0 %v435
        %840 = vmatprep.subr.bf16.mxu0 0
        %841 = vmatpush1.bf16.msra.mxu0 %v436
        %842 = vmatprep.subr.bf16.mxu0 0
        %843 = vmatpush1.bf16.msra.mxu0 %v437
        %844 = vmatprep.subr.bf16.mxu0 0
        %845 = vmatpush1.bf16.msra.mxu0 %v438
        %846 = vmatprep.subr.bf16.mxu0 0
        %847 = vmatpush1.bf16.msra.mxu0 %v477
        %848 = vmatprep.mubr.bf16.mxu0 %v774
        %849 = vmatmul.mubr.bf16.gmra.mrb[0].mxu0 %v768
        %v850 = vpop.f32.mrb[0].mxu0
        %v851 = vadd.f32 %v811, %v850
        %v852 = vpop.f32.mrb[0].mxu0
        %v853 = vpop.f32.mrb[0].mxu0
        %v854 = vpop.f32.mrb[0].mxu0
        %855 = vdwg.mxu0
        %v856 = vmax.f32 %v554, %v653
        %v857 = vmax.f32 %v752, %v851
        %v858 = vmax.f32 %v856, %v857
        %v859 = vld [vmem:[%s2] sm:$0x1]
        %v861 = vlaneseq
        %v862 = vshrl.u32 %v861, 7
        %v863 = vsub.s32 0, %v862
        %v864 = vrot.slane %v859, %v863
        %v866 = vadd.f32 %v858, %v864
        %v867 = vmax.f32 %v866, 0.0
        %v868 = vpack.c.bf16 %v867, %v867
        %vm869 = vcmask 404480
        %870 = vst.msk [vmem:[%s202] sm:$0xf] %vm869, %v868
        %p871 = scmp.lt.s32.totalorder %s14, 3
        %s872 = scalar_select %p871, %s14, 3
        %s873 = smul.addr %s872, 4
        %s874 = scalar_lea.vmem %s3, %s873
        // Predicated region
        $region56: #{warmnet_forward.4} parent=50 // pred_check
          %p875 = pneg %p100
        $region57: #{warmnet_forward.4} parent=50 // pred_check_branch
          %877 = sbr.rel (%p875) target = $region59
        $region58: #{warmnet_forward.4} parent=50 // pred_region
          _
        $region59: #{warmnet_forward.4} parent=50 // pred_fallthru
          _
      $region51: #{warmnet_forward.4} parent=5 // pred_fallthru
        _
      %p878 = scmp.le.s32.totalorder 2, %s9
      // Predicated region
      $region60: #{warmnet_forward.4} parent=5 // pred_check
        %p879 = pneg %p878
      $region61: #{warmnet_forward.4} parent=5 // pred_check_branch
        %881 = sbr.rel (%p879) target = $region63
      $region62: #{warmnet_forward.4} parent=5 // pred_region
        %s882 = ssub.s32 %s9, 2
        // Predicated region
        $region64: #{warmnet_forward.4} parent=62 // pred_check
          %p883 = pneg %p106
        $region65: #{warmnet_forward.4} parent=62 // pred_check_branch
          %885 = sbr.rel (%p883) target = $region67
        $region66: #{warmnet_forward.4} parent=62 // pred_region
          %p886 = scmp.lt.s32.totalorder %s15, 3
          %s887 = scalar_select %p886, %s15, 3
          %s888 = smul.addr %s887, 4
          %s889 = scalar_lea.vmem %s3, %s888
        $region67: #{warmnet_forward.4} parent=62 // pred_fallthru
          _
      $region63: #{warmnet_forward.4} parent=5 // pred_fallthru
        _
    $region6: #{warmnet_forward.4} parent=1 // loop_footer
      %s13 = sadd.s32 1, %s9
    $region7: #{warmnet_forward.4} parent=1 // loop_footer_branch
      %8 = sbr.rel target = $region3
    $region8: #{warmnet_forward.4} parent=1 // loop_exit
      _

// kernel: warmnet_forward.5
$region0: #{warmnet_forward.5}
  #allocation0 [shape = 'u32[]', space=smem, size = 0x4, offset = 0x4, fixed_abs, tag = 'smem constant byte address 0x4 - core index']
  #allocation1 [shape = 'u32[144,128]{1,0:T(1,128)}', space=vmem, size = 0x12000, scoped, tag = 'internal scratch']
  %s0 = inlined_call_operand.vmem [shape: bf16[8,800], index: 0, kind: input, shape index: {}]
  %s1 = inlined_call_operand.vmem [shape: bf16[800,500], index: 1, kind: input, shape index: {}]
  %s2 = inlined_call_operand.vmem [shape: f32[1,500], index: 2, kind: input, shape index: {}]
  %s3 = inlined_call_operand.vmem [shape: bf16[500,10], index: 3, kind: input, shape index: {}]
  %s4 = inlined_call_operand.vmem [shape: f32[1,10], index: 4, kind: input, shape index: {}]
  %s5 = inlined_call_operand.vmem [shape: f32[8,10], index: 5, kind: output, shape index: {}]
  %s6 = sld [smem:[#allocation0]]
  $region30: #{warmnet_forward.5} parent=0
    _
  %s8 = ssub.s32 1, %s6
  %s9 = scalar_select 0, %s8, %s6
  // Predicated region
  $region2: #{warmnet_forward.5} parent=0 // pred_check
    _
  $region3: #{warmnet_forward.5} parent=0 // pred_check_branch
    %11 = sbr.rel (0) target = $region5
  $region4: #{warmnet_forward.5} parent=0 // pred_region
    _
  $region5: #{warmnet_forward.5} parent=0 // pred_fallthru
    _
  // Predicated region
  $region6: #{warmnet_forward.5} parent=0 // pred_check
    _
  $region7: #{warmnet_forward.5} parent=0 // pred_check_branch
    %13 = sbr.rel (0) target = $region9
  $region8: #{warmnet_forward.5} parent=0 // pred_region
    _
  $region9: #{warmnet_forward.5} parent=0 // pred_fallthru
    _
  // Predicated region
  $region10: #{warmnet_forward.5} parent=0 // pred_check
    _
  $region11: #{warmnet_forward.5} parent=0 // pred_check_branch
    %15 = sbr.rel (0) target = $region13
  $region12: #{warmnet_forward.5} parent=0 // pred_region
    _
  $region13: #{warmnet_forward.5} parent=0 // pred_fallthru
    _
  // Predicated region
  $region14: #{warmnet_forward.5} parent=0 // pred_check
    _
  $region15: #{warmnet_forward.5} parent=0 // pred_check_branch
    %17 = sbr.rel (0) target = $region17
  $region16: #{warmnet_forward.5} parent=0 // pred_region
    _
  $region17: #{warmnet_forward.5} parent=0 // pred_fallthru
    _
  // Predicated region
  $region18: #{warmnet_forward.5} parent=0 // pred_check
    _
  $region19: #{warmnet_forward.5} parent=0 // pred_check_branch
    %19 = sbr.rel (0) target = $region21
  $region20: #{warmnet_forward.5} parent=0 // pred_region
    _
  $region21: #{warmnet_forward.5} parent=0 // pred_fallthru
    _
  %v21 = vld [vmem:[%s0] sm:$0xff]
  %v22 = vld [vmem:[%s0 + $0x8] sm:$0xff]
  %v23 = vld [vmem:[%s0 + $0x10] sm:$0xff]
  %v24 = vld [vmem:[%s0 + $0x18] sm:$0xf]
  %v25 = vld [vmem:[%s1] sm:$0xff]
  %v26 = vld [vmem:[%s1 + $0x8] sm:$0xff]
  %v27 = vld [vmem:[%s1 + $0x10] sm:$0xff]
  %v28 = vld [vmem:[%s1 + $0x18] sm:$0xff]
  %v29 = vld [vmem:[%s1 + $0x20] sm:$0xff]
  %v30 = vld [vmem:[%s1 + $0x28] sm:$0xff]
  %v31 = vld [vmem:[%s1 + $0x30] sm:$0xff]
  %v32 = vld [vmem:[%s1 + $0x38] sm:$0xff]
  %v33 = vld [vmem:[%s1 + $0x40] sm:$0xff]
  %v34 = vld [vmem:[%s1 + $0x48] sm:$0xff]
  %v35 = vld [vmem:[%s1 + $0x50] sm:$0xff]
  %v36 = vld [vmem:[%s1 + $0x58] sm:$0xff]
  %v37 = vld [vmem:[%s1 + $0x60] sm:$0xff]
  %v38 = vld [vmem:[%s1 + $0x68] sm:$0xff]
  %v39 = vld [vmem:[%s1 + $0x70] sm:$0xff]
  %v40 = vld [vmem:[%s1 + $0x78] sm:$0xff]
  %v41 = vld [vmem:[%s1 + $0x80] sm:$0xff]
  %v42 = vld [vmem:[%s1 + $0x88] sm:$0xff]
  %v43 = vld [vmem:[%s1 + $0x90] sm:$0xff]
  %v44 = vld [vmem:[%s1 + $0x98] sm:$0xff]
  %v45 = vld [vmem:[%s1 + $0xa0] sm:$0xff]
  %v46 = vld [vmem:[%s1 + $0xa8] sm:$0xff]
  %v47 = vld [vmem:[%s1 + $0xb0] sm:$0xff]
  %v48 = vld [vmem:[%s1 + $0xb8] sm:$0xff]
  %v49 = vld [vmem:[%s1 + $0xc0] sm:$0xff]
  %v50 = vld [vmem:[%s1 + $0xc8] sm:$0xff]
  %v51 = vld [vmem:[%s1 + $0xd0] sm:$0xff]
  %v52 = vld [vmem:[%s1 + $0xd8] sm:$0xff]
  %v53 = vld [vmem:[%s1 + $0xe0] sm:$0xff]
  %v54 = vld [vmem:[%s1 + $0xe8] sm:$0xff]
  %v55 = vld [vmem:[%s1 + $0xf0] sm:$0xff]
  %v56 = vld [vmem:[%s1 + $0xf8] sm:$0xff]
  %v57 = vld [vmem:[%s1 + $0x100] sm:$0xff]
  %v58 = vld [vmem:[%s1 + $0x108] sm:$0xff]
  %v59 = vld [vmem:[%s1 + $0x110] sm:$0xff]
  %v60 = vld [vmem:[%s1 + $0x118] sm:$0xff]
  %v61 = vld [vmem:[%s1 + $0x120] sm:$0xff]
  %v62 = vld [vmem:[%s1 + $0x128] sm:$0xff]
  %v63 = vld [vmem:[%s1 + $0x130] sm:$0xff]
  %v64 = vld [vmem:[%s1 + $0x138] sm:$0xff]
  %v65 = vld [vmem:[%s1 + $0x140] sm:$0xff]
  %v66 = vld [vmem:[%s1 + $0x148] sm:$0xff]
  %v67 = vld [vmem:[%s1 + $0x150] sm:$0xff]
  %v68 = vld [vmem:[%s1 + $0x158] sm:$0xff]
  %v69 = vld [vmem:[%s1 + $0x160] sm:$0xff]
  %v70 = vld [vmem:[%s1 + $0x168] sm:$0xff]
  %v71 = vld [vmem:[%s1 + $0x170] sm:$0xff]
  %v72 = vld [vmem:[%s1 + $0x178] sm:$0xff]
  %v73 = vld [vmem:[%s1 + $0x180] sm:$0xff]
  %v74 = vld [vmem:[%s1 + $0x188] sm:$0xff]
  %v75 = vld [vmem:[%s1 + $0x190] sm:$0xff]
  %v76 = vld [vmem:[%s1 + $0x198] sm:$0xff]
  %v77 = vld [vmem:[%s1 + $0x1a0] sm:$0xff]
  %v78 = vld [vmem:[%s1 + $0x1a8] sm:$0xff]
  %v79 = vld [vmem:[%s1 + $0x1b0] sm:$0xff]
  %v80 = vld [vmem:[%s1 + $0x1b8] sm:$0xff]
  %v81 = vld [vmem:[%s1 + $0x1c0] sm:$0xff]
  %v82 = vld [vmem:[%s1 + $0x1c8] sm:$0xff]
  %v83 = vld [vmem:[%s1 + $0x1d0] sm:$0xff]
  %v84 = vld [vmem:[%s1 + $0x1d8] sm:$0xff]
  %v85 = vld [vmem:[%s1 + $0x1e0] sm:$0xff]
  %v86 = vld [vmem:[%s1 + $0x1e8] sm:$0xff]
  %v87 = vld [vmem:[%s1 + $0x1f0] sm:$0xff]
  %v88 = vld [vmem:[%s1 + $0x1f8] sm:$0xff]
  %v89 = vld [vmem:[%s1 + $0x200] sm:$0xff]
  %v90 = vld [vmem:[%s1 + $0x208] sm:$0xff]
  %v91 = vld [vmem:[%s1 + $0x210] sm:$0xff]
  %v92 = vld [vmem:[%s1 + $0x218] sm:$0xff]
  %v93 = vld [vmem:[%s1 + $0x220] sm:$0xff]
  %v94 = vld [vmem:[%s1 + $0x228] sm:$0xff]
  %v95 = vld [vmem:[%s1 + $0x230] sm:$0xff]
  %v96 = vld [vmem:[%s1 + $0x238] sm:$0xff]
  %v97 = vld [vmem:[%s1 + $0x240] sm:$0xff]
  %v98 = vld [vmem:[%s1 + $0x248] sm:$0xff]
  %v99 = vld [vmem:[%s1 + $0x250] sm:$0xff]
  %v100 = vld [vmem:[%s1 + $0x258] sm:$0xff]
  %v101 = vld [vmem:[%s1 + $0x260] sm:$0xff]
  %v102 = vld [vmem:[%s1 + $0x268] sm:$0xff]
  %v103 = vld [vmem:[%s1 + $0x270] sm:$0xff]
  %v104 = vld [vmem:[%s1 + $0x278] sm:$0xff]
  %v105 = vld [vmem:[%s1 + $0x280] sm:$0xff]
  %v106 = vld [vmem:[%s1 + $0x288] sm:$0xff]
  %v107 = vld [vmem:[%s1 + $0x290] sm:$0xff]
  %v108 = vld [vmem:[%s1 + $0x298] sm:$0xff]
  %v109 = vld [vmem:[%s1 + $0x2a0] sm:$0xff]
  %v110 = vld [vmem:[%s1 + $0x2a8] sm:$0xff]
  %v111 = vld [vmem:[%s1 + $0x2b0] sm:$0xff]
  %v112 = vld [vmem:[%s1 + $0x2b8] sm:$0xff]
  %v113 = vld [vmem:[%s1 + $0x2c0] sm:$0xff]
  %v114 = vld [vmem:[%s1 + $0x2c8] sm:$0xff]
  %v115 = vld [vmem:[%s1 + $0x2d0] sm:$0xff]
  %v116 = vld [vmem:[%s1 + $0x2d8] sm:$0xff]
  %v117 = vld [vmem:[%s1 + $0x2e0] sm:$0xff]
  %v118 = vld [vmem:[%s1 + $0x2e8] sm:$0xff]
  %v119 = vld [vmem:[%s1 + $0x2f0] sm:$0xff]
  %v120 = vld [vmem:[%s1 + $0x2f8] sm:$0xff]
  %v121 = vld [vmem:[%s1 + $0x300] sm:$0xff]
  %v122 = vld [vmem:[%s1 + $0x308] sm:$0xff]
  %v123 = vld [vmem:[%s1 + $0x310] sm:$0xff]
  %v124 = vld [vmem:[%s1 + $0x318] sm:$0xff]
  %v125 = vld [vmem:[%s1 + $0x320] sm:$0xff]
  %v126 = vld [vmem:[%s1 + $0x328] sm:$0xff]
  %v127 = vld [vmem:[%s1 + $0x330] sm:$0xff]
  %v128 = vld [vmem:[%s1 + $0x338] sm:$0xff]
  %v129 = vld [vmem:[%s1 + $0x340] sm:$0xff]
  %v130 = vld [vmem:[%s1 + $0x348] sm:$0xff]
  %v131 = vld [vmem:[%s1 + $0x350] sm:$0xff]
  %v132 = vld [vmem:[%s1 + $0x358] sm:$0xff]
  %v133 = vld [vmem:[%s1 + $0x360] sm:$0xff]
  %v134 = vld [vmem:[%s1 + $0x368] sm:$0xff]
  %v135 = vld [vmem:[%s1 + $0x370] sm:$0xff]
  %v136 = vld [vmem:[%s1 + $0x378] sm:$0xff]
  %v137 = vld [vmem:[%s1 + $0x380] sm:$0xff]
  %v138 = vld [vmem:[%s1 + $0x388] sm:$0xff]
  %v139 = vld [vmem:[%s1 + $0x390] sm:$0xff]
  %v140 = vld [vmem:[%s1 + $0x398] sm:$0xff]
  %v141 = vld [vmem:[%s1 + $0x3a0] sm:$0xff]
  %v142 = vld [vmem:[%s1 + $0x3a8] sm:$0xff]
  %v143 = vld [vmem:[%s1 + $0x3b0] sm:$0xff]
  %v144 = vld [vmem:[%s1 + $0x3b8] sm:$0xff]
  %v145 = vld [vmem:[%s1 + $0x3c0] sm:$0xff]
  %v146 = vld [vmem:[%s1 + $0x3c8] sm:$0xff]
  %v147 = vld [vmem:[%s1 + $0x3d0] sm:$0xff]
  %v148 = vld [vmem:[%s1 + $0x3d8] sm:$0xff]
  %v149 = vld [vmem:[%s1 + $0x3e0] sm:$0xff]
  %v150 = vld [vmem:[%s1 + $0x3e8] sm:$0xff]
  %v151 = vld [vmem:[%s1 + $0x3f0] sm:$0xff]
  %v152 = vld [vmem:[%s1 + $0x3f8] sm:$0xff]
  %v153 = vld [vmem:[%s1 + $0x400] sm:$0xff]
  %v154 = vld [vmem:[%s1 + $0x408] sm:$0xff]
  %v155 = vld [vmem:[%s1 + $0x410] sm:$0xff]
  %v156 = vld [vmem:[%s1 + $0x418] sm:$0xff]
  %v157 = vld [vmem:[%s1 + $0x420] sm:$0xff]
  %v158 = vld [vmem:[%s1 + $0x428] sm:$0xff]
  %v159 = vld [vmem:[%s1 + $0x430] sm:$0xff]
  %v160 = vld [vmem:[%s1 + $0x438] sm:$0xff]
  %v161 = vld [vmem:[%s1 + $0x440] sm:$0xff]
  %v162 = vld [vmem:[%s1 + $0x448] sm:$0xff]
  %v163 = vld [vmem:[%s1 + $0x450] sm:$0xff]
  %v164 = vld [vmem:[%s1 + $0x458] sm:$0xff]
  %v165 = vld [vmem:[%s1 + $0x460] sm:$0xff]
  %v166 = vld [vmem:[%s1 + $0x468] sm:$0xff]
  %v167 = vld [vmem:[%s1 + $0x470] sm:$0xff]
  %v168 = vld [vmem:[%s1 + $0x478] sm:$0xff]
  %v169 = vld [vmem:[%s1 + $0x480] sm:$0xff]
  %v170 = vld [vmem:[%s1 + $0x488] sm:$0xff]
  %v171 = vld [vmem:[%s1 + $0x490] sm:$0xff]
  %v172 = vld [vmem:[%s1 + $0x498] sm:$0xff]
  %v173 = vld [vmem:[%s1 + $0x4a0] sm:$0xff]
  %v174 = vld [vmem:[%s1 + $0x4a8] sm:$0xff]
  %v175 = vld [vmem:[%s1 + $0x4b0] sm:$0xff]
  %v176 = vld [vmem:[%s1 + $0x4b8] sm:$0xff]
  %v177 = vld [vmem:[%s1 + $0x4c0] sm:$0xff]
  %v178 = vld [vmem:[%s1 + $0x4c8] sm:$0xff]
  %v179 = vld [vmem:[%s1 + $0x4d0] sm:$0xff]
  %v180 = vld [vmem:[%s1 + $0x4d8] sm:$0xff]
  %v181 = vld [vmem:[%s1 + $0x4e0] sm:$0xff]
  %v182 = vld [vmem:[%s1 + $0x4e8] sm:$0xff]
  %v183 = vld [vmem:[%s1 + $0x4f0] sm:$0xff]
  %v184 = vld [vmem:[%s1 + $0x4f8] sm:$0xff]
  %v185 = vld [vmem:[%s1 + $0x500] sm:$0xff]
  %v186 = vld [vmem:[%s1 + $0x508] sm:$0xff]
  %v187 = vld [vmem:[%s1 + $0x510] sm:$0xff]
  %v188 = vld [vmem:[%s1 + $0x518] sm:$0xff]
  %v189 = vld [vmem:[%s1 + $0x520] sm:$0xff]
  %v190 = vld [vmem:[%s1 + $0x528] sm:$0xff]
  %v191 = vld [vmem:[%s1 + $0x530] sm:$0xff]
  %v192 = vld [vmem:[%s1 + $0x538] sm:$0xff]
  %v193 = vld [vmem:[%s1 + $0x540] sm:$0xff]
  %v194 = vld [vmem:[%s1 + $0x548] sm:$0xff]
  %v195 = vld [vmem:[%s1 + $0x550] sm:$0xff]
  %v196 = vld [vmem:[%s1 + $0x558] sm:$0xff]
  %v197 = vld [vmem:[%s1 + $0x560] sm:$0xff]
  %v198 = vld [vmem:[%s1 + $0x568] sm:$0xff]
  %v199 = vld [vmem:[%s1 + $0x570] sm:$0xff]
  %v200 = vld [vmem:[%s1 + $0x578] sm:$0xff]
  %v201 = vld [vmem:[%s1 + $0x580] sm:$0xff]
  %v202 = vld [vmem:[%s1 + $0x588] sm:$0xff]
  %v203 = vld [vmem:[%s1 + $0x590] sm:$0xff]
  %v204 = vld [vmem:[%s1 + $0x598] sm:$0xff]
  %v205 = vld [vmem:[%s1 + $0x5a0] sm:$0xff]
  %v206 = vld [vmem:[%s1 + $0x5a8] sm:$0xff]
  %v207 = vld [vmem:[%s1 + $0x5b0] sm:$0xff]
  %v208 = vld [vmem:[%s1 + $0x5b8] sm:$0xff]
  %v209 = vld [vmem:[%s1 + $0x5c0] sm:$0xff]
  %v210 = vld [vmem:[%s1 + $0x5c8] sm:$0xff]
  %v211 = vld [vmem:[%s1 + $0x5d0] sm:$0xff]
  %v212 = vld [vmem:[%s1 + $0x5d8] sm:$0xff]
  %v213 = vld [vmem:[%s1 + $0x5e0] sm:$0xff]
  %v214 = vld [vmem:[%s1 + $0x5e8] sm:$0xff]
  %v215 = vld [vmem:[%s1 + $0x5f0] sm:$0xff]
  %v216 = vld [vmem:[%s1 + $0x5f8] sm:$0xff]
  %v217 = vld [vmem:[%s1 + $0x600] sm:$0xff]
  %v218 = vld [vmem:[%s1 + $0x608] sm:$0xff]
  %v219 = vld [vmem:[%s1 + $0x610] sm:$0xff]
  %v220 = vld [vmem:[%s1 + $0x618] sm:$0xff]
  %v221 = vld [vmem:[%s1 + $0x620] sm:$0xff]
  %v222 = vld [vmem:[%s1 + $0x628] sm:$0xff]
  %v223 = vld [vmem:[%s1 + $0x630] sm:$0xff]
  %v224 = vld [vmem:[%s1 + $0x638] sm:$0xff]
  %v225 = vld [vmem:[%s2] sm:$0xf]
  %v227 = vlaneseq
  %v228 = vshrl.u32 %v227, 7
  %v229 = vsub.s32 0, %v228
  %v230 = vrot.slane %v225, %v229
  %v231 = vlaneseq
  %v232 = vshrl.u32 %v231, 7
  %v233 = vsub.s32 1, %v232
  %v234 = vrot.slane %v225, %v233
  %v235 = vlaneseq
  %v236 = vshrl.u32 %v235, 7
  %v237 = vsub.s32 2, %v236
  %v238 = vrot.slane %v225, %v237
  %v239 = vlaneseq
  %v240 = vshrl.u32 %v239, 7
  %v241 = vsub.s32 3, %v240
  %v242 = vrot.slane %v225, %v241
  %v251 = vunpack.c.l.b16 %v21
  %v252 = vunpack.c.h.b16 %v21
  %v253 = vunpack.c.l.b16 %v22
  %v254 = vunpack.c.h.b16 %v22
  %v255 = vunpack.c.l.b16 %v23
  %v256 = vunpack.c.h.b16 %v23
  %v257 = vunpack.c.l.b16 %v24
  %v258 = vpack.c.b16 %v251, %v251
  %v259 = vpack.c.b16 %v252, %v252
  %v260 = vpack.c.b16 %v253, %v253
  %v261 = vpack.c.b16 %v254, %v254
  %v262 = vpack.c.b16 %v255, %v255
  %v263 = vpack.c.b16 %v256, %v256
  %v264 = vpack.c.b16 %v257, %v257
  %v471 = vunpack.c.l.b16 %v25
  %v472 = vunpack.c.h.b16 %v25
  %v473 = vunpack.c.l.b16 %v26
  %v474 = vunpack.c.h.b16 %v26
  %v475 = vunpack.c.l.b16 %v27
  %v476 = vunpack.c.h.b16 %v27
  %v477 = vunpack.c.l.b16 %v28
  %v478 = vunpack.c.h.b16 %v28
  %v479 = vunpack.c.l.b16 %v29
  %v480 = vunpack.c.h.b16 %v29
  %v481 = vunpack.c.l.b16 %v30
  %v482 = vunpack.c.h.b16 %v30
  %v483 = vunpack.c.l.b16 %v31
  %v484 = vunpack.c.h.b16 %v31
  %v485 = vunpack.c.l.b16 %v32
  %v486 = vunpack.c.h.b16 %v32
  %v487 = vunpack.c.l.b16 %v33
  %v488 = vunpack.c.h.b16 %v33
  %v489 = vunpack.c.l.b16 %v34
  %v490 = vunpack.c.h.b16 %v34
  %v491 = vunpack.c.l.b16 %v35
  %v492 = vunpack.c.h.b16 %v35
  %v493 = vunpack.c.l.b16 %v36
  %v494 = vunpack.c.h.b16 %v36
  %v495 = vunpack.c.l.b16 %v37
  %v496 = vunpack.c.h.b16 %v37
  %v497 = vunpack.c.l.b16 %v38
  %v498 = vunpack.c.h.b16 %v38
  %v499 = vunpack.c.l.b16 %v39
  %v500 = vunpack.c.h.b16 %v39
  %v501 = vunpack.c.l.b16 %v40
  %v502 = vunpack.c.h.b16 %v40
  %v503 = vunpack.c.l.b16 %v41
  %v504 = vunpack.c.h.b16 %v41
  %v505 = vunpack.c.l.b16 %v42
  %v506 = vunpack.c.h.b16 %v42
  %v507 = vunpack.c.l.b16 %v43
  %v508 = vunpack.c.h.b16 %v43
  %v509 = vunpack.c.l.b16 %v44
  %v510 = vunpack.c.h.b16 %v44
  %v511 = vunpack.c.l.b16 %v45
  %v512 = vunpack.c.h.b16 %v45
  %v513 = vunpack.c.l.b16 %v46
  %v514 = vunpack.c.h.b16 %v46
  %v515 = vunpack.c.l.b16 %v47
  %v516 = vunpack.c.h.b16 %v47
  %v517 = vunpack.c.l.b16 %v48
  %v518 = vunpack.c.h.b16 %v48
  %v519 = vunpack.c.l.b16 %v49
  %v520 = vunpack.c.h.b16 %v49
  %v521 = vunpack.c.l.b16 %v50
  %v522 = vunpack.c.h.b16 %v50
  %v523 = vunpack.c.l.b16 %v51
  %v524 = vunpack.c.h.b16 %v51
  %v525 = vunpack.c.l.b16 %v52
  %v526 = vunpack.c.h.b16 %v52
  %v527 = vunpack.c.l.b16 %v53
  %v528 = vunpack.c.h.b16 %v53
  %v529 = vunpack.c.l.b16 %v54
  %v530 = vunpack.c.h.b16 %v54
  %v531 = vunpack.c.l.b16 %v55
  %v532 = vunpack.c.h.b16 %v55
  %v533 = vunpack.c.l.b16 %v56
  %v534 = vunpack.c.h.b16 %v56
  %v535 = vunpack.c.l.b16 %v57
  %v536 = vunpack.c.h.b16 %v57
  %v537 = vunpack.c.l.b16 %v58
  %v538 = vunpack.c.h.b16 %v58
  %v539 = vunpack.c.l.b16 %v59
  %v540 = vunpack.c.h.b16 %v59
  %v541 = vunpack.c.l.b16 %v60
  %v542 = vunpack.c.h.b16 %v60
  %v543 = vunpack.c.l.b16 %v61
  %v544 = vunpack.c.h.b16 %v61
  %v545 = vunpack.c.l.b16 %v62
  %v546 = vunpack.c.h.b16 %v62
  %v547 = vunpack.c.l.b16 %v63
  %v548 = vunpack.c.h.b16 %v63
  %v549 = vunpack.c.l.b16 %v64
  %v550 = vunpack.c.h.b16 %v64
  %v551 = vunpack.c.l.b16 %v65
  %v552 = vunpack.c.h.b16 %v65
  %v553 = vunpack.c.l.b16 %v66
  %v554 = vunpack.c.h.b16 %v66
  %v555 = vunpack.c.l.b16 %v67
  %v556 = vunpack.c.h.b16 %v67
  %v557 = vunpack.c.l.b16 %v68
  %v558 = vunpack.c.h.b16 %v68
  %v559 = vunpack.c.l.b16 %v69
  %v560 = vunpack.c.h.b16 %v69
  %v561 = vunpack.c.l.b16 %v70
  %v562 = vunpack.c.h.b16 %v70
  %v563 = vunpack.c.l.b16 %v71
  %v564 = vunpack.c.h.b16 %v71
  %v565 = vunpack.c.l.b16 %v72
  %v566 = vunpack.c.h.b16 %v72
  %v567 = vunpack.c.l.b16 %v73
  %v568 = vunpack.c.h.b16 %v73
  %v569 = vunpack.c.l.b16 %v74
  %v570 = vunpack.c.h.b16 %v74
  %v571 = vunpack.c.l.b16 %v75
  %v572 = vunpack.c.h.b16 %v75
  %v573 = vunpack.c.l.b16 %v76
  %v574 = vunpack.c.h.b16 %v76
  %v575 = vunpack.c.l.b16 %v77
  %v576 = vunpack.c.h.b16 %v77
  %v577 = vunpack.c.l.b16 %v78
  %v578 = vunpack.c.h.b16 %v78
  %v579 = vunpack.c.l.b16 %v79
  %v580 = vunpack.c.h.b16 %v79
  %v581 = vunpack.c.l.b16 %v80
  %v582 = vunpack.c.h.b16 %v80
  %v583 = vunpack.c.l.b16 %v81
  %v584 = vunpack.c.h.b16 %v81
  %v585 = vunpack.c.l.b16 %v82
  %v586 = vunpack.c.h.b16 %v82
  %v587 = vunpack.c.l.b16 %v83
  %v588 = vunpack.c.h.b16 %v83
  %v589 = vunpack.c.l.b16 %v84
  %v590 = vunpack.c.h.b16 %v84
  %v591 = vunpack.c.l.b16 %v85
  %v592 = vunpack.c.h.b16 %v85
  %v593 = vunpack.c.l.b16 %v86
  %v594 = vunpack.c.h.b16 %v86
  %v595 = vunpack.c.l.b16 %v87
  %v596 = vunpack.c.h.b16 %v87
  %v597 = vunpack.c.l.b16 %v88
  %v598 = vunpack.c.h.b16 %v88
  %v599 = vunpack.c.l.b16 %v89
  %v600 = vunpack.c.h.b16 %v89
  %v601 = vunpack.c.l.b16 %v90
  %v602 = vunpack.c.h.b16 %v90
  %v603 = vunpack.c.l.b16 %v91
  %v604 = vunpack.c.h.b16 %v91
  %v605 = vunpack.c.l.b16 %v92
  %v606 = vunpack.c.h.b16 %v92
  %v607 = vunpack.c.l.b16 %v93
  %v608 = vunpack.c.h.b16 %v93
  %v609 = vunpack.c.l.b16 %v94
  %v610 = vunpack.c.h.b16 %v94
  %v611 = vunpack.c.l.b16 %v95
  %v612 = vunpack.c.h.b16 %v95
  %v613 = vunpack.c.l.b16 %v96
  %v614 = vunpack.c.h.b16 %v96
  %v615 = vunpack.c.l.b16 %v97
  %v616 = vunpack.c.h.b16 %v97
  %v617 = vunpack.c.l.b16 %v98
  %v618 = vunpack.c.h.b16 %v98
  %v619 = vunpack.c.l.b16 %v99
  %v620 = vunpack.c.h.b16 %v99
  %v621 = vunpack.c.l.b16 %v100
  %v622 = vunpack.c.h.b16 %v100
  %v623 = vunpack.c.l.b16 %v101
  %v624 = vunpack.c.h.b16 %v101
  %v625 = vunpack.c.l.b16 %v102
  %v626 = vunpack.c.h.b16 %v102
  %v627 = vunpack.c.l.b16 %v103
  %v628 = vunpack.c.h.b16 %v103
  %v629 = vunpack.c.l.b16 %v104
  %v630 = vunpack.c.h.b16 %v104
  %v631 = vunpack.c.l.b16 %v105
  %v632 = vunpack.c.h.b16 %v105
  %v633 = vunpack.c.l.b16 %v106
  %v634 = vunpack.c.h.b16 %v106
  %v635 = vunpack.c.l.b16 %v107
  %v636 = vunpack.c.h.b16 %v107
  %v637 = vunpack.c.l.b16 %v108
  %v638 = vunpack.c.h.b16 %v108
  %v639 = vunpack.c.l.b16 %v109
  %v640 = vunpack.c.h.b16 %v109
  %v641 = vunpack.c.l.b16 %v110
  %v642 = vunpack.c.h.b16 %v110
  %v643 = vunpack.c.l.b16 %v111
  %v644 = vunpack.c.h.b16 %v111
  %v645 = vunpack.c.l.b16 %v112
  %v646 = vunpack.c.h.b16 %v112
  %v647 = vunpack.c.l.b16 %v113
  %v648 = vunpack.c.h.b16 %v113
  %v649 = vunpack.c.l.b16 %v114
  %v650 = vunpack.c.h.b16 %v114
  %v651 = vunpack.c.l.b16 %v115
  %v652 = vunpack.c.h.b16 %v115
  %v653 = vunpack.c.l.b16 %v116
  %v654 = vunpack.c.h.b16 %v116
  %v655 = vunpack.c.l.b16 %v117
  %v656 = vunpack.c.h.b16 %v117
  %v657 = vunpack.c.l.b16 %v118
  %v658 = vunpack.c.h.b16 %v118
  %v659 = vunpack.c.l.b16 %v119
  %v660 = vunpack.c.h.b16 %v119
  %v661 = vunpack.c.l.b16 %v120
  %v662 = vunpack.c.h.b16 %v120
  %v663 = vunpack.c.l.b16 %v121
  %v664 = vunpack.c.h.b16 %v121
  %v665 = vunpack.c.l.b16 %v122
  %v666 = vunpack.c.h.b16 %v122
  %v667 = vunpack.c.l.b16 %v123
  %v668 = vunpack.c.h.b16 %v123
  %v669 = vunpack.c.l.b16 %v124
  %v670 = vunpack.c.h.b16 %v124
  %v671 = vunpack.c.l.b16 %v125
  %v672 = vunpack.c.h.b16 %v125
  %v673 = vunpack.c.l.b16 %v126
  %v674 = vunpack.c.h.b16 %v126
  %v675 = vunpack.c.l.b16 %v127
  %v676 = vunpack.c.h.b16 %v127
  %v677 = vunpack.c.l.b16 %v128
  %v678 = vunpack.c.h.b16 %v128
  %v679 = vunpack.c.l.b16 %v129
  %v680 = vunpack.c.h.b16 %v129
  %v681 = vunpack.c.l.b16 %v130
  %v682 = vunpack.c.h.b16 %v130
  %v683 = vunpack.c.l.b16 %v131
  %v684 = vunpack.c.h.b16 %v131
  %v685 = vunpack.c.l.b16 %v132
  %v686 = vunpack.c.h.b16 %v132
  %v687 = vunpack.c.l.b16 %v133
  %v688 = vunpack.c.h.b16 %v133
  %v689 = vunpack.c.l.b16 %v134
  %v690 = vunpack.c.h.b16 %v134
  %v691 = vunpack.c.l.b16 %v135
  %v692 = vunpack.c.h.b16 %v135
  %v693 = vunpack.c.l.b16 %v136
  %v694 = vunpack.c.h.b16 %v136
  %v695 = vunpack.c.l.b16 %v137
  %v696 = vunpack.c.h.b16 %v137
  %v697 = vunpack.c.l.b16 %v138
  %v698 = vunpack.c.h.b16 %v138
  %v699 = vunpack.c.l.b16 %v139
  %v700 = vunpack.c.h.b16 %v139
  %v701 = vunpack.c.l.b16 %v140
  %v702 = vunpack.c.h.b16 %v140
  %v703 = vunpack.c.l.b16 %v141
  %v704 = vunpack.c.h.b16 %v141
  %v705 = vunpack.c.l.b16 %v142
  %v706 = vunpack.c.h.b16 %v142
  %v707 = vunpack.c.l.b16 %v143
  %v708 = vunpack.c.h.b16 %v143
  %v709 = vunpack.c.l.b16 %v144
  %v710 = vunpack.c.h.b16 %v144
  %v711 = vunpack.c.l.b16 %v145
  %v712 = vunpack.c.h.b16 %v145
  %v713 = vunpack.c.l.b16 %v146
  %v714 = vunpack.c.h.b16 %v146
  %v715 = vunpack.c.l.b16 %v147
  %v716 = vunpack.c.h.b16 %v147
  %v717 = vunpack.c.l.b16 %v148
  %v718 = vunpack.c.h.b16 %v148
  %v719 = vunpack.c.l.b16 %v149
  %v720 = vunpack.c.h.b16 %v149
  %v721 = vunpack.c.l.b16 %v150
  %v722 = vunpack.c.h.b16 %v150
  %v723 = vunpack.c.l.b16 %v151
  %v724 = vunpack.c.h.b16 %v151
  %v725 = vunpack.c.l.b16 %v152
  %v726 = vunpack.c.h.b16 %v152
  %v727 = vunpack.c.l.b16 %v153
  %v728 = vunpack.c.h.b16 %v153
  %v729 = vunpack.c.l.b16 %v154
  %v730 = vunpack.c.h.b16 %v154
  %v731 = vunpack.c.l.b16 %v155
  %v732 = vunpack.c.h.b16 %v155
  %v733 = vunpack.c.l.b16 %v156
  %v734 = vunpack.c.h.b16 %v156
  %v735 = vunpack.c.l.b16 %v157
  %v736 = vunpack.c.h.b16 %v157
  %v737 = vunpack.c.l.b16 %v158
  %v738 = vunpack.c.h.b16 %v158
  %v739 = vunpack.c.l.b16 %v159
  %v740 = vunpack.c.h.b16 %v159
  %v741 = vunpack.c.l.b16 %v160
  %v742 = vunpack.c.h.b16 %v160
  %v743 = vunpack.c.l.b16 %v161
  %v744 = vunpack.c.h.b16 %v161
  %v745 = vunpack.c.l.b16 %v162
  %v746 = vunpack.c.h.b16 %v162
  %v747 = vunpack.c.l.b16 %v163
  %v748 = vunpack.c.h.b16 %v163
  %v749 = vunpack.c.l.b16 %v164
  %v750 = vunpack.c.h.b16 %v164
  %v751 = vunpack.c.l.b16 %v165
  %v752 = vunpack.c.h.b16 %v165
  %v753 = vunpack.c.l.b16 %v166
  %v754 = vunpack.c.h.b16 %v166
  %v755 = vunpack.c.l.b16 %v167
  %v756 = vunpack.c.h.b16 %v167
  %v757 = vunpack.c.l.b16 %v168
  %v758 = vunpack.c.h.b16 %v168
  %v759 = vunpack.c.l.b16 %v169
  %v760 = vunpack.c.h.b16 %v169
  %v761 = vunpack.c.l.b16 %v170
  %v762 = vunpack.c.h.b16 %v170
  %v763 = vunpack.c.l.b16 %v171
  %v764 = vunpack.c.h.b16 %v171
  %v765 = vunpack.c.l.b16 %v172
  %v766 = vunpack.c.h.b16 %v172
  %v767 = vunpack.c.l.b16 %v173
  %v768 = vunpack.c.h.b16 %v173
  %v769 = vunpack.c.l.b16 %v174
  %v770 = vunpack.c.h.b16 %v174
  %v771 = vunpack.c.l.b16 %v175
  %v772 = vunpack.c.h.b16 %v175
  %v773 = vunpack.c.l.b16 %v176
  %v774 = vunpack.c.h.b16 %v176
  %v775 = vunpack.c.l.b16 %v177
  %v776 = vunpack.c.h.b16 %v177
  %v777 = vunpack.c.l.b16 %v178
  %v778 = vunpack.c.h.b16 %v178
  %v779 = vunpack.c.l.b16 %v179
  %v780 = vunpack.c.h.b16 %v179
  %v781 = vunpack.c.l.b16 %v180
  %v782 = vunpack.c.h.b16 %v180
  %v783 = vunpack.c.l.b16 %v181
  %v784 = vunpack.c.h.b16 %v181
  %v785 = vunpack.c.l.b16 %v182
  %v786 = vunpack.c.h.b16 %v182
  %v787 = vunpack.c.l.b16 %v183
  %v788 = vunpack.c.h.b16 %v183
  %v789 = vunpack.c.l.b16 %v184
  %v790 = vunpack.c.h.b16 %v184
  %v791 = vunpack.c.l.b16 %v185
  %v792 = vunpack.c.h.b16 %v185
  %v793 = vunpack.c.l.b16 %v186
  %v794 = vunpack.c.h.b16 %v186
  %v795 = vunpack.c.l.b16 %v187
  %v796 = vunpack.c.h.b16 %v187
  %v797 = vunpack.c.l.b16 %v188
  %v798 = vunpack.c.h.b16 %v188
  %v799 = vunpack.c.l.b16 %v189
  %v800 = vunpack.c.h.b16 %v189
  %v801 = vunpack.c.l.b16 %v190
  %v802 = vunpack.c.h.b16 %v190
  %v803 = vunpack.c.l.b16 %v191
  %v804 = vunpack.c.h.b16 %v191
  %v805 = vunpack.c.l.b16 %v192
  %v806 = vunpack.c.h.b16 %v192
  %v807 = vunpack.c.l.b16 %v193
  %v808 = vunpack.c.h.b16 %v193
  %v809 = vunpack.c.l.b16 %v194
  %v810 = vunpack.c.h.b16 %v194
  %v811 = vunpack.c.l.b16 %v195
  %v812 = vunpack.c.h.b16 %v195
  %v813 = vunpack.c.l.b16 %v196
  %v814 = vunpack.c.h.b16 %v196
  %v815 = vunpack.c.l.b16 %v197
  %v816 = vunpack.c.h.b16 %v197
  %v817 = vunpack.c.l.b16 %v198
  %v818 = vunpack.c.h.b16 %v198
  %v819 = vunpack.c.l.b16 %v199
  %v820 = vunpack.c.h.b16 %v199
  %v821 = vunpack.c.l.b16 %v200
  %v822 = vunpack.c.h.b16 %v200
  %v823 = vunpack.c.l.b16 %v201
  %v824 = vunpack.c.h.b16 %v201
  %v825 = vunpack.c.l.b16 %v202
  %v826 = vunpack.c.h.b16 %v202
  %v827 = vunpack.c.l.b16 %v203
  %v828 = vunpack.c.h.b16 %v203
  %v829 = vunpack.c.l.b16 %v204
  %v830 = vunpack.c.h.b16 %v204
  %v831 = vunpack.c.l.b16 %v205
  %v832 = vunpack.c.h.b16 %v205
  %v833 = vunpack.c.l.b16 %v206
  %v834 = vunpack.c.h.b16 %v206
  %v835 = vunpack.c.l.b16 %v207
  %v836 = vunpack.c.h.b16 %v207
  %v837 = vunpack.c.l.b16 %v208
  %v838 = vunpack.c.h.b16 %v208
  %v839 = vunpack.c.l.b16 %v209
  %v840 = vunpack.c.h.b16 %v209
  %v841 = vunpack.c.l.b16 %v210
  %v842 = vunpack.c.h.b16 %v210
  %v843 = vunpack.c.l.b16 %v211
  %v844 = vunpack.c.h.b16 %v211
  %v845 = vunpack.c.l.b16 %v212
  %v846 = vunpack.c.h.b16 %v212
  %v847 = vunpack.c.l.b16 %v213
  %v848 = vunpack.c.h.b16 %v213
  %v849 = vunpack.c.l.b16 %v214
  %v850 = vunpack.c.h.b16 %v214
  %v851 = vunpack.c.l.b16 %v215
  %v852 = vunpack.c.h.b16 %v215
  %v853 = vunpack.c.l.b16 %v216
  %v854 = vunpack.c.h.b16 %v216
  %v855 = vunpack.c.l.b16 %v217
  %v856 = vunpack.c.h.b16 %v217
  %v857 = vunpack.c.l.b16 %v218
  %v858 = vunpack.c.h.b16 %v218
  %v859 = vunpack.c.l.b16 %v219
  %v860 = vunpack.c.h.b16 %v219
  %v861 = vunpack.c.l.b16 %v220
  %v862 = vunpack.c.h.b16 %v220
  %v863 = vunpack.c.l.b16 %v221
  %v864 = vunpack.c.h.b16 %v221
  %v865 = vunpack.c.l.b16 %v222
  %v866 = vunpack.c.h.b16 %v222
  %v867 = vunpack.c.l.b16 %v223
  %v868 = vunpack.c.h.b16 %v223
  %v869 = vunpack.c.l.b16 %v224
  %v870 = vunpack.c.h.b16 %v224
  %v871 = vpack.c.b16 %v475, %v471
  %v872 = vpack.c.b16 %v476, %v472
  %v873 = vpack.c.b16 %v477, %v473
  %v874 = vpack.c.b16 %v478, %v474
  %v875 = vpack.c.b16 %v483, %v479
  %v876 = vpack.c.b16 %v484, %v480
  %v877 = vpack.c.b16 %v485, %v481
  %v878 = vpack.c.b16 %v486, %v482
  %v879 = vpack.c.b16 %v491, %v487
  %v880 = vpack.c.b16 %v492, %v488
  %v881 = vpack.c.b16 %v493, %v489
  %v882 = vpack.c.b16 %v494, %v490
  %v883 = vpack.c.b16 %v499, %v495
  %v884 = vpack.c.b16 %v500, %v496
  %v885 = vpack.c.b16 %v501, %v497
  %v886 = vpack.c.b16 %v502, %v498
  %v887 = vpack.c.b16 %v507, %v503
  %v888 = vpack.c.b16 %v508, %v504
  %v889 = vpack.c.b16 %v509, %v505
  %v890 = vpack.c.b16 %v510, %v506
  %v891 = vpack.c.b16 %v515, %v511
  %v892 = vpack.c.b16 %v516, %v512
  %v893 = vpack.c.b16 %v517, %v513
  %v894 = vpack.c.b16 %v518, %v514
  %v895 = vpack.c.b16 %v523, %v519
  %v896 = vpack.c.b16 %v524, %v520
  %v897 = vpack.c.b16 %v525, %v521
  %v898 = vpack.c.b16 %v526, %v522
  %v899 = vpack.c.b16 %v531, %v527
  %v900 = vpack.c.b16 %v532, %v528
  %v901 = vpack.c.b16 %v533, %v529
  %v902 = vpack.c.b16 %v534, %v530
  %v903 = vpack.c.b16 %v539, %v535
  %v904 = vpack.c.b16 %v540, %v536
  %v905 = vpack.c.b16 %v541, %v537
  %v906 = vpack.c.b16 %v542, %v538
  %v907 = vpack.c.b16 %v547, %v543
  %v908 = vpack.c.b16 %v548, %v544
  %v909 = vpack.c.b16 %v549, %v545
  %v910 = vpack.c.b16 %v550, %v546
  %v911 = vpack.c.b16 %v555, %v551
  %v912 = vpack.c.b16 %v556, %v552
  %v913 = vpack.c.b16 %v557, %v553
  %v914 = vpack.c.b16 %v558, %v554
  %v915 = vpack.c.b16 %v563, %v559
  %v916 = vpack.c.b16 %v564, %v560
  %v917 = vpack.c.b16 %v565, %v561
  %v918 = vpack.c.b16 %v566, %v562
  %v919 = vpack.c.b16 %v571, %v567
  %v920 = vpack.c.b16 %v572, %v568
  %v921 = vpack.c.b16 %v573, %v569
  %v922 = vpack.c.b16 %v574, %v570
  %v923 = vpack.c.b16 %v579, %v575
  %v924 = vpack.c.b16 %v580, %v576
  %v925 = vpack.c.b16 %v581, %v577
  %v926 = vpack.c.b16 %v582, %v578
  %v927 = vpack.c.b16 %v587, %v583
  %v928 = vpack.c.b16 %v588, %v584
  %v929 = vpack.c.b16 %v589, %v585
  %v930 = vpack.c.b16 %v590, %v586
  %v931 = vpack.c.b16 %v595, %v591
  %v932 = vpack.c.b16 %v596, %v592
  %v933 = vpack.c.b16 %v597, %v593
  %v934 = vpack.c.b16 %v598, %v594
  %v935 = vpack.c.b16 %v603, %v599
  %v936 = vpack.c.b16 %v604, %v600
  %v937 = vpack.c.b16 %v605, %v601
  %v938 = vpack.c.b16 %v606, %v602
  %v939 = vpack.c.b16 %v611, %v607
  %v940 = vpack.c.b16 %v612, %v608
  %v941 = vpack.c.b16 %v613, %v609
  %v942 = vpack.c.b16 %v614, %v610
  %v943 = vpack.c.b16 %v619, %v615
  %v944 = vpack.c.b16 %v620, %v616
  %v945 = vpack.c.b16 %v621, %v617
  %v946 = vpack.c.b16 %v622, %v618
  %v947 = vpack.c.b16 %v627, %v623
  %v948 = vpack.c.b16 %v628, %v624
  %v949 = vpack.c.b16 %v629, %v625
  %v950 = vpack.c.b16 %v630, %v626
  %v951 = vpack.c.b16 %v635, %v631
  %v952 = vpack.c.b16 %v636, %v632
  %v953 = vpack.c.b16 %v637, %v633
  %v954 = vpack.c.b16 %v638, %v634
  %v955 = vpack.c.b16 %v643, %v639
  %v956 = vpack.c.b16 %v644, %v640
  %v957 = vpack.c.b16 %v645, %v641
  %v958 = vpack.c.b16 %v646, %v642
  %v959 = vpack.c.b16 %v651, %v647
  %v960 = vpack.c.b16 %v652, %v648
  %v961 = vpack.c.b16 %v653, %v649
  %v962 = vpack.c.b16 %v654, %v650
  %v963 = vpack.c.b16 %v659, %v655
  %v964 = vpack.c.b16 %v660, %v656
  %v965 = vpack.c.b16 %v661, %v657
  %v966 = vpack.c.b16 %v662, %v658
  %v967 = vpack.c.b16 %v667, %v663
  %v968 = vpack.c.b16 %v668, %v664
  %v969 = vpack.c.b16 %v669, %v665
  %v970 = vpack.c.b16 %v670, %v666
  %v971 = vpack.c.b16 %v675, %v671
  %v972 = vpack.c.b16 %v676, %v672
  %v973 = vpack.c.b16 %v677, %v673
  %v974 = vpack.c.b16 %v678, %v674
  %v975 = vpack.c.b16 %v683, %v679
  %v976 = vpack.c.b16 %v684, %v680
  %v977 = vpack.c.b16 %v685, %v681
  %v978 = vpack.c.b16 %v686, %v682
  %v979 = vpack.c.b16 %v691, %v687
  %v980 = vpack.c.b16 %v692, %v688
  %v981 = vpack.c.b16 %v693, %v689
  %v982 = vpack.c.b16 %v694, %v690
  %v983 = vpack.c.b16 %v699, %v695
  %v984 = vpack.c.b16 %v700, %v696
  %v985 = vpack.c.b16 %v701, %v697
  %v986 = vpack.c.b16 %v702, %v698
  %v987 = vpack.c.b16 %v707, %v703
  %v988 = vpack.c.b16 %v708, %v704
  %v989 = vpack.c.b16 %v709, %v705
  %v990 = vpack.c.b16 %v710, %v706
  %v991 = vpack.c.b16 %v715, %v711
  %v992 = vpack.c.b16 %v716, %v712
  %v993 = vpack.c.b16 %v717, %v713
  %v994 = vpack.c.b16 %v718, %v714
  %v995 = vpack.c.b16 %v723, %v719
  %v996 = vpack.c.b16 %v724, %v720
  %v997 = vpack.c.b16 %v725, %v721
  %v998 = vpack.c.b16 %v726, %v722
  %v999 = vpack.c.b16 %v731, %v727
  %v1000 = vpack.c.b16 %v732, %v728
  %v1001 = vpack.c.b16 %v733, %v729
  %v1002 = vpack.c.b16 %v734, %v730
  %v1003 = vpack.c.b16 %v739, %v735
  %v1004 = vpack.c.b16 %v740, %v736
  %v1005 = vpack.c.b16 %v741, %v737
  %v1006 = vpack.c.b16 %v742, %v738
  %v1007 = vpack.c.b16 %v747, %v743
  %v1008 = vpack.c.b16 %v748, %v744
  %v1009 = vpack.c.b16 %v749, %v745
  %v1010 = vpack.c.b16 %v750, %v746
  %v1011 = vpack.c.b16 %v755, %v751
  %v1012 = vpack.c.b16 %v756, %v752
  %v1013 = vpack.c.b16 %v757, %v753
  %v1014 = vpack.c.b16 %v758, %v754
  %v1015 = vpack.c.b16 %v763, %v759
  %v1016 = vpack.c.b16 %v764, %v760
  %v1017 = vpack.c.b16 %v765, %v761
  %v1018 = vpack.c.b16 %v766, %v762
  %v1019 = vpack.c.b16 %v771, %v767
  %v1020 = vpack.c.b16 %v772, %v768
  %v1021 = vpack.c.b16 %v773, %v769
  %v1022 = vpack.c.b16 %v774, %v770
  %v1023 = vpack.c.b16 %v779, %v775
  %v1024 = vpack.c.b16 %v780, %v776
  %v1025 = vpack.c.b16 %v781, %v777
  %v1026 = vpack.c.b16 %v782, %v778
  %v1027 = vpack.c.b16 %v787, %v783
  %v1028 = vpack.c.b16 %v788, %v784
  %v1029 = vpack.c.b16 %v789, %v785
  %v1030 = vpack.c.b16 %v790, %v786
  %v1031 = vpack.c.b16 %v795, %v791
  %v1032 = vpack.c.b16 %v796, %v792
  %v1033 = vpack.c.b16 %v797, %v793
  %v1034 = vpack.c.b16 %v798, %v794
  %v1035 = vpack.c.b16 %v803, %v799
  %v1036 = vpack.c.b16 %v804, %v800
  %v1037 = vpack.c.b16 %v805, %v801
  %v1038 = vpack.c.b16 %v806, %v802
  %v1039 = vpack.c.b16 %v811, %v807
  %v1040 = vpack.c.b16 %v812, %v808
  %v1041 = vpack.c.b16 %v813, %v809
  %v1042 = vpack.c.b16 %v814, %v810
  %v1043 = vpack.c.b16 %v819, %v815
  %v1044 = vpack.c.b16 %v820, %v816
  %v1045 = vpack.c.b16 %v821, %v817
  %v1046 = vpack.c.b16 %v822, %v818
  %v1047 = vpack.c.b16 %v827, %v823
  %v1048 = vpack.c.b16 %v828, %v824
  %v1049 = vpack.c.b16 %v829, %v825
  %v1050 = vpack.c.b16 %v830, %v826
  %v1051 = vpack.c.b16 %v835, %v831
  %v1052 = vpack.c.b16 %v836, %v832
  %v1053 = vpack.c.b16 %v837, %v833
  %v1054 = vpack.c.b16 %v838, %v834
  %v1055 = vpack.c.b16 %v843, %v839
  %v1056 = vpack.c.b16 %v844, %v840
  %v1057 = vpack.c.b16 %v845, %v841
  %v1058 = vpack.c.b16 %v846, %v842
  %v1059 = vpack.c.b16 %v851, %v847
  %v1060 = vpack.c.b16 %v852, %v848
  %v1061 = vpack.c.b16 %v853, %v849
  %v1062 = vpack.c.b16 %v854, %v850
  %v1063 = vpack.c.b16 %v859, %v855
  %v1064 = vpack.c.b16 %v860, %v856
  %v1065 = vpack.c.b16 %v861, %v857
  %v1066 = vpack.c.b16 %v862, %v858
  %v1067 = vpack.c.b16 %v867, %v863
  %v1068 = vpack.c.b16 %v868, %v864
  %v1069 = vpack.c.b16 %v869, %v865
  %v1070 = vpack.c.b16 %v870, %v866
  %vm1271 = vcmask 261120
  %v1273 = vsel %vm1271, %v264, 0
  %1275 = vmatprep.subr.bf16.mxu0 %v872
  %1276 = vmatpush1.bf16.msra.mxu0 %v871
  %1277 = vmatprep.subr.bf16.mxu0 %v876
  %1278 = vmatpush1.bf16.msra.mxu0 %v875
  %1279 = vmatprep.subr.bf16.mxu0 %v880
  %1280 = vmatpush1.bf16.msra.mxu0 %v879
  %1281 = vmatprep.subr.bf16.mxu0 %v884
  %1282 = vmatpush1.bf16.msra.mxu0 %v883
  %1283 = vmatprep.subr.bf16.mxu0 %v888
  %1284 = vmatpush1.bf16.msra.mxu0 %v887
  %1285 = vmatprep.subr.bf16.mxu0 %v892
  %1286 = vmatpush1.bf16.msra.mxu0 %v891
  %1287 = vmatprep.subr.bf16.mxu0 %v896
  %1288 = vmatpush1.bf16.msra.mxu0 %v895
  %1289 = vmatprep.subr.bf16.mxu0 %v900
  %1290 = vmatpush1.bf16.msra.mxu0 %v899
  %1291 = vmatprep.subr.bf16.mxu0 %v904
  %1292 = vmatpush1.bf16.msra.mxu0 %v903
  %1293 = vmatprep.subr.bf16.mxu0 %v908
  %1294 = vmatpush1.bf16.msra.mxu0 %v907
  %1295 = vmatprep.subr.bf16.mxu0 %v912
  %1296 = vmatpush1.bf16.msra.mxu0 %v911
  %1297 = vmatprep.subr.bf16.mxu0 %v916
  %1298 = vmatpush1.bf16.msra.mxu0 %v915
  %1299 = vmatprep.subr.bf16.mxu0 %v920
  %1300 = vmatpush1.bf16.msra.mxu0 %v919
  %1301 = vmatprep.subr.bf16.mxu0 %v924
  %1302 = vmatpush1.bf16.msra.mxu0 %v923
  %1303 = vmatprep.subr.bf16.mxu0 %v928
  %1304 = vmatpush1.bf16.msra.mxu0 %v927
  %1305 = vmatprep.subr.bf16.mxu0 %v932
  %1306 = vmatpush1.bf16.msra.mxu0 %v931
  %1307 = vmatprep.mubr.bf16.mxu0 %v259
  %1308 = vmatmul.mubr.bf16.gmra.mrb[0].mxu0 %v258
  %v1309 = vpop.f32.mrb[0].mxu0
  %v1310 = vadd.f32 %v230, %v1309
  %v1311 = vpop.f32.mrb[0].mxu0
  %v1312 = vadd.f32 %v234, %v1311
  %v1313 = vpop.f32.mrb[0].mxu0
  %v1314 = vpop.f32.mrb[0].mxu0
  %1315 = vdwg.mxu0
  %1316 = vmatprep.subr.bf16.mxu0 %v936
  %1317 = vmatpush1.bf16.msra.mxu0 %v935
  %1318 = vmatprep.subr.bf16.mxu0 %v940
  %1319 = vmatpush1.bf16.msra.mxu0 %v939
  %1320 = vmatprep.subr.bf16.mxu0 %v944
  %1321 = vmatpush1.bf16.msra.mxu0 %v943
  %1322 = vmatprep.subr.bf16.mxu0 %v948
  %1323 = vmatpush1.bf16.msra.mxu0 %v947
  %1324 = vmatprep.subr.bf16.mxu0 %v952
  %1325 = vmatpush1.bf16.msra.mxu0 %v951
  %1326 = vmatprep.subr.bf16.mxu0 %v956
  %1327 = vmatpush1.bf16.msra.mxu0 %v955
  %1328 = vmatprep.subr.bf16.mxu0 %v960
  %1329 = vmatpush1.bf16.msra.mxu0 %v959
  %1330 = vmatprep.subr.bf16.mxu0 %v964
  %1331 = vmatpush1.bf16.msra.mxu0 %v963
  %1332 = vmatprep.subr.bf16.mxu0 %v968
  %1333 = vmatpush1.bf16.msra.mxu0 %v967
  %1334 = vmatprep.subr.bf16.mxu0 %v972
  %1335 = vmatpush1.bf16.msra.mxu0 %v971
  %1336 = vmatprep.subr.bf16.mxu0 %v976
  %1337 = vmatpush1.bf16.msra.mxu0 %v975
  %1338 = vmatprep.subr.bf16.mxu0 %v980
  %1339 = vmatpush1.bf16.msra.mxu0 %v979
  %1340 = vmatprep.subr.bf16.mxu0 %v984
  %1341 = vmatpush1.bf16.msra.mxu0 %v983
  %1342 = vmatprep.subr.bf16.mxu0 %v988
  %1343 = vmatpush1.bf16.msra.mxu0 %v987
  %1344 = vmatprep.subr.bf16.mxu0 %v992
  %1345 = vmatpush1.bf16.msra.mxu0 %v991
  %1346 = vmatprep.subr.bf16.mxu0 %v996
  %1347 = vmatpush1.bf16.msra.mxu0 %v995
  %1348 = vmatprep.mubr.bf16.mxu0 %v261
  %1349 = vmatmul.mubr.bf16.gmra.mrb[0].mxu0 %v260
  %v1350 = vpop.f32.mrb[0].mxu0
  %v1351 = vadd.f32 %v1310, %v1350
  %v1352 = vpop.f32.mrb[0].mxu0
  %v1353 = vadd.f32 %v1312, %v1352
  %v1354 = vpop.f32.mrb[0].mxu0
  %v1355 = vpop.f32.mrb[0].mxu0
  %1356 = vdwg.mxu0
  %1357 = vmatprep.subr.bf16.mxu0 %v1000
  %1358 = vmatpush1.bf16.msra.mxu0 %v999
  %1359 = vmatprep.subr.bf16.mxu0 %v1004
  %1360 = vmatpush1.bf16.msra.mxu0 %v1003
  %1361 = vmatprep.subr.bf16.mxu0 %v1008
  %1362 = vmatpush1.bf16.msra.mxu0 %v1007
  %1363 = vmatprep.subr.bf16.mxu0 %v1012
  %1364 = vmatpush1.bf16.msra.mxu0 %v1011
  %1365 = vmatprep.subr.bf16.mxu0 %v1016
  %1366 = vmatpush1.bf16.msra.mxu0 %v1015
  %1367 = vmatprep.subr.bf16.mxu0 %v1020
  %1368 = vmatpush1.bf16.msra.mxu0 %v1019
  %1369 = vmatprep.subr.bf16.mxu0 %v1024
  %1370 = vmatpush1.bf16.msra.mxu0 %v1023
  %1371 = vmatprep.subr.bf16.mxu0 %v1028
  %1372 = vmatpush1.bf16.msra.mxu0 %v1027
  %1373 = vmatprep.subr.bf16.mxu0 %v1032
  %1374 = vmatpush1.bf16.msra.mxu0 %v1031
  %1375 = vmatprep.subr.bf16.mxu0 %v1036
  %1376 = vmatpush1.bf16.msra.mxu0 %v1035
  %1377 = vmatprep.subr.bf16.mxu0 %v1040
  %1378 = vmatpush1.bf16.msra.mxu0 %v1039
  %1379 = vmatprep.subr.bf16.mxu0 %v1044
  %1380 = vmatpush1.bf16.msra.mxu0 %v1043
  %1381 = vmatprep.subr.bf16.mxu0 %v1048
  %1382 = vmatpush1.bf16.msra.mxu0 %v1047
  %1383 = vmatprep.subr.bf16.mxu0 %v1052
  %1384 = vmatpush1.bf16.msra.mxu0 %v1051
  %1385 = vmatprep.subr.bf16.mxu0 %v1056
  %1386 = vmatpush1.bf16.msra.mxu0 %v1055
  %1387 = vmatprep.subr.bf16.mxu0 %v1060
  %1388 = vmatpush1.bf16.msra.mxu0 %v1059
  %1389 = vmatprep.mubr.bf16.mxu0 %v263
  %1390 = vmatmul.mubr.bf16.gmra.mrb[0].mxu0 %v262
  %v1391 = vpop.f32.mrb[0].mxu0
  %v1392 = vadd.f32 %v1351, %v1391
  %v1393 = vpop.f32.mrb[0].mxu0
  %v1394 = vadd.f32 %v1353, %v1393
  %v1395 = vpop.f32.mrb[0].mxu0
  %v1396 = vpop.f32.mrb[0].mxu0
  %1397 = vdwg.mxu0
  %1398 = vmatprep.subr.bf16.mxu0 %v1064
  %1399 = vmatpush1.bf16.msra.mxu0 %v1063
  %1400 = vmatprep.subr.bf16.mxu0 %v1068
  %1401 = vmatpush1.bf16.msra.mxu0 %v1067
  %1402 = vmatprep.subr.bf16.mxu0 0
  %1403 = vmatpush1.bf16.msra.mxu0 0
  %1404 = vmatprep.subr.bf16.mxu0 0
  %1405 = vmatpush1.bf16.msra.mxu0 0
  %1406 = vmatprep.subr.bf16.mxu0 0
  %1407 = vmatpush1.bf16.msra.mxu0 0
  %1408 = vmatprep.subr.bf16.mxu0 0
  %1409 = vmatpush1.bf16.msra.mxu0 0
  %1410 = vmatprep.subr.bf16.mxu0 0
  %1411 = vmatpush1.bf16.msra.mxu0 0
  %1412 = vmatprep.subr.bf16.mxu0 0
  %1413 = vmatpush1.bf16.msra.mxu0 0
  %1414 = vmatprep.subr.bf16.mxu0 0
  %1415 = vmatpush1.bf16.msra.mxu0 0
  %1416 = vmatprep.subr.bf16.mxu0 0
  %1417 = vmatpush1.bf16.msra.mxu0 0
  %1418 = vmatprep.subr.bf16.mxu0 0
  %1419 = vmatpush1.bf16.msra.mxu0 0
  %1420 = vmatprep.subr.bf16.mxu0 0
  %1421 = vmatpush1.bf16.msra.mxu0 0
  %1422 = vmatprep.subr.bf16.mxu0 0
  %1423 = vmatpush1.bf16.msra.mxu0 0
  %1424 = vmatprep.subr.bf16.mxu0 0
  %1425 = vmatpush1.bf16.msra.mxu0 0
  %1426 = vmatprep.subr.bf16.mxu0 0
  %1427 = vmatpush1.bf16.msra.mxu0 0
  %1428 = vmatprep.subr.bf16.mxu0 0
  %1429 = vmatpush1.bf16.msra.mxu0 0
  %1430 = vmatprep.mubr.bf16.mxu0 0
  %1431 = vmatmul.mubr.bf16.gmra.mrb[0].mxu0 %v1273
  %v1432 = vpop.f32.mrb[0].mxu0
  %v1433 = vadd.f32 %v1392, %v1432
  %v1434 = vpop.f32.mrb[0].mxu0
  %v1435 = vadd.f32 %v1394, %v1434
  %v1436 = vpop.f32.mrb[0].mxu0
  %v1437 = vpop.f32.mrb[0].mxu0
  %1438 = vdwg.mxu0
  %1439 = vmatprep.subr.bf16.mxu0 %v874
  %1440 = vmatpush1.bf16.msra.mxu0 %v873
  %1441 = vmatprep.subr.bf16.mxu0 %v878
  %1442 = vmatpush1.bf16.msra.mxu0 %v877
  %1443 = vmatprep.subr.bf16.mxu0 %v882
  %1444 = vmatpush1.bf16.msra.mxu0 %v881
  %1445 = vmatprep.subr.bf16.mxu0 %v886
  %1446 = vmatpush1.bf16.msra.mxu0 %v885
  %1447 = vmatprep.subr.bf16.mxu0 %v890
  %1448 = vmatpush1.bf16.msra.mxu0 %v889
  %1449 = vmatprep.subr.bf16.mxu0 %v894
  %1450 = vmatpush1.bf16.msra.mxu0 %v893
  %1451 = vmatprep.subr.bf16.mxu0 %v898
  %1452 = vmatpush1.bf16.msra.mxu0 %v897
  %1453 = vmatprep.subr.bf16.mxu0 %v902
  %1454 = vmatpush1.bf16.msra.mxu0 %v901
  %1455 = vmatprep.subr.bf16.mxu0 %v906
  %1456 = vmatpush1.bf16.msra.mxu0 %v905
  %1457 = vmatprep.subr.bf16.mxu0 %v910
  %1458 = vmatpush1.bf16.msra.mxu0 %v909
  %1459 = vmatprep.subr.bf16.mxu0 %v914
  %1460 = vmatpush1.bf16.msra.mxu0 %v913
  %1461 = vmatprep.subr.bf16.mxu0 %v918
  %1462 = vmatpush1.bf16.msra.mxu0 %v917
  %1463 = vmatprep.subr.bf16.mxu0 %v922
  %1464 = vmatpush1.bf16.msra.mxu0 %v921
  %1465 = vmatprep.subr.bf16.mxu0 %v926
  %1466 = vmatpush1.bf16.msra.mxu0 %v925
  %1467 = vmatprep.subr.bf16.mxu0 %v930
  %1468 = vmatpush1.bf16.msra.mxu0 %v929
  %1469 = vmatprep.subr.bf16.mxu0 %v934
  %1470 = vmatpush1.bf16.msra.mxu0 %v933
  %1471 = vmatprep.mubr.bf16.mxu0 %v259
  %1472 = vmatmul.mubr.bf16.gmra.mrb[0].mxu0 %v258
  %v1473 = vpop.f32.mrb[0].mxu0
  %v1474 = vadd.f32 %v238, %v1473
  %v1475 = vpop.f32.mrb[0].mxu0
  %v1476 = vadd.f32 %v242, %v1475
  %v1477 = vpop.f32.mrb[0].mxu0
  %v1478 = vpop.f32.mrb[0].mxu0
  %1479 = vdwg.mxu0
  %1480 = vmatprep.subr.bf16.mxu0 %v938
  %1481 = vmatpush1.bf16.msra.mxu0 %v937
  %1482 = vmatprep.subr.bf16.mxu0 %v942
  %1483 = vmatpush1.bf16.msra.mxu0 %v941
  %1484 = vmatprep.subr.bf16.mxu0 %v946
  %1485 = vmatpush1.bf16.msra.mxu0 %v945
  %1486 = vmatprep.subr.bf16.mxu0 %v950
  %1487 = vmatpush1.bf16.msra.mxu0 %v949
  %1488 = vmatprep.subr.bf16.mxu0 %v954
  %1489 = vmatpush1.bf16.msra.mxu0 %v953
  %1490 = vmatprep.subr.bf16.mxu0 %v958
  %1491 = vmatpush1.bf16.msra.mxu0 %v957
  %1492 = vmatprep.subr.bf16.mxu0 %v962
  %1493 = vmatpush1.bf16.msra.mxu0 %v961
  %1494 = vmatprep.subr.bf16.mxu0 %v966
  %1495 = vmatpush1.bf16.msra.mxu0 %v965
  %1496 = vmatprep.subr.bf16.mxu0 %v970
  %1497 = vmatpush1.bf16.msra.mxu0 %v969
  %1498 = vmatprep.subr.bf16.mxu0 %v974
  %1499 = vmatpush1.bf16.msra.mxu0 %v973
  %1500 = vmatprep.subr.bf16.mxu0 %v978
  %1501 = vmatpush1.bf16.msra.mxu0 %v977
  %1502 = vmatprep.subr.bf16.mxu0 %v982
  %1503 = vmatpush1.bf16.msra.mxu0 %v981
  %1504 = vmatprep.subr.bf16.mxu0 %v986
  %1505 = vmatpush1.bf16.msra.mxu0 %v985
  %1506 = vmatprep.subr.bf16.mxu0 %v990
  %1507 = vmatpush1.bf16.msra.mxu0 %v989
  %1508 = vmatprep.subr.bf16.mxu0 %v994
  %1509 = vmatpush1.bf16.msra.mxu0 %v993
  %1510 = vmatprep.subr.bf16.mxu0 %v998
  %1511 = vmatpush1.bf16.msra.mxu0 %v997
  %1512 = vmatprep.mubr.bf16.mxu0 %v261
  %1513 = vmatmul.mubr.bf16.gmra.mrb[0].mxu0 %v260
  %v1514 = vpop.f32.mrb[0].mxu0
  %v1515 = vadd.f32 %v1474, %v1514
  %v1516 = vpop.f32.mrb[0].mxu0
  %v1517 = vadd.f32 %v1476, %v1516
  %v1518 = vpop.f32.mrb[0].mxu0
  %v1519 = vpop.f32.mrb[0].mxu0
  %1520 = vdwg.mxu0
  %1521 = vmatprep.subr.bf16.mxu0 %v1002
  %1522 = vmatpush1.bf16.msra.mxu0 %v1001
  %1523 = vmatprep.subr.bf16.mxu0 %v1006
  %1524 = vmatpush1.bf16.msra.mxu0 %v1005
  %1525 = vmatprep.subr.bf16.mxu0 %v1010
  %1526 = vmatpush1.bf16.msra.mxu0 %v1009
  %1527 = vmatprep.subr.bf16.mxu0 %v1014
  %1528 = vmatpush1.bf16.msra.mxu0 %v1013
  %1529 = vmatprep.subr.bf16.mxu0 %v1018
  %1530 = vmatpush1.bf16.msra.mxu0 %v1017
  %1531 = vmatprep.subr.bf16.mxu0 %v1022
  %1532 = vmatpush1.bf16.msra.mxu0 %v1021
  %1533 = vmatprep.subr.bf16.mxu0 %v1026
  %1534 = vmatpush1.bf16.msra.mxu0 %v1025
  %1535 = vmatprep.subr.bf16.mxu0 %v1030
  %1536 = vmatpush1.bf16.msra.mxu0 %v1029
  %1537 = vmatprep.subr.bf16.mxu0 %v1034
  %1538 = vmatpush1.bf16.msra.mxu0 %v1033
  %1539 = vmatprep.subr.bf16.mxu0 %v1038
  %1540 = vmatpush1.bf16.msra.mxu0 %v1037
  %1541 = vmatprep.subr.bf16.mxu0 %v1042
  %1542 = vmatpush1.bf16.msra.mxu0 %v1041
  %1543 = vmatprep.subr.bf16.mxu0 %v1046
  %1544 = vmatpush1.bf16.msra.mxu0 %v1045
  %1545 = vmatprep.subr.bf16.mxu0 %v1050
  %1546 = vmatpush1.bf16.msra.mxu0 %v1049
  %1547 = vmatprep.subr.bf16.mxu0 %v1054
  %1548 = vmatpush1.bf16.msra.mxu0 %v1053
  %1549 = vmatprep.subr.bf16.mxu0 %v1058
  %1550 = vmatpush1.bf16.msra.mxu0 %v1057
  %1551 = vmatprep.subr.bf16.mxu0 %v1062
  %1552 = vmatpush1.bf16.msra.mxu0 %v1061
  %1553 = vmatprep.mubr.bf16.mxu0 %v263
  %1554 = vmatmul.mubr.bf16.gmra.mrb[0].mxu0 %v262
  %v1555 = vpop.f32.mrb[0].mxu0
  %v1556 = vadd.f32 %v1515, %v1555
  %v1557 = vpop.f32.mrb[0].mxu0
  %v1558 = vadd.f32 %v1517, %v1557
  %v1559 = vpop.f32.mrb[0].mxu0
  %v1560 = vpop.f32.mrb[0].mxu0
  %1561 = vdwg.mxu0
  %1562 = vmatprep.subr.bf16.mxu0 %v1066
  %1563 = vmatpush1.bf16.msra.mxu0 %v1065
  %1564 = vmatprep.subr.bf16.mxu0 %v1070
  %1565 = vmatpush1.bf16.msra.mxu0 %v1069
  %1566 = vmatprep.subr.bf16.mxu0 0
  %1567 = vmatpush1.bf16.msra.mxu0 0
  %1568 = vmatprep.subr.bf16.mxu0 0
  %1569 = vmatpush1.bf16.msra.mxu0 0
  %1570 = vmatprep.subr.bf16.mxu0 0
  %1571 = vmatpush1.bf16.msra.mxu0 0
  %1572 = vmatprep.subr.bf16.mxu0 0
  %1573 = vmatpush1.bf16.msra.mxu0 0
  %1574 = vmatprep.subr.bf16.mxu0 0
  %1575 = vmatpush1.bf16.msra.mxu0 0
  %1576 = vmatprep.subr.bf16.mxu0 0
  %1577 = vmatpush1.bf16.msra.mxu0 0
  %1578 = vmatprep.subr.bf16.mxu0 0
  %1579 = vmatpush1.bf16.msra.mxu0 0
  %1580 = vmatprep.subr.bf16.mxu0 0
  %1581 = vmatpush1.bf16.msra.mxu0 0
  %1582 = vmatprep.subr.bf16.mxu0 0
  %1583 = vmatpush1.bf16.msra.mxu0 0
  %1584 = vmatprep.subr.bf16.mxu0 0
  %1585 = vmatpush1.bf16.msra.mxu0 0
  %1586 = vmatprep.subr.bf16.mxu0 0
  %1587 = vmatpush1.bf16.msra.mxu0 0
  %1588 = vmatprep.subr.bf16.mxu0 0
  %1589 = vmatpush1.bf16.msra.mxu0 0
  %1590 = vmatprep.subr.bf16.mxu0 0
  %1591 = vmatpush1.bf16.msra.mxu0 0
  %1592 = vmatprep.subr.bf16.mxu0 0
  %1593 = vmatpush1.bf16.msra.mxu0 0
  %1594 = vmatprep.mubr.bf16.mxu0 0
  %1595 = vmatmul.mubr.bf16.gmra.mrb[0].mxu0 %v1273
  %v1596 = vpop.f32.mrb[0].mxu0
  %v1597 = vadd.f32 %v1556, %v1596
  %v1598 = vpop.f32.mrb[0].mxu0
  %v1599 = vadd.f32 %v1558, %v1598
  %v1600 = vpop.f32.mrb[0].mxu0
  %v1601 = vpop.f32.mrb[0].mxu0
  %1602 = vdwg.mxu0
  %v1603 = vmax.f32 %v1433, 0.0
  %v1604 = vmax.f32 %v1435, 0.0
  %v1605 = vmax.f32 %v1597, 0.0
  %v1606 = vmax.f32 %v1599, 0.0
  %v1607 = vpack.c.bf16 %v1603, %v1603
  %v1608 = vpack.c.bf16 %v1604, %v1604
  %v1609 = vpack.c.bf16 %v1605, %v1605
  %v1610 = vpack.c.bf16 %v1606, %v1606
  %v1611 = vld [vmem:[%s3] sm:$0xf]
  %v1612 = vld [vmem:[%s3 + $0x4] sm:$0xf]
  %v1613 = vld [vmem:[%s3 + $0x8] sm:$0xf]
  %v1614 = vld [vmem:[%s3 + $0xc] sm:$0xf]
  %v1615 = vld [vmem:[%s3 + $0x10] sm:$0xf]
  %v1616 = vld [vmem:[%s3 + $0x14] sm:$0xf]
  %v1617 = vld [vmem:[%s3 + $0x18] sm:$0xf]
  %v1618 = vld [vmem:[%s3 + $0x1c] sm:$0xf]
  %v1619 = vld [vmem:[%s3 + $0x20] sm:$0xf]
  %v1620 = vld [vmem:[%s3 + $0x24] sm:$0xf]
  %v1621 = vld [vmem:[%s3 + $0x28] sm:$0xf]
  %v1622 = vld [vmem:[%s3 + $0x2c] sm:$0xf]
  %v1623 = vld [vmem:[%s3 + $0x30] sm:$0xf]
  %v1624 = vld [vmem:[%s3 + $0x34] sm:$0xf]
  %v1625 = vld [vmem:[%s3 + $0x38] sm:$0xf]
  %v1626 = vld [vmem:[%s3 + $0x3c] sm:$0xf]
  %v1627 = vld [vmem:[%s3 + $0x40] sm:$0xf]
  %v1628 = vld [vmem:[%s3 + $0x44] sm:$0xf]
  %v1629 = vld [vmem:[%s3 + $0x48] sm:$0xf]
  %v1630 = vld [vmem:[%s3 + $0x4c] sm:$0xf]
  %v1631 = vld [vmem:[%s3 + $0x50] sm:$0xf]
  %v1632 = vld [vmem:[%s3 + $0x54] sm:$0xf]
  %v1633 = vld [vmem:[%s3 + $0x58] sm:$0xf]
  %v1634 = vld [vmem:[%s3 + $0x5c] sm:$0xf]
  %v1635 = vld [vmem:[%s3 + $0x60] sm:$0xf]
  %v1636 = vld [vmem:[%s3 + $0x64] sm:$0xf]
  %v1637 = vld [vmem:[%s3 + $0x68] sm:$0xf]
  %v1638 = vld [vmem:[%s3 + $0x6c] sm:$0xf]
  %v1639 = vld [vmem:[%s3 + $0x70] sm:$0xf]
  %v1640 = vld [vmem:[%s3 + $0x74] sm:$0xf]
  %v1641 = vld [vmem:[%s3 + $0x78] sm:$0xf]
  %v1642 = vld [vmem:[%s3 + $0x7c] sm:$0xf]
  %v1643 = vld [vmem:[%s3 + $0x80] sm:$0xf]
  %v1644 = vld [vmem:[%s3 + $0x84] sm:$0xf]
  %v1645 = vld [vmem:[%s3 + $0x88] sm:$0xf]
  %v1646 = vld [vmem:[%s3 + $0x8c] sm:$0xf]
  %v1647 = vld [vmem:[%s3 + $0x90] sm:$0xf]
  %v1648 = vld [vmem:[%s3 + $0x94] sm:$0xf]
  %v1649 = vld [vmem:[%s3 + $0x98] sm:$0xf]
  %v1650 = vld [vmem:[%s3 + $0x9c] sm:$0xf]
  %v1651 = vld [vmem:[%s3 + $0xa0] sm:$0xf]
  %v1652 = vld [vmem:[%s3 + $0xa4] sm:$0xf]
  %v1653 = vld [vmem:[%s3 + $0xa8] sm:$0xf]
  %v1654 = vld [vmem:[%s3 + $0xac] sm:$0xf]
  %v1655 = vld [vmem:[%s3 + $0xb0] sm:$0xf]
  %v1656 = vld [vmem:[%s3 + $0xb4] sm:$0xf]
  %v1657 = vld [vmem:[%s3 + $0xb8] sm:$0xf]
  %v1658 = vld [vmem:[%s3 + $0xbc] sm:$0xf]
  %v1659 = vld [vmem:[%s3 + $0xc0] sm:$0xf]
  %v1660 = vld [vmem:[%s3 + $0xc4] sm:$0xf]
  %v1661 = vld [vmem:[%s3 + $0xc8] sm:$0xf]
  %v1662 = vld [vmem:[%s3 + $0xcc] sm:$0xf]
  %v1663 = vld [vmem:[%s3 + $0xd0] sm:$0xf]
  %v1664 = vld [vmem:[%s3 + $0xd4] sm:$0xf]
  %v1665 = vld [vmem:[%s3 + $0xd8] sm:$0xf]
  %v1666 = vld [vmem:[%s3 + $0xdc] sm:$0xf]
  %v1667 = vld [vmem:[%s3 + $0xe0] sm:$0xf]
  %v1668 = vld [vmem:[%s3 + $0xe4] sm:$0xf]
  %v1669 = vld [vmem:[%s3 + $0xe8] sm:$0xf]
  %v1670 = vld [vmem:[%s3 + $0xec] sm:$0xf]
  %v1671 = vld [vmem:[%s3 + $0xf0] sm:$0xf]
  %v1672 = vld [vmem:[%s3 + $0xf4] sm:$0xf]
  %v1673 = vld [vmem:[%s3 + $0xf8] sm:$0x3]
  %v1674 = vld [vmem:[%s4] sm:$0x1]
  %v1676 = vlaneseq
  %v1677 = vshrl.u32 %v1676, 7
  %v1678 = vsub.s32 0, %v1677
  %v1679 = vrot.slane %v1674, %v1678
  %v1744 = vunpack.c.l.b16 %v1611
  %v1745 = vunpack.c.l.b16 %v1612
  %v1746 = vunpack.c.l.b16 %v1613
  %v1747 = vunpack.c.l.b16 %v1614
  %v1748 = vunpack.c.l.b16 %v1615
  %v1749 = vunpack.c.l.b16 %v1616
  %v1750 = vunpack.c.l.b16 %v1617
  %v1751 = vunpack.c.l.b16 %v1618
  %v1752 = vunpack.c.l.b16 %v1619
  %v1753 = vunpack.c.l.b16 %v1620
  %v1754 = vunpack.c.l.b16 %v1621
  %v1755 = vunpack.c.l.b16 %v1622
  %v1756 = vunpack.c.l.b16 %v1623
  %v1757 = vunpack.c.l.b16 %v1624
  %v1758 = vunpack.c.l.b16 %v1625
  %v1759 = vunpack.c.l.b16 %v1626
  %v1760 = vunpack.c.l.b16 %v1627
  %v1761 = vunpack.c.l.b16 %v1628
  %v1762 = vunpack.c.l.b16 %v1629
  %v1763 = vunpack.c.l.b16 %v1630
  %v1764 = vunpack.c.l.b16 %v1631
  %v1765 = vunpack.c.l.b16 %v1632
  %v1766 = vunpack.c.l.b16 %v1633
  %v1767 = vunpack.c.l.b16 %v1634
  %v1768 = vunpack.c.l.b16 %v1635
  %v1769 = vunpack.c.l.b16 %v1636
  %v1770 = vunpack.c.l.b16 %v1637
  %v1771 = vunpack.c.l.b16 %v1638
  %v1772 = vunpack.c.l.b16 %v1639
  %v1773 = vunpack.c.l.b16 %v1640
  %v1774 = vunpack.c.l.b16 %v1641
  %v1775 = vunpack.c.l.b16 %v1642
  %v1776 = vunpack.c.l.b16 %v1643
  %v1777 = vunpack.c.l.b16 %v1644
  %v1778 = vunpack.c.l.b16 %v1645
  %v1779 = vunpack.c.l.b16 %v1646
  %v1780 = vunpack.c.l.b16 %v1647
  %v1781 = vunpack.c.l.b16 %v1648
  %v1782 = vunpack.c.l.b16 %v1649
  %v1783 = vunpack.c.l.b16 %v1650
  %v1784 = vunpack.c.l.b16 %v1651
  %v1785 = vunpack.c.l.b16 %v1652
  %v1786 = vunpack.c.l.b16 %v1653
  %v1787 = vunpack.c.l.b16 %v1654
  %v1788 = vunpack.c.l.b16 %v1655
  %v1789 = vunpack.c.l.b16 %v1656
  %v1790 = vunpack.c.l.b16 %v1657
  %v1791 = vunpack.c.l.b16 %v1658
  %v1792 = vunpack.c.l.b16 %v1659
  %v1793 = vunpack.c.l.b16 %v1660
  %v1794 = vunpack.c.l.b16 %v1661
  %v1795 = vunpack.c.l.b16 %v1662
  %v1796 = vunpack.c.l.b16 %v1663
  %v1797 = vunpack.c.l.b16 %v1664
  %v1798 = vunpack.c.l.b16 %v1665
  %v1799 = vunpack.c.l.b16 %v1666
  %v1800 = vunpack.c.l.b16 %v1667
  %v1801 = vunpack.c.l.b16 %v1668
  %v1802 = vunpack.c.l.b16 %v1669
  %v1803 = vunpack.c.l.b16 %v1670
  %v1804 = vunpack.c.l.b16 %v1671
  %v1805 = vunpack.c.l.b16 %v1672
  %v1806 = vunpack.c.l.b16 %v1673
  %v1807 = vpack.c.b16 %v1745, %v1744
  %v1808 = vpack.c.b16 %v1747, %v1746
  %v1809 = vpack.c.b16 %v1749, %v1748
  %v1810 = vpack.c.b16 %v1751, %v1750
  %v1811 = vpack.c.b16 %v1753, %v1752
  %v1812 = vpack.c.b16 %v1755, %v1754
  %v1813 = vpack.c.b16 %v1757, %v1756
  %v1814 = vpack.c.b16 %v1759, %v1758
  %v1815 = vpack.c.b16 %v1761, %v1760
  %v1816 = vpack.c.b16 %v1763, %v1762
  %v1817 = vpack.c.b16 %v1765, %v1764
  %v1818 = vpack.c.b16 %v1767, %v1766
  %v1819 = vpack.c.b16 %v1769, %v1768
  %v1820 = vpack.c.b16 %v1771, %v1770
  %v1821 = vpack.c.b16 %v1773, %v1772
  %v1822 = vpack.c.b16 %v1775, %v1774
  %v1823 = vpack.c.b16 %v1777, %v1776
  %v1824 = vpack.c.b16 %v1779, %v1778
  %v1825 = vpack.c.b16 %v1781, %v1780
  %v1826 = vpack.c.b16 %v1783, %v1782
  %v1827 = vpack.c.b16 %v1785, %v1784
  %v1828 = vpack.c.b16 %v1787, %v1786
  %v1829 = vpack.c.b16 %v1789, %v1788
  %v1830 = vpack.c.b16 %v1791, %v1790
  %v1831 = vpack.c.b16 %v1793, %v1792
  %v1832 = vpack.c.b16 %v1795, %v1794
  %v1833 = vpack.c.b16 %v1797, %v1796
  %v1834 = vpack.c.b16 %v1799, %v1798
  %v1835 = vpack.c.b16 %v1801, %v1800
  %v1836 = vpack.c.b16 %v1803, %v1802
  %v1837 = vpack.c.b16 %v1805, %v1804
  %v1838 = vpack.c.b16 %v1806, %v1806
  %vm1870 = vcmask 949248
  %v1872 = vsel %vm1870, %v1610, 0
  %vm1874 = vcmask 1041408
  %v1876 = vsel %vm1874, %v1838, 0
  %1878 = vmatprep.subr.bf16.mxu0 0
  %1879 = vmatpush1.bf16.msra.mxu0 %v1807
  %1880 = vmatprep.subr.bf16.mxu0 0
  %1881 = vmatpush1.bf16.msra.mxu0 %v1808
  %1882 = vmatprep.subr.bf16.mxu0 0
  %1883 = vmatpush1.bf16.msra.mxu0 %v1809
  %1884 = vmatprep.subr.bf16.mxu0 0
  %1885 = vmatpush1.bf16.msra.mxu0 %v1810
  %1886 = vmatprep.subr.bf16.mxu0 0
  %1887 = vmatpush1.bf16.msra.mxu0 %v1811
  %1888 = vmatprep.subr.bf16.mxu0 0
  %1889 = vmatpush1.bf16.msra.mxu0 %v1812
  %1890 = vmatprep.subr.bf16.mxu0 0
  %1891 = vmatpush1.bf16.msra.mxu0 %v1813
  %1892 = vmatprep.subr.bf16.mxu0 0
  %1893 = vmatpush1.bf16.msra.mxu0 %v1814
  %1894 = vmatprep.subr.bf16.mxu0 0
  %1895 = vmatpush1.bf16.msra.mxu0 %v1815
  %1896 = vmatprep.subr.bf16.mxu0 0
  %1897 = vmatpush1.bf16.msra.mxu0 %v1816
  %1898 = vmatprep.subr.bf16.mxu0 0
  %1899 = vmatpush1.bf16.msra.mxu0 %v1817
  %1900 = vmatprep.subr.bf16.mxu0 0
  %1901 = vmatpush1.bf16.msra.mxu0 %v1818
  %1902 = vmatprep.subr.bf16.mxu0 0
  %1903 = vmatpush1.bf16.msra.mxu0 %v1819
  %1904 = vmatprep.subr.bf16.mxu0 0
  %1905 = vmatpush1.bf16.msra.mxu0 %v1820
  %1906 = vmatprep.subr.bf16.mxu0 0
  %1907 = vmatpush1.bf16.msra.mxu0 %v1821
  %1908 = vmatprep.subr.bf16.mxu0 0
  %1909 = vmatpush1.bf16.msra.mxu0 %v1822
  %1910 = vmatprep.mubr.bf16.mxu0 %v1608
  %1911 = vmatmul.mubr.bf16.gmra.mrb[0].mxu0 %v1607
  %v1912 = vpop.f32.mrb[0].mxu0
  %v1913 = vadd.f32 %v1679, %v1912
  %v1914 = vpop.f32.mrb[0].mxu0
  %v1915 = vpop.f32.mrb[0].mxu0
  %v1916 = vpop.f32.mrb[0].mxu0
  %1917 = vdwg.mxu0
  %1918 = vmatprep.subr.bf16.mxu0 0
  %1919 = vmatpush1.bf16.msra.mxu0 %v1823
  %1920 = vmatprep.subr.bf16.mxu0 0
  %1921 = vmatpush1.bf16.msra.mxu0 %v1824
  %1922 = vmatprep.subr.bf16.mxu0 0
  %1923 = vmatpush1.bf16.msra.mxu0 %v1825
  %1924 = vmatprep.subr.bf16.mxu0 0
  %1925 = vmatpush1.bf16.msra.mxu0 %v1826
  %1926 = vmatprep.subr.bf16.mxu0 0
  %1927 = vmatpush1.bf16.msra.mxu0 %v1827
  %1928 = vmatprep.subr.bf16.mxu0 0
  %1929 = vmatpush1.bf16.msra.mxu0 %v1828
  %1930 = vmatprep.subr.bf16.mxu0 0
  %1931 = vmatpush1.bf16.msra.mxu0 %v1829
  %1932 = vmatprep.subr.bf16.mxu0 0
  %1933 = vmatpush1.bf16.msra.mxu0 %v1830
  %1934 = vmatprep.subr.bf16.mxu0 0
  %1935 = vmatpush1.bf16.msra.mxu0 %v1831
  %1936 = vmatprep.subr.bf16.mxu0 0
  %1937 = vmatpush1.bf16.msra.mxu0 %v1832
  %1938 = vmatprep.subr.bf16.mxu0 0
  %1939 = vmatpush1.bf16.msra.mxu0 %v1833
  %1940 = vmatprep.subr.bf16.mxu0 0
  %1941 = vmatpush1.bf16.msra.mxu0 %v1834
  %1942 = vmatprep.subr.bf16.mxu0 0
  %1943 = vmatpush1.bf16.msra.mxu0 %v1835
  %1944 = vmatprep.subr.bf16.mxu0 0
  %1945 = vmatpush1.bf16.msra.mxu0 %v1836
  %1946 = vmatprep.subr.bf16.mxu0 0
  %1947 = vmatpush1.bf16.msra.mxu0 %v1837
  %1948 = vmatprep.subr.bf16.mxu0 0
  %1949 = vmatpush1.bf16.msra.mxu0 %v1876
  %1950 = vmatprep.mubr.bf16.mxu0 %v1872
  %1951 = vmatmul.mubr.bf16.gmra.mrb[0].mxu0 %v1609
  %v1952 = vpop.f32.mrb[0].mxu0
  %v1953 = vadd.f32 %v1913, %v1952
  %v1954 = vpop.f32.mrb[0].mxu0
  %v1955 = vpop.f32.mrb[0].mxu0
  %v1956 = vpop.f32.mrb[0].mxu0
  %1957 = vdwg.mxu0
  %vm1958 = vcmask 80896
  %v1959 = vsel %vm1958, %v1953, -inf
  %1960 = vmax.xlane.f32.xlu0 %v1959
  %v1961 = vpop.xlane.xlu0 %1960
  %v1962 = vsub.f32 %v1953, %v1961
  %v1963 = vmul.f32 %v1962, 1.442695
  %v1964 = vpow.pop %v1963
  %v1965 = vsel %vm1958, %v1964, 0.0
  %1966 = vadd.xlane.f32.xlu0 %v1965
  %v1967 = vpop.xlane.xlu0 %1966
  %v1968 = vlog2.pop %v1967
  %v1969 = vmul.f32 %v1968, 0.6931472
  %v1970 = vsub.f32 %v1962, %v1969
  %1971 = vst.msk [vmem:[%s5] sm:$0xff] %vm1958, %v1970
  // Predicated region
  $region22: #{warmnet_forward.5} parent=0 // pred_check
    _
  $region23: #{warmnet_forward.5} parent=0 // pred_check_branch
    %1973 = sbr.rel (0) target = $region25
  $region24: #{warmnet_forward.5} parent=0 // pred_region
    _
  $region25: #{warmnet_forward.5} parent=0 // pred_fallthru
    _
  // Predicated region
  $region26: #{warmnet_forward.5} parent=0 // pred_check
    _
  $region27: #{warmnet_forward.5} parent=0 // pred_check_branch
    %1975 = sbr.rel (0) target = $region29
  $region28: #{warmnet_forward.5} parent=0 // pred_region
    _
  $region29: #{warmnet_forward.5} parent=0 // pred_fallthru
    _

</llo_original>
